<compile_context>
chip_gen: v7x
topology: tpu7x:2x2x1
jax: 0.10.0
libtpu: 0.0.40
codegen_flags: <defaults>
</compile_context>

<pallas_src>
import jax
import jax.numpy as jnp
from jax.experimental import pallas as pl
from jax.experimental.pallas import tpu as pltpu

# ---- model constants -------------------------------------------------------
K = 5                   # conv kernel width
PAD = K // 2            # 'same' padding
C0, C1, C2 = 20, 8, 64  # channels: input -> conv1 -> conv2
W_IN = 20               # input width implied by Linear(64 * (W/4) = 320)
WP, WQ = W_IN // 2, W_IN // 4
HIDDEN, NCLS = 16, 2

# ---- row-layout constants --------------------------------------------------
P1 = 32                 # per-sample row pitch of the padded conv1 input
D1 = 4                  # row offset of the sample data inside its P1 block
P2 = 16                 # per-sample row pitch after pool1 (= P1 // 2)
P3 = 8                  # per-sample row pitch after pool2 (= P2 // 2)


def seq_kernel(x_ref, w1_ref, b1_ref, w2_ref, b2_ref, wf1_ref, bf1_ref,
               wf2_ref, bf2_ref, out_ref,
               h1_ref, pool1_ref, h2_ref, pool2_ref):
    f32 = jnp.float32
    TB = out_ref.shape[0] // P3        # samples in this block
    R1 = TB * P1                       # rows of the conv1 input block
    L1 = R1 - 8                        # conv1 rows computed (covers all valid rows)
    L2 = TB * P2                       # rows of the conv2 domain
    L3 = TB * P3                       # rows of the FC domain

    # ---- Conv1 (20->8, width 5, 'same') + ReLU -----------------------------
    # valid output of sample b, position w sits at row 32*b + 2 + w.
    acc1 = jnp.dot(x_ref[0:L1, :], w1_ref[0], preferred_element_type=f32)
    for k in range(1, K):
        acc1 = acc1 + jnp.dot(x_ref[k:k + L1, :], w1_ref[k],
                              preferred_element_type=f32)
    h1_ref[0:L1, :] = jnp.maximum(acc1 + b1_ref[...], 0.0)
    h1_ref[L1:R1 + 8, :] = jnp.zeros((16, C1), f32)      # clean tail rows

    # ---- MaxPool (1,2) -> zero-padded pitch-16 layout for conv2 ------------
    ev = h1_ref[pl.ds(D1 - 2, L2, stride=2), :]
    od = h1_ref[pl.ds(D1 - 1, L2, stride=2), :]
    pooled = jnp.maximum(ev, od)                          # index 16*b + p
    pos = jax.lax.broadcasted_iota(jnp.int32, (L2, C1), 0) & (P2 - 1)
    pooled = jnp.where(pos < WP, pooled, 0.0)             # zero the pad slots
    pool1_ref[0:8, :] = jnp.zeros((8, C1), f32)           # left pad of sample 0
    pool1_ref[8:8 + L2, :] = pooled                       # data at row 8+16b+p

    # ---- Conv2 (8->64, width 5, 'same') + ReLU ------------------------------
    # valid output of sample b, position q sits at row 16*b + 6 + q.
    acc2 = jnp.dot(pool1_ref[0:L2, :], w2_ref[0], preferred_element_type=f32)
    for k in range(1, K):
        acc2 = acc2 + jnp.dot(pool1_ref[k:k + L2, :], w2_ref[k],
                              preferred_element_type=f32)
    h2_ref[0:L2, :] = jnp.maximum(acc2 + b2_ref[...], 0.0)   # relu/max commute
    h2_ref[L2:L2 + 8, :] = jnp.zeros((8, C2), f32)

    # ---- MaxPool (1,2) -> pitch-8 layout ------------------------------------
    ev2 = h2_ref[pl.ds(6, L3, stride=2), :]
    od2 = h2_ref[pl.ds(7, L3, stride=2), :]
    pooled2 = jnp.maximum(ev2, od2)                       # index 8*b + s
    pos2 = jax.lax.broadcasted_iota(jnp.int32, (L3, C2), 0) & (P3 - 1)
    pooled2 = jnp.where(pos2 < WQ, pooled2, 0.0)
    pool2_ref[0:L3, :] = pooled2
    pool2_ref[L3:L3 + 8, :] = jnp.zeros((8, C2), f32)

    # ---- Flatten + Linear(320,16) + ReLU (shifted-window form) --------------
    # F[r] = sum_s pool2[r+s] @ wf1[s]; the valid result for sample b is F[8*b].
    accf = jnp.dot(pool2_ref[0:L3, :], wf1_ref[0], preferred_element_type=f32)
    for s in range(1, WQ):
        accf = accf + jnp.dot(pool2_ref[s:s + L3, :], wf1_ref[s],
                              preferred_element_type=f32)
    f1 = jnp.maximum(accf + bf1_ref[...], 0.0)            # (L3, 16)

    # ---- Linear(16,2) + Softmax(dim=1) ---------------------------------------
    logits = jnp.dot(f1, wf2_ref[...], preferred_element_type=f32) + bf2_ref[...]
    m = jnp.max(logits, axis=-1, keepdims=True)
    e = jnp.exp(logits - m)
    out_ref[...] = e / jnp.sum(e, axis=-1, keepdims=True)  # (L3, 2); rows 8*b valid


def seq_embed_32x1_16_forward(x_nchw, params, *, tb_max=128):
    """x_nchw: (N, 20, 1, 20) float32 (PyTorch NCHW layout)."""
    w1, b1, w2, b2, wf1, bf1, wf2, bf2 = params
    N, C, H, W = x_nchw.shape
    assert C == C0 and H == 1 and W == W_IN

    def rup(a, m):
        return (a + m - 1) // m * m

    TB = min(tb_max, rup(N, 8))       # samples per grid step
    N_pad = rup(N, TB)

    # NCHW -> channels-last (N, W, C0); pad batch; embed each sample into a
    # zero-padded P1-row block; flatten to a 2-D row matrix.
    x = jnp.transpose(x_nchw[:, :, 0, :], (0, 2, 1)).astype(jnp.float32)
    x = jnp.pad(x, ((0, N_pad - N), (D1, P1 - D1 - W_IN), (0, 0)))
    x_flat = x.reshape(N_pad * P1, C0)

    # conv weights (oc, ic, 1, k) -> per-tap matmul weights (k, ic, oc)
    w1r = jnp.transpose(w1[:, :, 0, :], (2, 1, 0)).astype(jnp.float32)   # (K, C0, C1)
    w2r = jnp.transpose(w2[:, :, 0, :], (2, 1, 0)).astype(jnp.float32)   # (K, C1, C2)
    # fc1: torch flatten index is c*WQ + s; kernel iterates s-major, c in lanes.
    wf1r = jnp.transpose(wf1.reshape(HIDDEN, C2, WQ),
                         (2, 1, 0)).astype(jnp.float32)                  # (WQ, C2, HIDDEN)
    wf2r = wf2.T.astype(jnp.float32)                                     # (HIDDEN, NCLS)
    b1r = b1.reshape(1, C1).astype(jnp.float32)
    b2r = b2.reshape(1, C2).astype(jnp.float32)
    bf1r = bf1.reshape(1, HIDDEN).astype(jnp.float32)
    bf2r = bf2.reshape(1, NCLS).astype(jnp.float32)

    R1 = TB * P1
    L2 = TB * P2
    L3 = TB * P3

    out = pl.pallas_call(
        seq_kernel,
        out_shape=jax.ShapeDtypeStruct((N_pad * P3, NCLS), jnp.float32),
        grid=(N_pad // TB,),
        in_specs=[
            pl.BlockSpec((R1, C0), lambda i: (i, 0)),          # x (TB samples)
            pl.BlockSpec((K, C0, C1), lambda i: (0, 0, 0)),    # w1
            pl.BlockSpec((1, C1), lambda i: (0, 0)),           # b1
            pl.BlockSpec((K, C1, C2), lambda i: (0, 0, 0)),    # w2
            pl.BlockSpec((1, C2), lambda i: (0, 0)),           # b2
            pl.BlockSpec((WQ, C2, HIDDEN), lambda i: (0, 0, 0)),  # wf1 (permuted)
            pl.BlockSpec((1, HIDDEN), lambda i: (0, 0)),       # bf1
            pl.BlockSpec((HIDDEN, NCLS), lambda i: (0, 0)),    # wf2^T
            pl.BlockSpec((1, NCLS), lambda i: (0, 0)),         # bf2
        ],
        out_specs=pl.BlockSpec((L3, NCLS), lambda i: (i, 0)),
        scratch_shapes=[
            pltpu.VMEM((R1 + 8, C1), jnp.float32),   # conv1+relu rows
            pltpu.VMEM((L2 + 8, C1), jnp.float32),   # pooled1 (zero-padded layout)
            pltpu.VMEM((L2 + 8, C2), jnp.float32),   # conv2+relu rows
            pltpu.VMEM((L3 + 8, C2), jnp.float32),   # pooled2 (pitch-8 layout)
        ],
        compiler_params=pltpu.CompilerParams(
            dimension_semantics=("parallel",)),
    )(x_flat, w1r, b1r, w2r, b2r, wf1r, bf1r, wf2r, bf2r)

    # Valid per-sample results sit at every P3-th row of the dilated FC domain.
    return out.reshape(N_pad, P3, NCLS)[:N, 0, :]


def init_params(key):
    """Deterministic synthetic params matching the PyTorch shapes."""
    ks = jax.random.split(key, 8)

    def u(k, shape, fan_in):
        bound = 1.0 / jnp.sqrt(jnp.float32(fan_in))
        return jax.random.uniform(k, shape, jnp.float32, -bound, bound)

    w1 = u(ks[0], (C1, C0, 1, K), C0 * K)
    b1 = u(ks[1], (C1,), C0 * K)
    w2 = u(ks[2], (C2, C1, 1, K), C1 * K)
    b2 = u(ks[3], (C2,), C1 * K)
    wf1 = u(ks[4], (HIDDEN, C2 * WQ), C2 * WQ)
    bf1 = u(ks[5], (HIDDEN,), C2 * WQ)
    wf2 = u(ks[6], (NCLS, HIDDEN), HIDDEN)
    bf2 = u(ks[7], (NCLS,), HIDDEN)
    return (w1, b1, w2, b2, wf1, bf1, wf2, bf2)


def reference_forward(x_nchw, params):
    """Plain-JAX mirror of the PyTorch forward, for validation."""
    w1, b1, w2, b2, wf1, bf1, wf2, bf2 = params
    N = x_nchw.shape[0]
    x = x_nchw[:, :, 0, :]                                       # (N, Cin, W)

    def conv1d_same(x, w, b):
        wk = w[:, :, 0, :]                                       # (Cout, Cin, K)
        Wlen = x.shape[-1]
        xp = jnp.pad(x, ((0, 0), (0, 0), (PAD, PAD)))
        out = jnp.zeros((N, wk.shape[0], Wlen), jnp.float32)
        for k in range(K):
            out = out + jnp.einsum('ncw,oc->now', xp[:, :, k:k + Wlen], wk[:, :, k])
        return out + b[None, :, None]

    h = jax.nn.relu(conv1d_same(x, w1, b1))                      # conv1 -> relu
    h = jnp.maximum(h[:, :, 0::2], h[:, :, 1::2])                # pool1
    h = conv1d_same(h, w2, b2)                                   # conv2
    h = jnp.maximum(h[:, :, 0::2], h[:, :, 1::2])                # pool2
    h = jax.nn.relu(h)                                           # relu
    flat = h.reshape(N, -1)                                      # (c, w) torch Flatten order
    f1 = jax.nn.relu(flat @ wf1.T + bf1)
    logits = f1 @ wf2.T + bf2
    return jax.nn.softmax(logits, axis=-1)


if __name__ == "__main__":
    key = jax.random.PRNGKey(0)
    kx, kp = jax.random.split(key)
    N = 4
    x = jax.random.normal(kx, (N, C0, 1, W_IN), jnp.float32)     # NCHW, as PyTorch
    params = init_params(kp)

    out = seq_embed_32x1_16_forward(x, params)
    out = jax.block_until_ready(out)

    ref = reference_forward(x, params)
    assert out.shape == (N, NCLS)
    assert bool(jnp.allclose(jnp.sum(out, axis=-1), 1.0, atol=1e-5))
    assert bool(jnp.allclose(out, ref, atol=1e-4, rtol=1e-4))
    print("KERNEL_OK")
</pallas_src>

<mosaic_0001>
module attributes {stable_mosaic.version = 11 : i64} {
  func.func @seq_kernel(%arg0: i32, %arg1: memref<256x20xf32, #tpu.memory_space<vmem>>, %arg2: memref<5x20x8xf32, #tpu.memory_space<vmem>>, %arg3: memref<1x8xf32, #tpu.memory_space<vmem>>, %arg4: memref<5x8x64xf32, #tpu.memory_space<vmem>>, %arg5: memref<1x64xf32, #tpu.memory_space<vmem>>, %arg6: memref<5x64x16xf32, #tpu.memory_space<vmem>>, %arg7: memref<1x16xf32, #tpu.memory_space<vmem>>, %arg8: memref<16x2xf32, #tpu.memory_space<vmem>>, %arg9: memref<1x2xf32, #tpu.memory_space<vmem>>, %arg10: memref<64x2xf32, #tpu.memory_space<vmem>>, %arg11: memref<264x8xf32, #tpu.memory_space<vmem>>, %arg12: memref<136x8xf32, #tpu.memory_space<vmem>>, %arg13: memref<136x64xf32, #tpu.memory_space<vmem>>, %arg14: memref<72x64xf32, #tpu.memory_space<vmem>>) attributes {dimension_semantics = [#tpu.dimension_semantics<parallel>], iteration_bounds = array<i64: 1>, scalar_prefetch = 0 : i64, scratch_operands = 4 : i64, tpu.core_type = #tpu.core_type<tc>, window_params = [{transform_indices = @transform_0, window_bounds = array<i64: 256, 20>}, {pipeline_mode = #tpu.pipeline_mode<synchronous>, transform_indices = @transform_1, window_bounds = array<i64: 5, 20, 8>}, {pipeline_mode = #tpu.pipeline_mode<synchronous>, transform_indices = @transform_2, window_bounds = array<i64: 1, 8>}, {pipeline_mode = #tpu.pipeline_mode<synchronous>, transform_indices = @transform_3, window_bounds = array<i64: 5, 8, 64>}, {pipeline_mode = #tpu.pipeline_mode<synchronous>, transform_indices = @transform_4, window_bounds = array<i64: 1, 64>}, {pipeline_mode = #tpu.pipeline_mode<synchronous>, transform_indices = @transform_5, window_bounds = array<i64: 5, 64, 16>}, {pipeline_mode = #tpu.pipeline_mode<synchronous>, transform_indices = @transform_6, window_bounds = array<i64: 1, 16>}, {pipeline_mode = #tpu.pipeline_mode<synchronous>, transform_indices = @transform_7, window_bounds = array<i64: 16, 2>}, {pipeline_mode = #tpu.pipeline_mode<synchronous>, transform_indices = @transform_8, window_bounds = array<i64: 1, 2>}, {transform_indices = @transform_9, window_bounds = array<i64: 64, 2>}]} {
    %c0 = arith.constant 0 : index
    %c0_0 = arith.constant 0 : index
    %0 = vector.load %arg1[%c0, %c0_0] : memref<256x20xf32, #tpu.memory_space<vmem>>, vector<248x20xf32>
    %c0_1 = arith.constant 0 : index
    %c0_2 = arith.constant 0 : index
    %c0_3 = arith.constant 0 : index
    %1 = vector.load %arg2[%c0_1, %c0_2, %c0_3] : memref<5x20x8xf32, #tpu.memory_space<vmem>>, vector<1x20x8xf32>
    %2 = vector.shape_cast %1 : vector<1x20x8xf32> to vector<20x8xf32>
    %cst = arith.constant dense<0.000000e+00> : vector<248x8xf32>
    %3 = tpu.matmul %0, %2, %cst {dimension_numbers = #tpu.dot_dimension_numbers<[1], [0], [0], [1], [0, 0, 1, 1], [], []>} : vector<248x20xf32>, vector<20x8xf32>, vector<248x8xf32> -> vector<248x8xf32>
    %c1 = arith.constant 1 : index
    %c0_4 = arith.constant 0 : index
    %4 = vector.load %arg1[%c1, %c0_4] : memref<256x20xf32, #tpu.memory_space<vmem>>, vector<248x20xf32>
    %c1_5 = arith.constant 1 : index
    %c0_6 = arith.constant 0 : index
    %c0_7 = arith.constant 0 : index
    %5 = vector.load %arg2[%c1_5, %c0_6, %c0_7] : memref<5x20x8xf32, #tpu.memory_space<vmem>>, vector<1x20x8xf32>
    %6 = vector.shape_cast %5 : vector<1x20x8xf32> to vector<20x8xf32>
    %cst_8 = arith.constant dense<0.000000e+00> : vector<248x8xf32>
    %7 = tpu.matmul %4, %6, %cst_8 {dimension_numbers = #tpu.dot_dimension_numbers<[1], [0], [0], [1], [0, 0, 1, 1], [], []>} : vector<248x20xf32>, vector<20x8xf32>, vector<248x8xf32> -> vector<248x8xf32>
    %8 = arith.addf %3, %7 : vector<248x8xf32>
    %c2 = arith.constant 2 : index
    %c0_9 = arith.constant 0 : index
    %9 = vector.load %arg1[%c2, %c0_9] : memref<256x20xf32, #tpu.memory_space<vmem>>, vector<248x20xf32>
    %c2_10 = arith.constant 2 : index
    %c0_11 = arith.constant 0 : index
    %c0_12 = arith.constant 0 : index
    %10 = vector.load %arg2[%c2_10, %c0_11, %c0_12] : memref<5x20x8xf32, #tpu.memory_space<vmem>>, vector<1x20x8xf32>
    %11 = vector.shape_cast %10 : vector<1x20x8xf32> to vector<20x8xf32>
    %cst_13 = arith.constant dense<0.000000e+00> : vector<248x8xf32>
    %12 = tpu.matmul %9, %11, %cst_13 {dimension_numbers = #tpu.dot_dimension_numbers<[1], [0], [0], [1], [0, 0, 1, 1], [], []>} : vector<248x20xf32>, vector<20x8xf32>, vector<248x8xf32> -> vector<248x8xf32>
    %13 = arith.addf %8, %12 : vector<248x8xf32>
    %c3 = arith.constant 3 : index
    %c0_14 = arith.constant 0 : index
    %14 = vector.load %arg1[%c3, %c0_14] : memref<256x20xf32, #tpu.memory_space<vmem>>, vector<248x20xf32>
    %c3_15 = arith.constant 3 : index
    %c0_16 = arith.constant 0 : index
    %c0_17 = arith.constant 0 : index
    %15 = vector.load %arg2[%c3_15, %c0_16, %c0_17] : memref<5x20x8xf32, #tpu.memory_space<vmem>>, vector<1x20x8xf32>
    %16 = vector.shape_cast %15 : vector<1x20x8xf32> to vector<20x8xf32>
    %cst_18 = arith.constant dense<0.000000e+00> : vector<248x8xf32>
    %17 = tpu.matmul %14, %16, %cst_18 {dimension_numbers = #tpu.dot_dimension_numbers<[1], [0], [0], [1], [0, 0, 1, 1], [], []>} : vector<248x20xf32>, vector<20x8xf32>, vector<248x8xf32> -> vector<248x8xf32>
    %18 = arith.addf %13, %17 : vector<248x8xf32>
    %c4 = arith.constant 4 : index
    %c0_19 = arith.constant 0 : index
    %19 = vector.load %arg1[%c4, %c0_19] : memref<256x20xf32, #tpu.memory_space<vmem>>, vector<248x20xf32>
    %c4_20 = arith.constant 4 : index
    %c0_21 = arith.constant 0 : index
    %c0_22 = arith.constant 0 : index
    %20 = vector.load %arg2[%c4_20, %c0_21, %c0_22] : memref<5x20x8xf32, #tpu.memory_space<vmem>>, vector<1x20x8xf32>
    %21 = vector.shape_cast %20 : vector<1x20x8xf32> to vector<20x8xf32>
    %cst_23 = arith.constant dense<0.000000e+00> : vector<248x8xf32>
    %22 = tpu.matmul %19, %21, %cst_23 {dimension_numbers = #tpu.dot_dimension_numbers<[1], [0], [0], [1], [0, 0, 1, 1], [], []>} : vector<248x20xf32>, vector<20x8xf32>, vector<248x8xf32> -> vector<248x8xf32>
    %23 = arith.addf %18, %22 : vector<248x8xf32>
    %c0_24 = arith.constant 0 : index
    %c0_25 = arith.constant 0 : index
    %24 = vector.load %arg3[%c0_24, %c0_25] : memref<1x8xf32, #tpu.memory_space<vmem>>, vector<1x8xf32>
    %25 = vector.broadcast %24 : vector<1x8xf32> to vector<248x8xf32>
    %26 = arith.addf %23, %25 : vector<248x8xf32>
    %cst_26 = arith.constant 0.000000e+00 : f32
    %27 = vector.broadcast %cst_26 : f32 to vector<248x8xf32>
    %28 = arith.maximumf %26, %27 : vector<248x8xf32>
    %c0_27 = arith.constant 0 : index
    %c0_28 = arith.constant 0 : index
    %29 = vector.load %arg11[%c0_27, %c0_28] : memref<264x8xf32, #tpu.memory_space<vmem>>, vector<248x8xf32>
    tpu.vector_store %arg11[%c0_27, %c0_28], %28 {strides = array<i32>} : memref<264x8xf32, #tpu.memory_space<vmem>>, vector<248x8xf32>,
    %cst_29 = arith.constant 0.000000e+00 : f32
    %30 = vector.broadcast %cst_29 : f32 to vector<16x8xf32>
    %c248 = arith.constant 248 : index
    %c0_30 = arith.constant 0 : index
    %31 = vector.load %arg11[%c248, %c0_30] : memref<264x8xf32, #tpu.memory_space<vmem>>, vector<16x8xf32>
    tpu.vector_store %arg11[%c248, %c0_30], %30 {strides = array<i32>} : memref<264x8xf32, #tpu.memory_space<vmem>>, vector<16x8xf32>,
    %c2_31 = arith.constant 2 : index
    %c0_32 = arith.constant 0 : index
    %32 = tpu.strided_load %arg11[%c2_31, %c0_32] {strides = array<i32: 2, 1>} : memref<264x8xf32, #tpu.memory_space<vmem>>, vector<128x8xf32>
    %c3_33 = arith.constant 3 : index
    %c0_34 = arith.constant 0 : index
    %33 = tpu.strided_load %arg11[%c3_33, %c0_34] {strides = array<i32: 2, 1>} : memref<264x8xf32, #tpu.memory_space<vmem>>, vector<128x8xf32>
    %34 = arith.maximumf %32, %33 : vector<128x8xf32>
    %35 = tpu.iota {dimensions = array<i32: 0>} : vector<128x8xi32>
    %c15_i32 = arith.constant 15 : i32
    %36 = vector.broadcast %c15_i32 : i32 to vector<128x8xi32>
    %37 = arith.andi %35, %36 : vector<128x8xi32>
    %c10_i32 = arith.constant 10 : i32
    %38 = vector.broadcast %c10_i32 : i32 to vector<128x8xi32>
    %39 = arith.cmpi slt, %37, %38 : vector<128x8xi32>
    %cst_35 = arith.constant 0.000000e+00 : f32
    %40 = vector.broadcast %cst_35 : f32 to vector<128x8xf32>
    %41 = arith.select %39, %34, %40 : vector<128x8xi1>, vector<128x8xf32>
    %cst_36 = arith.constant 0.000000e+00 : f32
    %42 = vector.broadcast %cst_36 : f32 to vector<8x8xf32>
    %c0_37 = arith.constant 0 : index
    %c0_38 = arith.constant 0 : index
    %43 = vector.load %arg12[%c0_37, %c0_38] : memref<136x8xf32, #tpu.memory_space<vmem>>, vector<8x8xf32>
    tpu.vector_store %arg12[%c0_37, %c0_38], %42 {strides = array<i32>} : memref<136x8xf32, #tpu.memory_space<vmem>>, vector<8x8xf32>,
    %c8 = arith.constant 8 : index
    %c0_39 = arith.constant 0 : index
    %44 = vector.load %arg12[%c8, %c0_39] : memref<136x8xf32, #tpu.memory_space<vmem>>, vector<128x8xf32>
    tpu.vector_store %arg12[%c8, %c0_39], %41 {strides = array<i32>} : memref<136x8xf32, #tpu.memory_space<vmem>>, vector<128x8xf32>,
    %c0_40 = arith.constant 0 : index
    %c0_41 = arith.constant 0 : index
    %45 = vector.load %arg12[%c0_40, %c0_41] : memref<136x8xf32, #tpu.memory_space<vmem>>, vector<128x8xf32>
    %c0_42 = arith.constant 0 : index
    %c0_43 = arith.constant 0 : index
    %c0_44 = arith.constant 0 : index
    %46 = vector.load %arg4[%c0_42, %c0_43, %c0_44] : memref<5x8x64xf32, #tpu.memory_space<vmem>>, vector<1x8x64xf32>
    %47 = vector.shape_cast %46 : vector<1x8x64xf32> to vector<8x64xf32>
    %cst_45 = arith.constant dense<0.000000e+00> : vector<128x64xf32>
    %48 = tpu.matmul %45, %47, %cst_45 {dimension_numbers = #tpu.dot_dimension_numbers<[1], [0], [0], [1], [0, 0, 1, 1], [], []>} : vector<128x8xf32>, vector<8x64xf32>, vector<128x64xf32> -> vector<128x64xf32>
    %c1_46 = arith.constant 1 : index
    %c0_47 = arith.constant 0 : index
    %49 = vector.load %arg12[%c1_46, %c0_47] : memref<136x8xf32, #tpu.memory_space<vmem>>, vector<128x8xf32>
    %c1_48 = arith.constant 1 : index
    %c0_49 = arith.constant 0 : index
    %c0_50 = arith.constant 0 : index
    %50 = vector.load %arg4[%c1_48, %c0_49, %c0_50] : memref<5x8x64xf32, #tpu.memory_space<vmem>>, vector<1x8x64xf32>
    %51 = vector.shape_cast %50 : vector<1x8x64xf32> to vector<8x64xf32>
    %cst_51 = arith.constant dense<0.000000e+00> : vector<128x64xf32>
    %52 = tpu.matmul %49, %51, %cst_51 {dimension_numbers = #tpu.dot_dimension_numbers<[1], [0], [0], [1], [0, 0, 1, 1], [], []>} : vector<128x8xf32>, vector<8x64xf32>, vector<128x64xf32> -> vector<128x64xf32>
    %53 = arith.addf %48, %52 : vector<128x64xf32>
    %c2_52 = arith.constant 2 : index
    %c0_53 = arith.constant 0 : index
    %54 = vector.load %arg12[%c2_52, %c0_53] : memref<136x8xf32, #tpu.memory_space<vmem>>, vector<128x8xf32>
    %c2_54 = arith.constant 2 : index
    %c0_55 = arith.constant 0 : index
    %c0_56 = arith.constant 0 : index
    %55 = vector.load %arg4[%c2_54, %c0_55, %c0_56] : memref<5x8x64xf32, #tpu.memory_space<vmem>>, vector<1x8x64xf32>
    %56 = vector.shape_cast %55 : vector<1x8x64xf32> to vector<8x64xf32>
    %cst_57 = arith.constant dense<0.000000e+00> : vector<128x64xf32>
    %57 = tpu.matmul %54, %56, %cst_57 {dimension_numbers = #tpu.dot_dimension_numbers<[1], [0], [0], [1], [0, 0, 1, 1], [], []>} : vector<128x8xf32>, vector<8x64xf32>, vector<128x64xf32> -> vector<128x64xf32>
    %58 = arith.addf %53, %57 : vector<128x64xf32>
    %c3_58 = arith.constant 3 : index
    %c0_59 = arith.constant 0 : index
    %59 = vector.load %arg12[%c3_58, %c0_59] : memref<136x8xf32, #tpu.memory_space<vmem>>, vector<128x8xf32>
    %c3_60 = arith.constant 3 : index
    %c0_61 = arith.constant 0 : index
    %c0_62 = arith.constant 0 : index
    %60 = vector.load %arg4[%c3_60, %c0_61, %c0_62] : memref<5x8x64xf32, #tpu.memory_space<vmem>>, vector<1x8x64xf32>
    %61 = vector.shape_cast %60 : vector<1x8x64xf32> to vector<8x64xf32>
    %cst_63 = arith.constant dense<0.000000e+00> : vector<128x64xf32>
    %62 = tpu.matmul %59, %61, %cst_63 {dimension_numbers = #tpu.dot_dimension_numbers<[1], [0], [0], [1], [0, 0, 1, 1], [], []>} : vector<128x8xf32>, vector<8x64xf32>, vector<128x64xf32> -> vector<128x64xf32>
    %63 = arith.addf %58, %62 : vector<128x64xf32>
    %c4_64 = arith.constant 4 : index
    %c0_65 = arith.constant 0 : index
    %64 = vector.load %arg12[%c4_64, %c0_65] : memref<136x8xf32, #tpu.memory_space<vmem>>, vector<128x8xf32>
    %c4_66 = arith.constant 4 : index
    %c0_67 = arith.constant 0 : index
    %c0_68 = arith.constant 0 : index
    %65 = vector.load %arg4[%c4_66, %c0_67, %c0_68] : memref<5x8x64xf32, #tpu.memory_space<vmem>>, vector<1x8x64xf32>
    %66 = vector.shape_cast %65 : vector<1x8x64xf32> to vector<8x64xf32>
    %cst_69 = arith.constant dense<0.000000e+00> : vector<128x64xf32>
    %67 = tpu.matmul %64, %66, %cst_69 {dimension_numbers = #tpu.dot_dimension_numbers<[1], [0], [0], [1], [0, 0, 1, 1], [], []>} : vector<128x8xf32>, vector<8x64xf32>, vector<128x64xf32> -> vector<128x64xf32>
    %68 = arith.addf %63, %67 : vector<128x64xf32>
    %c0_70 = arith.constant 0 : index
    %c0_71 = arith.constant 0 : index
    %69 = vector.load %arg5[%c0_70, %c0_71] : memref<1x64xf32, #tpu.memory_space<vmem>>, vector<1x64xf32>
    %70 = vector.broadcast %69 : vector<1x64xf32> to vector<128x64xf32>
    %71 = arith.addf %68, %70 : vector<128x64xf32>
    %cst_72 = arith.constant 0.000000e+00 : f32
    %72 = vector.broadcast %cst_72 : f32 to vector<128x64xf32>
    %73 = arith.maximumf %71, %72 : vector<128x64xf32>
    %c0_73 = arith.constant 0 : index
    %c0_74 = arith.constant 0 : index
    %74 = vector.load %arg13[%c0_73, %c0_74] : memref<136x64xf32, #tpu.memory_space<vmem>>, vector<128x64xf32>
    tpu.vector_store %arg13[%c0_73, %c0_74], %73 {strides = array<i32>} : memref<136x64xf32, #tpu.memory_space<vmem>>, vector<128x64xf32>,
    %cst_75 = arith.constant 0.000000e+00 : f32
    %75 = vector.broadcast %cst_75 : f32 to vector<8x64xf32>
    %c128 = arith.constant 128 : index
    %c0_76 = arith.constant 0 : index
    %76 = vector.load %arg13[%c128, %c0_76] : memref<136x64xf32, #tpu.memory_space<vmem>>, vector<8x64xf32>
    tpu.vector_store %arg13[%c128, %c0_76], %75 {strides = array<i32>} : memref<136x64xf32, #tpu.memory_space<vmem>>, vector<8x64xf32>,
    %c6 = arith.constant 6 : index
    %c0_77 = arith.constant 0 : index
    %77 = tpu.strided_load %arg13[%c6, %c0_77] {strides = array<i32: 2, 1>} : memref<136x64xf32, #tpu.memory_space<vmem>>, vector<64x64xf32>
    %c7 = arith.constant 7 : index
    %c0_78 = arith.constant 0 : index
    %78 = tpu.strided_load %arg13[%c7, %c0_78] {strides = array<i32: 2, 1>} : memref<136x64xf32, #tpu.memory_space<vmem>>, vector<64x64xf32>
    %79 = arith.maximumf %77, %78 : vector<64x64xf32>
    %80 = tpu.iota {dimensions = array<i32: 0>} : vector<64x64xi32>
    %c7_i32 = arith.constant 7 : i32
    %81 = vector.broadcast %c7_i32 : i32 to vector<64x64xi32>
    %82 = arith.andi %80, %81 : vector<64x64xi32>
    %c5_i32 = arith.constant 5 : i32
    %83 = vector.broadcast %c5_i32 : i32 to vector<64x64xi32>
    %84 = arith.cmpi slt, %82, %83 : vector<64x64xi32>
    %cst_79 = arith.constant 0.000000e+00 : f32
    %85 = vector.broadcast %cst_79 : f32 to vector<64x64xf32>
    %86 = arith.select %84, %79, %85 : vector<64x64xi1>, vector<64x64xf32>
    %c0_80 = arith.constant 0 : index
    %c0_81 = arith.constant 0 : index
    %87 = vector.load %arg14[%c0_80, %c0_81] : memref<72x64xf32, #tpu.memory_space<vmem>>, vector<64x64xf32>
    tpu.vector_store %arg14[%c0_80, %c0_81], %86 {strides = array<i32>} : memref<72x64xf32, #tpu.memory_space<vmem>>, vector<64x64xf32>,
    %cst_82 = arith.constant 0.000000e+00 : f32
    %88 = vector.broadcast %cst_82 : f32 to vector<8x64xf32>
    %c64 = arith.constant 64 : index
    %c0_83 = arith.constant 0 : index
    %89 = vector.load %arg14[%c64, %c0_83] : memref<72x64xf32, #tpu.memory_space<vmem>>, vector<8x64xf32>
    tpu.vector_store %arg14[%c64, %c0_83], %88 {strides = array<i32>} : memref<72x64xf32, #tpu.memory_space<vmem>>, vector<8x64xf32>,
    %c0_84 = arith.constant 0 : index
    %c0_85 = arith.constant 0 : index
    %90 = vector.load %arg14[%c0_84, %c0_85] : memref<72x64xf32, #tpu.memory_space<vmem>>, vector<64x64xf32>
    %c0_86 = arith.constant 0 : index
    %c0_87 = arith.constant 0 : index
    %c0_88 = arith.constant 0 : index
    %91 = vector.load %arg6[%c0_86, %c0_87, %c0_88] : memref<5x64x16xf32, #tpu.memory_space<vmem>>, vector<1x64x16xf32>
    %92 = vector.shape_cast %91 : vector<1x64x16xf32> to vector<64x16xf32>
    %cst_89 = arith.constant dense<0.000000e+00> : vector<64x16xf32>
    %93 = tpu.matmul %90, %92, %cst_89 {dimension_numbers = #tpu.dot_dimension_numbers<[1], [0], [0], [1], [0, 0, 1, 1], [], []>} : vector<64x64xf32>, vector<64x16xf32>, vector<64x16xf32> -> vector<64x16xf32>
    %c1_90 = arith.constant 1 : index
    %c0_91 = arith.constant 0 : index
    %94 = vector.load %arg14[%c1_90, %c0_91] : memref<72x64xf32, #tpu.memory_space<vmem>>, vector<64x64xf32>
    %c1_92 = arith.constant 1 : index
    %c0_93 = arith.constant 0 : index
    %c0_94 = arith.constant 0 : index
    %95 = vector.load %arg6[%c1_92, %c0_93, %c0_94] : memref<5x64x16xf32, #tpu.memory_space<vmem>>, vector<1x64x16xf32>
    %96 = vector.shape_cast %95 : vector<1x64x16xf32> to vector<64x16xf32>
    %cst_95 = arith.constant dense<0.000000e+00> : vector<64x16xf32>
    %97 = tpu.matmul %94, %96, %cst_95 {dimension_numbers = #tpu.dot_dimension_numbers<[1], [0], [0], [1], [0, 0, 1, 1], [], []>} : vector<64x64xf32>, vector<64x16xf32>, vector<64x16xf32> -> vector<64x16xf32>
    %98 = arith.addf %93, %97 : vector<64x16xf32>
    %c2_96 = arith.constant 2 : index
    %c0_97 = arith.constant 0 : index
    %99 = vector.load %arg14[%c2_96, %c0_97] : memref<72x64xf32, #tpu.memory_space<vmem>>, vector<64x64xf32>
    %c2_98 = arith.constant 2 : index
    %c0_99 = arith.constant 0 : index
    %c0_100 = arith.constant 0 : index
    %100 = vector.load %arg6[%c2_98, %c0_99, %c0_100] : memref<5x64x16xf32, #tpu.memory_space<vmem>>, vector<1x64x16xf32>
    %101 = vector.shape_cast %100 : vector<1x64x16xf32> to vector<64x16xf32>
    %cst_101 = arith.constant dense<0.000000e+00> : vector<64x16xf32>
    %102 = tpu.matmul %99, %101, %cst_101 {dimension_numbers = #tpu.dot_dimension_numbers<[1], [0], [0], [1], [0, 0, 1, 1], [], []>} : vector<64x64xf32>, vector<64x16xf32>, vector<64x16xf32> -> vector<64x16xf32>
    %103 = arith.addf %98, %102 : vector<64x16xf32>
    %c3_102 = arith.constant 3 : index
    %c0_103 = arith.constant 0 : index
    %104 = vector.load %arg14[%c3_102, %c0_103] : memref<72x64xf32, #tpu.memory_space<vmem>>, vector<64x64xf32>
    %c3_104 = arith.constant 3 : index
    %c0_105 = arith.constant 0 : index
    %c0_106 = arith.constant 0 : index
    %105 = vector.load %arg6[%c3_104, %c0_105, %c0_106] : memref<5x64x16xf32, #tpu.memory_space<vmem>>, vector<1x64x16xf32>
    %106 = vector.shape_cast %105 : vector<1x64x16xf32> to vector<64x16xf32>
    %cst_107 = arith.constant dense<0.000000e+00> : vector<64x16xf32>
    %107 = tpu.matmul %104, %106, %cst_107 {dimension_numbers = #tpu.dot_dimension_numbers<[1], [0], [0], [1], [0, 0, 1, 1], [], []>} : vector<64x64xf32>, vector<64x16xf32>, vector<64x16xf32> -> vector<64x16xf32>
    %108 = arith.addf %103, %107 : vector<64x16xf32>
    %c4_108 = arith.constant 4 : index
    %c0_109 = arith.constant 0 : index
    %109 = vector.load %arg14[%c4_108, %c0_109] : memref<72x64xf32, #tpu.memory_space<vmem>>, vector<64x64xf32>
    %c4_110 = arith.constant 4 : index
    %c0_111 = arith.constant 0 : index
    %c0_112 = arith.constant 0 : index
    %110 = vector.load %arg6[%c4_110, %c0_111, %c0_112] : memref<5x64x16xf32, #tpu.memory_space<vmem>>, vector<1x64x16xf32>
    %111 = vector.shape_cast %110 : vector<1x64x16xf32> to vector<64x16xf32>
    %cst_113 = arith.constant dense<0.000000e+00> : vector<64x16xf32>
    %112 = tpu.matmul %109, %111, %cst_113 {dimension_numbers = #tpu.dot_dimension_numbers<[1], [0], [0], [1], [0, 0, 1, 1], [], []>} : vector<64x64xf32>, vector<64x16xf32>, vector<64x16xf32> -> vector<64x16xf32>
    %113 = arith.addf %108, %112 : vector<64x16xf32>
    %c0_114 = arith.constant 0 : index
    %c0_115 = arith.constant 0 : index
    %114 = vector.load %arg7[%c0_114, %c0_115] : memref<1x16xf32, #tpu.memory_space<vmem>>, vector<1x16xf32>
    %115 = vector.broadcast %114 : vector<1x16xf32> to vector<64x16xf32>
    %116 = arith.addf %113, %115 : vector<64x16xf32>
    %cst_116 = arith.constant 0.000000e+00 : f32
    %117 = vector.broadcast %cst_116 : f32 to vector<64x16xf32>
    %118 = arith.maximumf %116, %117 : vector<64x16xf32>
    %c0_117 = arith.constant 0 : index
    %c0_118 = arith.constant 0 : index
    %119 = vector.load %arg8[%c0_117, %c0_118] : memref<16x2xf32, #tpu.memory_space<vmem>>, vector<16x2xf32>
    %cst_119 = arith.constant dense<0.000000e+00> : vector<64x2xf32>
    %120 = tpu.matmul %118, %119, %cst_119 {dimension_numbers = #tpu.dot_dimension_numbers<[1], [0], [0], [1], [0, 0, 1, 1], [], []>} : vector<64x16xf32>, vector<16x2xf32>, vector<64x2xf32> -> vector<64x2xf32>
    %c0_120 = arith.constant 0 : index
    %c0_121 = arith.constant 0 : index
    %121 = vector.load %arg9[%c0_120, %c0_121] : memref<1x2xf32, #tpu.memory_space<vmem>>, vector<1x2xf32>
    %122 = vector.broadcast %121 : vector<1x2xf32> to vector<64x2xf32>
    %123 = arith.addf %120, %122 : vector<64x2xf32>
    %cst_122 = arith.constant dense<0xFF800000> : vector<64xf32>
    %124 = vector.multi_reduction <maximumf>, %123, %cst_122 [1] : vector<64x2xf32> to vector<64xf32>
    %125 = vector.shape_cast %124 : vector<64xf32> to vector<64x1xf32>
    %126 = vector.broadcast %125 : vector<64x1xf32> to vector<64x2xf32>
    %127 = arith.subf %123, %126 : vector<64x2xf32>
    %128 = math.exp %127 : vector<64x2xf32>
    %cst_123 = arith.constant dense<0.000000e+00> : vector<64xf32>
    %129 = vector.multi_reduction <add>, %128, %cst_123 [1] : vector<64x2xf32> to vector<64xf32>
    %130 = vector.shape_cast %129 : vector<64xf32> to vector<64x1xf32>
    %131 = vector.broadcast %130 : vector<64x1xf32> to vector<64x2xf32>
    %132 = arith.divf %128, %131 : vector<64x2xf32>
    %c0_124 = arith.constant 0 : index
    %c0_125 = arith.constant 0 : index
    %133 = vector.load %arg10[%c0_124, %c0_125] : memref<64x2xf32, #tpu.memory_space<vmem>>, vector<64x2xf32>
    tpu.vector_store %arg10[%c0_124, %c0_125], %132 {strides = array<i32>} : memref<64x2xf32, #tpu.memory_space<vmem>>, vector<64x2xf32>,
    return
  }
  func.func @transform_0(%arg0: i32) -> (i32, i32) {
    %c0_i32 = arith.constant 0 : i32
    %c0_i32_0 = arith.constant 0 : i32
    return %arg0, %c0_i32 : i32, i32
  }
  func.func @transform_1(%arg0: i32) -> (i32, i32, i32) {
    %c0_i32 = arith.constant 0 : i32
    %c0_i32_0 = arith.constant 0 : i32
    %c0_i32_1 = arith.constant 0 : i32
    %c0_i32_2 = arith.constant 0 : i32
    return %c0_i32, %c0_i32_0, %c0_i32_1 : i32, i32, i32
  }
  func.func @transform_2(%arg0: i32) -> (i32, i32) {
    %c0_i32 = arith.constant 0 : i32
    %c0_i32_0 = arith.constant 0 : i32
    %c0_i32_1 = arith.constant 0 : i32
    return %c0_i32, %c0_i32_0 : i32, i32
  }
  func.func @transform_3(%arg0: i32) -> (i32, i32, i32) {
    %c0_i32 = arith.constant 0 : i32
    %c0_i32_0 = arith.constant 0 : i32
    %c0_i32_1 = arith.constant 0 : i32
    %c0_i32_2 = arith.constant 0 : i32
    return %c0_i32, %c0_i32_0, %c0_i32_1 : i32, i32, i32
  }
  func.func @transform_4(%arg0: i32) -> (i32, i32) {
    %c0_i32 = arith.constant 0 : i32
    %c0_i32_0 = arith.constant 0 : i32
    %c0_i32_1 = arith.constant 0 : i32
    return %c0_i32, %c0_i32_0 : i32, i32
  }
  func.func @transform_5(%arg0: i32) -> (i32, i32, i32) {
    %c0_i32 = arith.constant 0 : i32
    %c0_i32_0 = arith.constant 0 : i32
    %c0_i32_1 = arith.constant 0 : i32
    %c0_i32_2 = arith.constant 0 : i32
    return %c0_i32, %c0_i32_0, %c0_i32_1 : i32, i32, i32
  }
  func.func @transform_6(%arg0: i32) -> (i32, i32) {
    %c0_i32 = arith.constant 0 : i32
    %c0_i32_0 = arith.constant 0 : i32
    %c0_i32_1 = arith.constant 0 : i32
    return %c0_i32, %c0_i32_0 : i32, i32
  }
  func.func @transform_7(%arg0: i32) -> (i32, i32) {
    %c0_i32 = arith.constant 0 : i32
    %c0_i32_0 = arith.constant 0 : i32
    %c0_i32_1 = arith.constant 0 : i32
    return %c0_i32, %c0_i32_0 : i32, i32
  }
  func.func @transform_8(%arg0: i32) -> (i32, i32) {
    %c0_i32 = arith.constant 0 : i32
    %c0_i32_0 = arith.constant 0 : i32
    %c0_i32_1 = arith.constant 0 : i32
    return %c0_i32, %c0_i32_0 : i32, i32
  }
  func.func @transform_9(%arg0: i32) -> (i32, i32) {
    %c0_i32 = arith.constant 0 : i32
    %c0_i32_0 = arith.constant 0 : i32
    return %arg0, %c0_i32 : i32, i32
  }
}

</mosaic_0001>

<llo_original>
// kernel: tpu_custom_call.1
$region0: #{tpu_custom_call.1}
  #allocation0 [shape = 'u32[]', space=smem, size = 0x4, offset = 0x4, fixed_abs, tag = 'smem constant byte address 0x4 - core index']
  #allocation1 [shape = 'u32[144,128]{1,0:T(1,128)}', space=vmem, size = 0x12000, scoped, tag = 'internal scratch']
  #allocation2 [shape = 'f32[264,8]{1,0:T(8,128)}', space=vmem, size = 0x21000, scoped, tag = 'scratch operand']
  #allocation3 [shape = 'f32[136,8]{1,0:T(8,128)}', space=vmem, size = 0x11000, scoped, tag = 'scratch operand']
  #allocation4 [shape = 'f32[136,64]{1,0:T(8,128)}', space=vmem, size = 0x11000, scoped, tag = 'scratch operand']
  #allocation5 [shape = 'f32[72,64]{1,0:T(8,128)}', space=vmem, size = 0x9000, scoped, tag = 'scratch operand']
  %s0 = inlined_call_operand.vmem [shape: f32[256,20], index: 0, kind: input, shape index: {}]
  %s1 = inlined_call_operand.vmem [shape: f32[5,20,8], index: 1, kind: input, shape index: {}]
  %s2 = inlined_call_operand.vmem [shape: f32[1,8], index: 2, kind: input, shape index: {}]
  %s3 = inlined_call_operand.vmem [shape: f32[5,8,64], index: 3, kind: input, shape index: {}]
  %s4 = inlined_call_operand.vmem [shape: f32[1,64], index: 4, kind: input, shape index: {}]
  %s5 = inlined_call_operand.vmem [shape: f32[5,64,16], index: 5, kind: input, shape index: {}]
  %s6 = inlined_call_operand.vmem [shape: f32[1,16], index: 6, kind: input, shape index: {}]
  %s7 = inlined_call_operand.vmem [shape: f32[16,2], index: 7, kind: input, shape index: {}]
  %s8 = inlined_call_operand.vmem [shape: f32[1,2], index: 8, kind: input, shape index: {}]
  %s9 = inlined_call_operand.vmem [shape: f32[64,2], index: 9, kind: output, shape index: {}]
  %s10 = sld [smem:[#allocation0]]
  $region46: #{tpu_custom_call.1} parent=0
    _
  %s12 = ssub.s32 1, %s10
  %s13 = scalar_select 0, %s12, %s10
  // Predicated region
  $region2: #{tpu_custom_call.1} parent=0 // pred_check
    _
  $region3: #{tpu_custom_call.1} parent=0 // pred_check_branch
    %15 = sbr.rel (0) target = $region5
  $region4: #{tpu_custom_call.1} parent=0 // pred_region
    _
  $region5: #{tpu_custom_call.1} parent=0 // pred_fallthru
    _
  // Predicated region
  $region6: #{tpu_custom_call.1} parent=0 // pred_check
    _
  $region7: #{tpu_custom_call.1} parent=0 // pred_check_branch
    %17 = sbr.rel (0) target = $region9
  $region8: #{tpu_custom_call.1} parent=0 // pred_region
    _
  $region9: #{tpu_custom_call.1} parent=0 // pred_fallthru
    _
  // Predicated region
  $region10: #{tpu_custom_call.1} parent=0 // pred_check
    _
  $region11: #{tpu_custom_call.1} parent=0 // pred_check_branch
    %19 = sbr.rel (0) target = $region13
  $region12: #{tpu_custom_call.1} parent=0 // pred_region
    _
  $region13: #{tpu_custom_call.1} parent=0 // pred_fallthru
    _
  // Predicated region
  $region14: #{tpu_custom_call.1} parent=0 // pred_check
    _
  $region15: #{tpu_custom_call.1} parent=0 // pred_check_branch
    %21 = sbr.rel (0) target = $region17
  $region16: #{tpu_custom_call.1} parent=0 // pred_region
    _
  $region17: #{tpu_custom_call.1} parent=0 // pred_fallthru
    _
  // Predicated region
  $region18: #{tpu_custom_call.1} parent=0 // pred_check
    _
  $region19: #{tpu_custom_call.1} parent=0 // pred_check_branch
    %23 = sbr.rel (0) target = $region21
  $region20: #{tpu_custom_call.1} parent=0 // pred_region
    _
  $region21: #{tpu_custom_call.1} parent=0 // pred_fallthru
    _
  // Predicated region
  $region22: #{tpu_custom_call.1} parent=0 // pred_check
    _
  $region23: #{tpu_custom_call.1} parent=0 // pred_check_branch
    %25 = sbr.rel (0) target = $region25
  $region24: #{tpu_custom_call.1} parent=0 // pred_region
    _
  $region25: #{tpu_custom_call.1} parent=0 // pred_fallthru
    _
  // Predicated region
  $region26: #{tpu_custom_call.1} parent=0 // pred_check
    _
  $region27: #{tpu_custom_call.1} parent=0 // pred_check_branch
    %27 = sbr.rel (0) target = $region29
  $region28: #{tpu_custom_call.1} parent=0 // pred_region
    _
  $region29: #{tpu_custom_call.1} parent=0 // pred_fallthru
    _
  // Predicated region
  $region30: #{tpu_custom_call.1} parent=0 // pred_check
    _
  $region31: #{tpu_custom_call.1} parent=0 // pred_check_branch
    %29 = sbr.rel (0) target = $region33
  $region32: #{tpu_custom_call.1} parent=0 // pred_region
    _
  $region33: #{tpu_custom_call.1} parent=0 // pred_fallthru
    _
  // Predicated region
  $region34: #{tpu_custom_call.1} parent=0 // pred_check
    _
  $region35: #{tpu_custom_call.1} parent=0 // pred_check_branch
    %31 = sbr.rel (0) target = $region37
  $region36: #{tpu_custom_call.1} parent=0 // pred_region
    _
  $region37: #{tpu_custom_call.1} parent=0 // pred_fallthru
    _
  %v32 = vld [vmem:[%s0] sm:$0xff]
  %v33 = vld [vmem:[%s0 + $0x8] sm:$0xff]
  %v34 = vld [vmem:[%s0 + $0x10] sm:$0xff]
  %v35 = vld [vmem:[%s0 + $0x18] sm:$0xff]
  %v36 = vld [vmem:[%s0 + $0x20] sm:$0xff]
  %v37 = vld [vmem:[%s0 + $0x28] sm:$0xff]
  %v38 = vld [vmem:[%s0 + $0x30] sm:$0xff]
  %v39 = vld [vmem:[%s0 + $0x38] sm:$0xff]
  %v40 = vld [vmem:[%s0 + $0x40] sm:$0xff]
  %v41 = vld [vmem:[%s0 + $0x48] sm:$0xff]
  %v42 = vld [vmem:[%s0 + $0x50] sm:$0xff]
  %v43 = vld [vmem:[%s0 + $0x58] sm:$0xff]
  %v44 = vld [vmem:[%s0 + $0x60] sm:$0xff]
  %v45 = vld [vmem:[%s0 + $0x68] sm:$0xff]
  %v46 = vld [vmem:[%s0 + $0x70] sm:$0xff]
  %v47 = vld [vmem:[%s0 + $0x78] sm:$0xff]
  %v48 = vld [vmem:[%s0 + $0x80] sm:$0xff]
  %v49 = vld [vmem:[%s0 + $0x88] sm:$0xff]
  %v50 = vld [vmem:[%s0 + $0x90] sm:$0xff]
  %v51 = vld [vmem:[%s0 + $0x98] sm:$0xff]
  %v52 = vld [vmem:[%s0 + $0xa0] sm:$0xff]
  %v53 = vld [vmem:[%s0 + $0xa8] sm:$0xff]
  %v54 = vld [vmem:[%s0 + $0xb0] sm:$0xff]
  %v55 = vld [vmem:[%s0 + $0xb8] sm:$0xff]
  %v56 = vld [vmem:[%s0 + $0xc0] sm:$0xff]
  %v57 = vld [vmem:[%s0 + $0xc8] sm:$0xff]
  %v58 = vld [vmem:[%s0 + $0xd0] sm:$0xff]
  %v59 = vld [vmem:[%s0 + $0xd8] sm:$0xff]
  %v60 = vld [vmem:[%s0 + $0xe0] sm:$0xff]
  %v61 = vld [vmem:[%s0 + $0xe8] sm:$0xff]
  %v62 = vld [vmem:[%s0 + $0xf0] sm:$0xff]
  %v63 = vld [vmem:[%s1] sm:$0xff]
  %v64 = vld [vmem:[%s1 + $0x8] sm:$0xff]
  %v65 = vld [vmem:[%s1 + $0x10] sm:$0xf]
  %v66 = vld [vmem:[%s0 + $0x1] sm:$0xff]
  %v67 = vld [vmem:[%s0 + $0x9] sm:$0xff]
  %v68 = vld [vmem:[%s0 + $0x11] sm:$0xff]
  %v69 = vld [vmem:[%s0 + $0x19] sm:$0xff]
  %v70 = vld [vmem:[%s0 + $0x21] sm:$0xff]
  %v71 = vld [vmem:[%s0 + $0x29] sm:$0xff]
  %v72 = vld [vmem:[%s0 + $0x31] sm:$0xff]
  %v73 = vld [vmem:[%s0 + $0x39] sm:$0xff]
  %v74 = vld [vmem:[%s0 + $0x41] sm:$0xff]
  %v75 = vld [vmem:[%s0 + $0x49] sm:$0xff]
  %v76 = vld [vmem:[%s0 + $0x51] sm:$0xff]
  %v77 = vld [vmem:[%s0 + $0x59] sm:$0xff]
  %v78 = vld [vmem:[%s0 + $0x61] sm:$0xff]
  %v79 = vld [vmem:[%s0 + $0x69] sm:$0xff]
  %v80 = vld [vmem:[%s0 + $0x71] sm:$0xff]
  %v81 = vld [vmem:[%s0 + $0x79] sm:$0xff]
  %v82 = vld [vmem:[%s0 + $0x81] sm:$0xff]
  %v83 = vld [vmem:[%s0 + $0x89] sm:$0xff]
  %v84 = vld [vmem:[%s0 + $0x91] sm:$0xff]
  %v85 = vld [vmem:[%s0 + $0x99] sm:$0xff]
  %v86 = vld [vmem:[%s0 + $0xa1] sm:$0xff]
  %v87 = vld [vmem:[%s0 + $0xa9] sm:$0xff]
  %v88 = vld [vmem:[%s0 + $0xb1] sm:$0xff]
  %v89 = vld [vmem:[%s0 + $0xb9] sm:$0xff]
  %v90 = vld [vmem:[%s0 + $0xc1] sm:$0xff]
  %v91 = vld [vmem:[%s0 + $0xc9] sm:$0xff]
  %v92 = vld [vmem:[%s0 + $0xd1] sm:$0xff]
  %v93 = vld [vmem:[%s0 + $0xd9] sm:$0xff]
  %v94 = vld [vmem:[%s0 + $0xe1] sm:$0xff]
  %v95 = vld [vmem:[%s0 + $0xe9] sm:$0xff]
  %v96 = vld [vmem:[%s0 + $0xf1] sm:$0xff]
  %s97 = scalar_lea.vmem %s1, 24
  %v98 = vld [vmem:[%s97] sm:$0xff]
  %v99 = vld [vmem:[%s97 + $0x8] sm:$0xff]
  %v100 = vld [vmem:[%s97 + $0x10] sm:$0xf]
  %vm101 = vcmask 162816
  %v103 = vsel %vm101, %v66, 0
  %v106 = vsel %vm101, %v67, 0
  %v109 = vsel %vm101, %v68, 0
  %v112 = vsel %vm101, %v69, 0
  %v115 = vsel %vm101, %v70, 0
  %v118 = vsel %vm101, %v71, 0
  %v121 = vsel %vm101, %v72, 0
  %v124 = vsel %vm101, %v73, 0
  %v127 = vsel %vm101, %v74, 0
  %v130 = vsel %vm101, %v75, 0
  %v133 = vsel %vm101, %v76, 0
  %v136 = vsel %vm101, %v77, 0
  %v139 = vsel %vm101, %v78, 0
  %v142 = vsel %vm101, %v79, 0
  %v145 = vsel %vm101, %v80, 0
  %v148 = vsel %vm101, %v81, 0
  %v151 = vsel %vm101, %v82, 0
  %v154 = vsel %vm101, %v83, 0
  %v157 = vsel %vm101, %v84, 0
  %v160 = vsel %vm101, %v85, 0
  %v163 = vsel %vm101, %v86, 0
  %v166 = vsel %vm101, %v87, 0
  %v169 = vsel %vm101, %v88, 0
  %v172 = vsel %vm101, %v89, 0
  %v175 = vsel %vm101, %v90, 0
  %v178 = vsel %vm101, %v91, 0
  %v181 = vsel %vm101, %v92, 0
  %v184 = vsel %vm101, %v93, 0
  %v187 = vsel %vm101, %v94, 0
  %v190 = vsel %vm101, %v95, 0
  %v193 = vsel %vm101, %v96, 0
  %vm195 = vcmask 1043456
  %v197 = vsel %vm195, %v100, 0
  %199 = vmatprep.subr.mxu0 0.0
  %200 = vmatpush1.msra.mxu0 %v98
  %201 = vmatprep.subr.mxu0 0.0
  %202 = vmatpush1.msra.mxu0 %v99
  %203 = vmatprep.subr.mxu0 0.0
  %204 = vmatpush1.msra.mxu0 %v197
  %205 = vmatprep.subr.mxu0 0.0
  %206 = vmatpush1.msra.mxu0 0.0
  %207 = vmatprep.subr.mxu0 0.0
  %208 = vmatpush1.msra.mxu0 0.0
  %209 = vmatprep.subr.mxu0 0.0
  %210 = vmatpush1.msra.mxu0 0.0
  %211 = vmatprep.subr.mxu0 0.0
  %212 = vmatpush1.msra.mxu0 0.0
  %213 = vmatprep.subr.mxu0 0.0
  %214 = vmatpush1.msra.mxu0 0.0
  %215 = vmatprep.subr.mxu0 0.0
  %216 = vmatpush1.msra.mxu0 0.0
  %217 = vmatprep.subr.mxu0 0.0
  %218 = vmatpush1.msra.mxu0 0.0
  %219 = vmatprep.subr.mxu0 0.0
  %220 = vmatpush1.msra.mxu0 0.0
  %221 = vmatprep.subr.mxu0 0.0
  %222 = vmatpush1.msra.mxu0 0.0
  %223 = vmatprep.subr.mxu0 0.0
  %224 = vmatpush1.msra.mxu0 0.0
  %225 = vmatprep.subr.mxu0 0.0
  %226 = vmatpush1.msra.mxu0 0.0
  %227 = vmatprep.subr.mxu0 0.0
  %228 = vmatpush1.msra.mxu0 0.0
  %229 = vmatprep.subr.mxu0 0.0
  %230 = vmatpush1.msra.mxu0 0.0
  %231 = vmatprep.subr.mxu0 0.0
  %232 = vmatpush1.msra.mxu0 0.0
  %233 = vmatprep.subr.mxu0 0.0
  %234 = vmatpush1.msra.mxu0 0.0
  %235 = vmatprep.subr.mxu0 0.0
  %236 = vmatpush1.msra.mxu0 0.0
  %237 = vmatprep.subr.mxu0 0.0
  %238 = vmatpush1.msra.mxu0 0.0
  %239 = vmatprep.subr.mxu0 0.0
  %240 = vmatpush1.msra.mxu0 0.0
  %241 = vmatprep.subr.mxu0 0.0
  %242 = vmatpush1.msra.mxu0 0.0
  %243 = vmatprep.subr.mxu0 0.0
  %244 = vmatpush1.msra.mxu0 0.0
  %245 = vmatprep.subr.mxu0 0.0
  %246 = vmatpush1.msra.mxu0 0.0
  %247 = vmatprep.subr.mxu0 0.0
  %248 = vmatpush1.msra.mxu0 0.0
  %249 = vmatprep.subr.mxu0 0.0
  %250 = vmatpush1.msra.mxu0 0.0
  %251 = vmatprep.subr.mxu0 0.0
  %252 = vmatpush1.msra.mxu0 0.0
  %253 = vmatprep.subr.mxu0 0.0
  %254 = vmatpush1.msra.mxu0 0.0
  %255 = vmatprep.subr.mxu0 0.0
  %256 = vmatpush1.msra.mxu0 0.0
  %257 = vmatprep.subr.mxu0 0.0
  %258 = vmatpush1.msra.mxu0 0.0
  %259 = vmatprep.subr.mxu0 0.0
  %260 = vmatpush1.msra.mxu0 0.0
  %261 = vmatprep.subr.mxu0 0.0
  %262 = vmatpush1.msra.mxu0 0.0
  %263 = vmatprep.mubr.f32.mxu0 0.0
  %264 = vmatmul.mubr.f32.gmra.mrb[0].mxu0 %v103
  %v265 = vpop.f32.mrb[0].mxu0
  %v266 = vadd.f32 0.0, %v265
  %v267 = vpop.f32.mrb[0].mxu0
  %268 = vmatprep.mubr.f32.mxu0 0.0
  %269 = vmatmul.mubr.f32.gmra.mrb[0].mxu0 %v106
  %v270 = vpop.f32.mrb[0].mxu0
  %v271 = vadd.f32 0.0, %v270
  %v272 = vpop.f32.mrb[0].mxu0
  %273 = vmatprep.mubr.f32.mxu0 0.0
  %274 = vmatmul.mubr.f32.gmra.mrb[0].mxu0 %v109
  %v275 = vpop.f32.mrb[0].mxu0
  %v276 = vadd.f32 0.0, %v275
  %v277 = vpop.f32.mrb[0].mxu0
  %278 = vmatprep.mubr.f32.mxu0 0.0
  %279 = vmatmul.mubr.f32.gmra.mrb[0].mxu0 %v112
  %v280 = vpop.f32.mrb[0].mxu0
  %v281 = vadd.f32 0.0, %v280
  %v282 = vpop.f32.mrb[0].mxu0
  %283 = vmatprep.mubr.f32.mxu0 0.0
  %284 = vmatmul.mubr.f32.gmra.mrb[0].mxu0 %v115
  %v285 = vpop.f32.mrb[0].mxu0
  %v286 = vadd.f32 0.0, %v285
  %v287 = vpop.f32.mrb[0].mxu0
  %288 = vmatprep.mubr.f32.mxu0 0.0
  %289 = vmatmul.mubr.f32.gmra.mrb[0].mxu0 %v118
  %v290 = vpop.f32.mrb[0].mxu0
  %v291 = vadd.f32 0.0, %v290
  %v292 = vpop.f32.mrb[0].mxu0
  %293 = vmatprep.mubr.f32.mxu0 0.0
  %294 = vmatmul.mubr.f32.gmra.mrb[0].mxu0 %v121
  %v295 = vpop.f32.mrb[0].mxu0
  %v296 = vadd.f32 0.0, %v295
  %v297 = vpop.f32.mrb[0].mxu0
  %298 = vmatprep.mubr.f32.mxu0 0.0
  %299 = vmatmul.mubr.f32.gmra.mrb[0].mxu0 %v124
  %v300 = vpop.f32.mrb[0].mxu0
  %v301 = vadd.f32 0.0, %v300
  %v302 = vpop.f32.mrb[0].mxu0
  %303 = vmatprep.mubr.f32.mxu0 0.0
  %304 = vmatmul.mubr.f32.gmra.mrb[0].mxu0 %v127
  %v305 = vpop.f32.mrb[0].mxu0
  %v306 = vadd.f32 0.0, %v305
  %v307 = vpop.f32.mrb[0].mxu0
  %308 = vmatprep.mubr.f32.mxu0 0.0
  %309 = vmatmul.mubr.f32.gmra.mrb[0].mxu0 %v130
  %v310 = vpop.f32.mrb[0].mxu0
  %v311 = vadd.f32 0.0, %v310
  %v312 = vpop.f32.mrb[0].mxu0
  %313 = vmatprep.mubr.f32.mxu0 0.0
  %314 = vmatmul.mubr.f32.gmra.mrb[0].mxu0 %v133
  %v315 = vpop.f32.mrb[0].mxu0
  %v316 = vadd.f32 0.0, %v315
  %v317 = vpop.f32.mrb[0].mxu0
  %318 = vmatprep.mubr.f32.mxu0 0.0
  %319 = vmatmul.mubr.f32.gmra.mrb[0].mxu0 %v136
  %v320 = vpop.f32.mrb[0].mxu0
  %v321 = vadd.f32 0.0, %v320
  %v322 = vpop.f32.mrb[0].mxu0
  %323 = vmatprep.mubr.f32.mxu0 0.0
  %324 = vmatmul.mubr.f32.gmra.mrb[0].mxu0 %v139
  %v325 = vpop.f32.mrb[0].mxu0
  %v326 = vadd.f32 0.0, %v325
  %v327 = vpop.f32.mrb[0].mxu0
  %328 = vmatprep.mubr.f32.mxu0 0.0
  %329 = vmatmul.mubr.f32.gmra.mrb[0].mxu0 %v142
  %v330 = vpop.f32.mrb[0].mxu0
  %v331 = vadd.f32 0.0, %v330
  %v332 = vpop.f32.mrb[0].mxu0
  %333 = vmatprep.mubr.f32.mxu0 0.0
  %334 = vmatmul.mubr.f32.gmra.mrb[0].mxu0 %v145
  %v335 = vpop.f32.mrb[0].mxu0
  %v336 = vadd.f32 0.0, %v335
  %v337 = vpop.f32.mrb[0].mxu0
  %338 = vmatprep.mubr.f32.mxu0 0.0
  %339 = vmatmul.mubr.f32.gmra.mrb[0].mxu0 %v148
  %v340 = vpop.f32.mrb[0].mxu0
  %v341 = vadd.f32 0.0, %v340
  %v342 = vpop.f32.mrb[0].mxu0
  %343 = vmatprep.mubr.f32.mxu0 0.0
  %344 = vmatmul.mubr.f32.gmra.mrb[0].mxu0 %v151
  %v345 = vpop.f32.mrb[0].mxu0
  %v346 = vadd.f32 0.0, %v345
  %v347 = vpop.f32.mrb[0].mxu0
  %348 = vmatprep.mubr.f32.mxu0 0.0
  %349 = vmatmul.mubr.f32.gmra.mrb[0].mxu0 %v154
  %v350 = vpop.f32.mrb[0].mxu0
  %v351 = vadd.f32 0.0, %v350
  %v352 = vpop.f32.mrb[0].mxu0
  %353 = vmatprep.mubr.f32.mxu0 0.0
  %354 = vmatmul.mubr.f32.gmra.mrb[0].mxu0 %v157
  %v355 = vpop.f32.mrb[0].mxu0
  %v356 = vadd.f32 0.0, %v355
  %v357 = vpop.f32.mrb[0].mxu0
  %358 = vmatprep.mubr.f32.mxu0 0.0
  %359 = vmatmul.mubr.f32.gmra.mrb[0].mxu0 %v160
  %v360 = vpop.f32.mrb[0].mxu0
  %v361 = vadd.f32 0.0, %v360
  %v362 = vpop.f32.mrb[0].mxu0
  %363 = vmatprep.mubr.f32.mxu0 0.0
  %364 = vmatmul.mubr.f32.gmra.mrb[0].mxu0 %v163
  %v365 = vpop.f32.mrb[0].mxu0
  %v366 = vadd.f32 0.0, %v365
  %v367 = vpop.f32.mrb[0].mxu0
  %368 = vmatprep.mubr.f32.mxu0 0.0
  %369 = vmatmul.mubr.f32.gmra.mrb[0].mxu0 %v166
  %v370 = vpop.f32.mrb[0].mxu0
  %v371 = vadd.f32 0.0, %v370
  %v372 = vpop.f32.mrb[0].mxu0
  %373 = vmatprep.mubr.f32.mxu0 0.0
  %374 = vmatmul.mubr.f32.gmra.mrb[0].mxu0 %v169
  %v375 = vpop.f32.mrb[0].mxu0
  %v376 = vadd.f32 0.0, %v375
  %v377 = vpop.f32.mrb[0].mxu0
  %378 = vmatprep.mubr.f32.mxu0 0.0
  %379 = vmatmul.mubr.f32.gmra.mrb[0].mxu0 %v172
  %v380 = vpop.f32.mrb[0].mxu0
  %v381 = vadd.f32 0.0, %v380
  %v382 = vpop.f32.mrb[0].mxu0
  %383 = vmatprep.mubr.f32.mxu0 0.0
  %384 = vmatmul.mubr.f32.gmra.mrb[0].mxu0 %v175
  %v385 = vpop.f32.mrb[0].mxu0
  %v386 = vadd.f32 0.0, %v385
  %v387 = vpop.f32.mrb[0].mxu0
  %388 = vmatprep.mubr.f32.mxu0 0.0
  %389 = vmatmul.mubr.f32.gmra.mrb[0].mxu0 %v178
  %v390 = vpop.f32.mrb[0].mxu0
  %v391 = vadd.f32 0.0, %v390
  %v392 = vpop.f32.mrb[0].mxu0
  %393 = vmatprep.mubr.f32.mxu0 0.0
  %394 = vmatmul.mubr.f32.gmra.mrb[0].mxu0 %v181
  %v395 = vpop.f32.mrb[0].mxu0
  %v396 = vadd.f32 0.0, %v395
  %v397 = vpop.f32.mrb[0].mxu0
  %398 = vmatprep.mubr.f32.mxu0 0.0
  %399 = vmatmul.mubr.f32.gmra.mrb[0].mxu0 %v184
  %v400 = vpop.f32.mrb[0].mxu0
  %v401 = vadd.f32 0.0, %v400
  %v402 = vpop.f32.mrb[0].mxu0
  %403 = vmatprep.mubr.f32.mxu0 0.0
  %404 = vmatmul.mubr.f32.gmra.mrb[0].mxu0 %v187
  %v405 = vpop.f32.mrb[0].mxu0
  %v406 = vadd.f32 0.0, %v405
  %v407 = vpop.f32.mrb[0].mxu0
  %408 = vmatprep.mubr.f32.mxu0 0.0
  %409 = vmatmul.mubr.f32.gmra.mrb[0].mxu0 %v190
  %v410 = vpop.f32.mrb[0].mxu0
  %v411 = vadd.f32 0.0, %v410
  %v412 = vpop.f32.mrb[0].mxu0
  %413 = vmatprep.mubr.f32.mxu0 0.0
  %414 = vmatmul.mubr.f32.gmra.mrb[0].mxu0 %v193
  %v415 = vpop.f32.mrb[0].mxu0
  %v416 = vadd.f32 0.0, %v415
  %v417 = vpop.f32.mrb[0].mxu0
  %418 = vdwg.mxu0
  %v420 = vsel %vm101, %v32, 0
  %v423 = vsel %vm101, %v33, 0
  %v426 = vsel %vm101, %v34, 0
  %v429 = vsel %vm101, %v35, 0
  %v432 = vsel %vm101, %v36, 0
  %v435 = vsel %vm101, %v37, 0
  %v438 = vsel %vm101, %v38, 0
  %v441 = vsel %vm101, %v39, 0
  %v444 = vsel %vm101, %v40, 0
  %v447 = vsel %vm101, %v41, 0
  %v450 = vsel %vm101, %v42, 0
  %v453 = vsel %vm101, %v43, 0
  %v456 = vsel %vm101, %v44, 0
  %v459 = vsel %vm101, %v45, 0
  %v462 = vsel %vm101, %v46, 0
  %v465 = vsel %vm101, %v47, 0
  %v468 = vsel %vm101, %v48, 0
  %v471 = vsel %vm101, %v49, 0
  %v474 = vsel %vm101, %v50, 0
  %v477 = vsel %vm101, %v51, 0
  %v480 = vsel %vm101, %v52, 0
  %v483 = vsel %vm101, %v53, 0
  %v486 = vsel %vm101, %v54, 0
  %v489 = vsel %vm101, %v55, 0
  %v492 = vsel %vm101, %v56, 0
  %v495 = vsel %vm101, %v57, 0
  %v498 = vsel %vm101, %v58, 0
  %v501 = vsel %vm101, %v59, 0
  %v504 = vsel %vm101, %v60, 0
  %v507 = vsel %vm101, %v61, 0
  %v510 = vsel %vm101, %v62, 0
  %v513 = vsel %vm195, %v65, 0
  %515 = vmatprep.subr.mxu0 0.0
  %516 = vmatpush1.msra.mxu0 %v63
  %517 = vmatprep.subr.mxu0 0.0
  %518 = vmatpush1.msra.mxu0 %v64
  %519 = vmatprep.subr.mxu0 0.0
  %520 = vmatpush1.msra.mxu0 %v513
  %521 = vmatprep.subr.mxu0 0.0
  %522 = vmatpush1.msra.mxu0 0.0
  %523 = vmatprep.subr.mxu0 0.0
  %524 = vmatpush1.msra.mxu0 0.0
  %525 = vmatprep.subr.mxu0 0.0
  %526 = vmatpush1.msra.mxu0 0.0
  %527 = vmatprep.subr.mxu0 0.0
  %528 = vmatpush1.msra.mxu0 0.0
  %529 = vmatprep.subr.mxu0 0.0
  %530 = vmatpush1.msra.mxu0 0.0
  %531 = vmatprep.subr.mxu0 0.0
  %532 = vmatpush1.msra.mxu0 0.0
  %533 = vmatprep.subr.mxu0 0.0
  %534 = vmatpush1.msra.mxu0 0.0
  %535 = vmatprep.subr.mxu0 0.0
  %536 = vmatpush1.msra.mxu0 0.0
  %537 = vmatprep.subr.mxu0 0.0
  %538 = vmatpush1.msra.mxu0 0.0
  %539 = vmatprep.subr.mxu0 0.0
  %540 = vmatpush1.msra.mxu0 0.0
  %541 = vmatprep.subr.mxu0 0.0
  %542 = vmatpush1.msra.mxu0 0.0
  %543 = vmatprep.subr.mxu0 0.0
  %544 = vmatpush1.msra.mxu0 0.0
  %545 = vmatprep.subr.mxu0 0.0
  %546 = vmatpush1.msra.mxu0 0.0
  %547 = vmatprep.subr.mxu0 0.0
  %548 = vmatpush1.msra.mxu0 0.0
  %549 = vmatprep.subr.mxu0 0.0
  %550 = vmatpush1.msra.mxu0 0.0
  %551 = vmatprep.subr.mxu0 0.0
  %552 = vmatpush1.msra.mxu0 0.0
  %553 = vmatprep.subr.mxu0 0.0
  %554 = vmatpush1.msra.mxu0 0.0
  %555 = vmatprep.subr.mxu0 0.0
  %556 = vmatpush1.msra.mxu0 0.0
  %557 = vmatprep.subr.mxu0 0.0
  %558 = vmatpush1.msra.mxu0 0.0
  %559 = vmatprep.subr.mxu0 0.0
  %560 = vmatpush1.msra.mxu0 0.0
  %561 = vmatprep.subr.mxu0 0.0
  %562 = vmatpush1.msra.mxu0 0.0
  %563 = vmatprep.subr.mxu0 0.0
  %564 = vmatpush1.msra.mxu0 0.0
  %565 = vmatprep.subr.mxu0 0.0
  %566 = vmatpush1.msra.mxu0 0.0
  %567 = vmatprep.subr.mxu0 0.0
  %568 = vmatpush1.msra.mxu0 0.0
  %569 = vmatprep.subr.mxu0 0.0
  %570 = vmatpush1.msra.mxu0 0.0
  %571 = vmatprep.subr.mxu0 0.0
  %572 = vmatpush1.msra.mxu0 0.0
  %573 = vmatprep.subr.mxu0 0.0
  %574 = vmatpush1.msra.mxu0 0.0
  %575 = vmatprep.subr.mxu0 0.0
  %576 = vmatpush1.msra.mxu0 0.0
  %577 = vmatprep.subr.mxu0 0.0
  %578 = vmatpush1.msra.mxu0 0.0
  %579 = vmatprep.mubr.f32.mxu0 0.0
  %580 = vmatmul.mubr.f32.gmra.mrb[0].mxu0 %v420
  %v581 = vpop.f32.mrb[0].mxu0
  %v582 = vadd.f32 %v266, %v581
  %v583 = vpop.f32.mrb[0].mxu0
  %584 = vmatprep.mubr.f32.mxu0 0.0
  %585 = vmatmul.mubr.f32.gmra.mrb[0].mxu0 %v423
  %v586 = vpop.f32.mrb[0].mxu0
  %v587 = vadd.f32 %v271, %v586
  %v588 = vpop.f32.mrb[0].mxu0
  %589 = vmatprep.mubr.f32.mxu0 0.0
  %590 = vmatmul.mubr.f32.gmra.mrb[0].mxu0 %v426
  %v591 = vpop.f32.mrb[0].mxu0
  %v592 = vadd.f32 %v276, %v591
  %v593 = vpop.f32.mrb[0].mxu0
  %594 = vmatprep.mubr.f32.mxu0 0.0
  %595 = vmatmul.mubr.f32.gmra.mrb[0].mxu0 %v429
  %v596 = vpop.f32.mrb[0].mxu0
  %v597 = vadd.f32 %v281, %v596
  %v598 = vpop.f32.mrb[0].mxu0
  %599 = vmatprep.mubr.f32.mxu0 0.0
  %600 = vmatmul.mubr.f32.gmra.mrb[0].mxu0 %v432
  %v601 = vpop.f32.mrb[0].mxu0
  %v602 = vadd.f32 %v286, %v601
  %v603 = vpop.f32.mrb[0].mxu0
  %604 = vmatprep.mubr.f32.mxu0 0.0
  %605 = vmatmul.mubr.f32.gmra.mrb[0].mxu0 %v435
  %v606 = vpop.f32.mrb[0].mxu0
  %v607 = vadd.f32 %v291, %v606
  %v608 = vpop.f32.mrb[0].mxu0
  %609 = vmatprep.mubr.f32.mxu0 0.0
  %610 = vmatmul.mubr.f32.gmra.mrb[0].mxu0 %v438
  %v611 = vpop.f32.mrb[0].mxu0
  %v612 = vadd.f32 %v296, %v611
  %v613 = vpop.f32.mrb[0].mxu0
  %614 = vmatprep.mubr.f32.mxu0 0.0
  %615 = vmatmul.mubr.f32.gmra.mrb[0].mxu0 %v441
  %v616 = vpop.f32.mrb[0].mxu0
  %v617 = vadd.f32 %v301, %v616
  %v618 = vpop.f32.mrb[0].mxu0
  %619 = vmatprep.mubr.f32.mxu0 0.0
  %620 = vmatmul.mubr.f32.gmra.mrb[0].mxu0 %v444
  %v621 = vpop.f32.mrb[0].mxu0
  %v622 = vadd.f32 %v306, %v621
  %v623 = vpop.f32.mrb[0].mxu0
  %624 = vmatprep.mubr.f32.mxu0 0.0
  %625 = vmatmul.mubr.f32.gmra.mrb[0].mxu0 %v447
  %v626 = vpop.f32.mrb[0].mxu0
  %v627 = vadd.f32 %v311, %v626
  %v628 = vpop.f32.mrb[0].mxu0
  %629 = vmatprep.mubr.f32.mxu0 0.0
  %630 = vmatmul.mubr.f32.gmra.mrb[0].mxu0 %v450
  %v631 = vpop.f32.mrb[0].mxu0
  %v632 = vadd.f32 %v316, %v631
  %v633 = vpop.f32.mrb[0].mxu0
  %634 = vmatprep.mubr.f32.mxu0 0.0
  %635 = vmatmul.mubr.f32.gmra.mrb[0].mxu0 %v453
  %v636 = vpop.f32.mrb[0].mxu0
  %v637 = vadd.f32 %v321, %v636
  %v638 = vpop.f32.mrb[0].mxu0
  %639 = vmatprep.mubr.f32.mxu0 0.0
  %640 = vmatmul.mubr.f32.gmra.mrb[0].mxu0 %v456
  %v641 = vpop.f32.mrb[0].mxu0
  %v642 = vadd.f32 %v326, %v641
  %v643 = vpop.f32.mrb[0].mxu0
  %644 = vmatprep.mubr.f32.mxu0 0.0
  %645 = vmatmul.mubr.f32.gmra.mrb[0].mxu0 %v459
  %v646 = vpop.f32.mrb[0].mxu0
  %v647 = vadd.f32 %v331, %v646
  %v648 = vpop.f32.mrb[0].mxu0
  %649 = vmatprep.mubr.f32.mxu0 0.0
  %650 = vmatmul.mubr.f32.gmra.mrb[0].mxu0 %v462
  %v651 = vpop.f32.mrb[0].mxu0
  %v652 = vadd.f32 %v336, %v651
  %v653 = vpop.f32.mrb[0].mxu0
  %654 = vmatprep.mubr.f32.mxu0 0.0
  %655 = vmatmul.mubr.f32.gmra.mrb[0].mxu0 %v465
  %v656 = vpop.f32.mrb[0].mxu0
  %v657 = vadd.f32 %v341, %v656
  %v658 = vpop.f32.mrb[0].mxu0
  %659 = vmatprep.mubr.f32.mxu0 0.0
  %660 = vmatmul.mubr.f32.gmra.mrb[0].mxu0 %v468
  %v661 = vpop.f32.mrb[0].mxu0
  %v662 = vadd.f32 %v346, %v661
  %v663 = vpop.f32.mrb[0].mxu0
  %664 = vmatprep.mubr.f32.mxu0 0.0
  %665 = vmatmul.mubr.f32.gmra.mrb[0].mxu0 %v471
  %v666 = vpop.f32.mrb[0].mxu0
  %v667 = vadd.f32 %v351, %v666
  %v668 = vpop.f32.mrb[0].mxu0
  %669 = vmatprep.mubr.f32.mxu0 0.0
  %670 = vmatmul.mubr.f32.gmra.mrb[0].mxu0 %v474
  %v671 = vpop.f32.mrb[0].mxu0
  %v672 = vadd.f32 %v356, %v671
  %v673 = vpop.f32.mrb[0].mxu0
  %674 = vmatprep.mubr.f32.mxu0 0.0
  %675 = vmatmul.mubr.f32.gmra.mrb[0].mxu0 %v477
  %v676 = vpop.f32.mrb[0].mxu0
  %v677 = vadd.f32 %v361, %v676
  %v678 = vpop.f32.mrb[0].mxu0
  %679 = vmatprep.mubr.f32.mxu0 0.0
  %680 = vmatmul.mubr.f32.gmra.mrb[0].mxu0 %v480
  %v681 = vpop.f32.mrb[0].mxu0
  %v682 = vadd.f32 %v366, %v681
  %v683 = vpop.f32.mrb[0].mxu0
  %684 = vmatprep.mubr.f32.mxu0 0.0
  %685 = vmatmul.mubr.f32.gmra.mrb[0].mxu0 %v483
  %v686 = vpop.f32.mrb[0].mxu0
  %v687 = vadd.f32 %v371, %v686
  %v688 = vpop.f32.mrb[0].mxu0
  %689 = vmatprep.mubr.f32.mxu0 0.0
  %690 = vmatmul.mubr.f32.gmra.mrb[0].mxu0 %v486
  %v691 = vpop.f32.mrb[0].mxu0
  %v692 = vadd.f32 %v376, %v691
  %v693 = vpop.f32.mrb[0].mxu0
  %694 = vmatprep.mubr.f32.mxu0 0.0
  %695 = vmatmul.mubr.f32.gmra.mrb[0].mxu0 %v489
  %v696 = vpop.f32.mrb[0].mxu0
  %v697 = vadd.f32 %v381, %v696
  %v698 = vpop.f32.mrb[0].mxu0
  %699 = vmatprep.mubr.f32.mxu0 0.0
  %700 = vmatmul.mubr.f32.gmra.mrb[0].mxu0 %v492
  %v701 = vpop.f32.mrb[0].mxu0
  %v702 = vadd.f32 %v386, %v701
  %v703 = vpop.f32.mrb[0].mxu0
  %704 = vmatprep.mubr.f32.mxu0 0.0
  %705 = vmatmul.mubr.f32.gmra.mrb[0].mxu0 %v495
  %v706 = vpop.f32.mrb[0].mxu0
  %v707 = vadd.f32 %v391, %v706
  %v708 = vpop.f32.mrb[0].mxu0
  %709 = vmatprep.mubr.f32.mxu0 0.0
  %710 = vmatmul.mubr.f32.gmra.mrb[0].mxu0 %v498
  %v711 = vpop.f32.mrb[0].mxu0
  %v712 = vadd.f32 %v396, %v711
  %v713 = vpop.f32.mrb[0].mxu0
  %714 = vmatprep.mubr.f32.mxu0 0.0
  %715 = vmatmul.mubr.f32.gmra.mrb[0].mxu0 %v501
  %v716 = vpop.f32.mrb[0].mxu0
  %v717 = vadd.f32 %v401, %v716
  %v718 = vpop.f32.mrb[0].mxu0
  %719 = vmatprep.mubr.f32.mxu0 0.0
  %720 = vmatmul.mubr.f32.gmra.mrb[0].mxu0 %v504
  %v721 = vpop.f32.mrb[0].mxu0
  %v722 = vadd.f32 %v406, %v721
  %v723 = vpop.f32.mrb[0].mxu0
  %724 = vmatprep.mubr.f32.mxu0 0.0
  %725 = vmatmul.mubr.f32.gmra.mrb[0].mxu0 %v507
  %v726 = vpop.f32.mrb[0].mxu0
  %v727 = vadd.f32 %v411, %v726
  %v728 = vpop.f32.mrb[0].mxu0
  %729 = vmatprep.mubr.f32.mxu0 0.0
  %730 = vmatmul.mubr.f32.gmra.mrb[0].mxu0 %v510
  %v731 = vpop.f32.mrb[0].mxu0
  %v732 = vadd.f32 %v416, %v731
  %v733 = vpop.f32.mrb[0].mxu0
  %734 = vdwg.mxu0
  %v735 = vld [vmem:[%s0 + $0x2] sm:$0xff]
  %v736 = vld [vmem:[%s0 + $0xa] sm:$0xff]
  %v737 = vld [vmem:[%s0 + $0x12] sm:$0xff]
  %v738 = vld [vmem:[%s0 + $0x1a] sm:$0xff]
  %v739 = vld [vmem:[%s0 + $0x22] sm:$0xff]
  %v740 = vld [vmem:[%s0 + $0x2a] sm:$0xff]
  %v741 = vld [vmem:[%s0 + $0x32] sm:$0xff]
  %v742 = vld [vmem:[%s0 + $0x3a] sm:$0xff]
  %v743 = vld [vmem:[%s0 + $0x42] sm:$0xff]
  %v744 = vld [vmem:[%s0 + $0x4a] sm:$0xff]
  %v745 = vld [vmem:[%s0 + $0x52] sm:$0xff]
  %v746 = vld [vmem:[%s0 + $0x5a] sm:$0xff]
  %v747 = vld [vmem:[%s0 + $0x62] sm:$0xff]
  %v748 = vld [vmem:[%s0 + $0x6a] sm:$0xff]
  %v749 = vld [vmem:[%s0 + $0x72] sm:$0xff]
  %v750 = vld [vmem:[%s0 + $0x7a] sm:$0xff]
  %v751 = vld [vmem:[%s0 + $0x82] sm:$0xff]
  %v752 = vld [vmem:[%s0 + $0x8a] sm:$0xff]
  %v753 = vld [vmem:[%s0 + $0x92] sm:$0xff]
  %v754 = vld [vmem:[%s0 + $0x9a] sm:$0xff]
  %v755 = vld [vmem:[%s0 + $0xa2] sm:$0xff]
  %v756 = vld [vmem:[%s0 + $0xaa] sm:$0xff]
  %v757 = vld [vmem:[%s0 + $0xb2] sm:$0xff]
  %v758 = vld [vmem:[%s0 + $0xba] sm:$0xff]
  %v759 = vld [vmem:[%s0 + $0xc2] sm:$0xff]
  %v760 = vld [vmem:[%s0 + $0xca] sm:$0xff]
  %v761 = vld [vmem:[%s0 + $0xd2] sm:$0xff]
  %v762 = vld [vmem:[%s0 + $0xda] sm:$0xff]
  %v763 = vld [vmem:[%s0 + $0xe2] sm:$0xff]
  %v764 = vld [vmem:[%s0 + $0xea] sm:$0xff]
  %v765 = vld [vmem:[%s0 + $0xf2] sm:$0xff]
  %s766 = scalar_lea.vmem %s1, 48
  %v767 = vld [vmem:[%s766] sm:$0xff]
  %v768 = vld [vmem:[%s766 + $0x8] sm:$0xff]
  %v769 = vld [vmem:[%s766 + $0x10] sm:$0xf]
  %v771 = vsel %vm101, %v735, 0
  %v774 = vsel %vm101, %v736, 0
  %v777 = vsel %vm101, %v737, 0
  %v780 = vsel %vm101, %v738, 0
  %v783 = vsel %vm101, %v739, 0
  %v786 = vsel %vm101, %v740, 0
  %v789 = vsel %vm101, %v741, 0
  %v792 = vsel %vm101, %v742, 0
  %v795 = vsel %vm101, %v743, 0
  %v798 = vsel %vm101, %v744, 0
  %v801 = vsel %vm101, %v745, 0
  %v804 = vsel %vm101, %v746, 0
  %v807 = vsel %vm101, %v747, 0
  %v810 = vsel %vm101, %v748, 0
  %v813 = vsel %vm101, %v749, 0
  %v816 = vsel %vm101, %v750, 0
  %v819 = vsel %vm101, %v751, 0
  %v822 = vsel %vm101, %v752, 0
  %v825 = vsel %vm101, %v753, 0
  %v828 = vsel %vm101, %v754, 0
  %v831 = vsel %vm101, %v755, 0
  %v834 = vsel %vm101, %v756, 0
  %v837 = vsel %vm101, %v757, 0
  %v840 = vsel %vm101, %v758, 0
  %v843 = vsel %vm101, %v759, 0
  %v846 = vsel %vm101, %v760, 0
  %v849 = vsel %vm101, %v761, 0
  %v852 = vsel %vm101, %v762, 0
  %v855 = vsel %vm101, %v763, 0
  %v858 = vsel %vm101, %v764, 0
  %v861 = vsel %vm101, %v765, 0
  %v864 = vsel %vm195, %v769, 0
  %866 = vmatprep.subr.mxu0 0.0
  %867 = vmatpush1.msra.mxu0 %v767
  %868 = vmatprep.subr.mxu0 0.0
  %869 = vmatpush1.msra.mxu0 %v768
  %870 = vmatprep.subr.mxu0 0.0
  %871 = vmatpush1.msra.mxu0 %v864
  %872 = vmatprep.subr.mxu0 0.0
  %873 = vmatpush1.msra.mxu0 0.0
  %874 = vmatprep.subr.mxu0 0.0
  %875 = vmatpush1.msra.mxu0 0.0
  %876 = vmatprep.subr.mxu0 0.0
  %877 = vmatpush1.msra.mxu0 0.0
  %878 = vmatprep.subr.mxu0 0.0
  %879 = vmatpush1.msra.mxu0 0.0
  %880 = vmatprep.subr.mxu0 0.0
  %881 = vmatpush1.msra.mxu0 0.0
  %882 = vmatprep.subr.mxu0 0.0
  %883 = vmatpush1.msra.mxu0 0.0
  %884 = vmatprep.subr.mxu0 0.0
  %885 = vmatpush1.msra.mxu0 0.0
  %886 = vmatprep.subr.mxu0 0.0
  %887 = vmatpush1.msra.mxu0 0.0
  %888 = vmatprep.subr.mxu0 0.0
  %889 = vmatpush1.msra.mxu0 0.0
  %890 = vmatprep.subr.mxu0 0.0
  %891 = vmatpush1.msra.mxu0 0.0
  %892 = vmatprep.subr.mxu0 0.0
  %893 = vmatpush1.msra.mxu0 0.0
  %894 = vmatprep.subr.mxu0 0.0
  %895 = vmatpush1.msra.mxu0 0.0
  %896 = vmatprep.subr.mxu0 0.0
  %897 = vmatpush1.msra.mxu0 0.0
  %898 = vmatprep.subr.mxu0 0.0
  %899 = vmatpush1.msra.mxu0 0.0
  %900 = vmatprep.subr.mxu0 0.0
  %901 = vmatpush1.msra.mxu0 0.0
  %902 = vmatprep.subr.mxu0 0.0
  %903 = vmatpush1.msra.mxu0 0.0
  %904 = vmatprep.subr.mxu0 0.0
  %905 = vmatpush1.msra.mxu0 0.0
  %906 = vmatprep.subr.mxu0 0.0
  %907 = vmatpush1.msra.mxu0 0.0
  %908 = vmatprep.subr.mxu0 0.0
  %909 = vmatpush1.msra.mxu0 0.0
  %910 = vmatprep.subr.mxu0 0.0
  %911 = vmatpush1.msra.mxu0 0.0
  %912 = vmatprep.subr.mxu0 0.0
  %913 = vmatpush1.msra.mxu0 0.0
  %914 = vmatprep.subr.mxu0 0.0
  %915 = vmatpush1.msra.mxu0 0.0
  %916 = vmatprep.subr.mxu0 0.0
  %917 = vmatpush1.msra.mxu0 0.0
  %918 = vmatprep.subr.mxu0 0.0
  %919 = vmatpush1.msra.mxu0 0.0
  %920 = vmatprep.subr.mxu0 0.0
  %921 = vmatpush1.msra.mxu0 0.0
  %922 = vmatprep.subr.mxu0 0.0
  %923 = vmatpush1.msra.mxu0 0.0
  %924 = vmatprep.subr.mxu0 0.0
  %925 = vmatpush1.msra.mxu0 0.0
  %926 = vmatprep.subr.mxu0 0.0
  %927 = vmatpush1.msra.mxu0 0.0
  %928 = vmatprep.subr.mxu0 0.0
  %929 = vmatpush1.msra.mxu0 0.0
  %930 = vmatprep.mubr.f32.mxu0 0.0
  %931 = vmatmul.mubr.f32.gmra.mrb[0].mxu0 %v771
  %v932 = vpop.f32.mrb[0].mxu0
  %v933 = vadd.f32 0.0, %v932
  %v934 = vpop.f32.mrb[0].mxu0
  %935 = vmatprep.mubr.f32.mxu0 0.0
  %936 = vmatmul.mubr.f32.gmra.mrb[0].mxu0 %v774
  %v937 = vpop.f32.mrb[0].mxu0
  %v938 = vadd.f32 0.0, %v937
  %v939 = vpop.f32.mrb[0].mxu0
  %940 = vmatprep.mubr.f32.mxu0 0.0
  %941 = vmatmul.mubr.f32.gmra.mrb[0].mxu0 %v777
  %v942 = vpop.f32.mrb[0].mxu0
  %v943 = vadd.f32 0.0, %v942
  %v944 = vpop.f32.mrb[0].mxu0
  %945 = vmatprep.mubr.f32.mxu0 0.0
  %946 = vmatmul.mubr.f32.gmra.mrb[0].mxu0 %v780
  %v947 = vpop.f32.mrb[0].mxu0
  %v948 = vadd.f32 0.0, %v947
  %v949 = vpop.f32.mrb[0].mxu0
  %950 = vmatprep.mubr.f32.mxu0 0.0
  %951 = vmatmul.mubr.f32.gmra.mrb[0].mxu0 %v783
  %v952 = vpop.f32.mrb[0].mxu0
  %v953 = vadd.f32 0.0, %v952
  %v954 = vpop.f32.mrb[0].mxu0
  %955 = vmatprep.mubr.f32.mxu0 0.0
  %956 = vmatmul.mubr.f32.gmra.mrb[0].mxu0 %v786
  %v957 = vpop.f32.mrb[0].mxu0
  %v958 = vadd.f32 0.0, %v957
  %v959 = vpop.f32.mrb[0].mxu0
  %960 = vmatprep.mubr.f32.mxu0 0.0
  %961 = vmatmul.mubr.f32.gmra.mrb[0].mxu0 %v789
  %v962 = vpop.f32.mrb[0].mxu0
  %v963 = vadd.f32 0.0, %v962
  %v964 = vpop.f32.mrb[0].mxu0
  %965 = vmatprep.mubr.f32.mxu0 0.0
  %966 = vmatmul.mubr.f32.gmra.mrb[0].mxu0 %v792
  %v967 = vpop.f32.mrb[0].mxu0
  %v968 = vadd.f32 0.0, %v967
  %v969 = vpop.f32.mrb[0].mxu0
  %970 = vmatprep.mubr.f32.mxu0 0.0
  %971 = vmatmul.mubr.f32.gmra.mrb[0].mxu0 %v795
  %v972 = vpop.f32.mrb[0].mxu0
  %v973 = vadd.f32 0.0, %v972
  %v974 = vpop.f32.mrb[0].mxu0
  %975 = vmatprep.mubr.f32.mxu0 0.0
  %976 = vmatmul.mubr.f32.gmra.mrb[0].mxu0 %v798
  %v977 = vpop.f32.mrb[0].mxu0
  %v978 = vadd.f32 0.0, %v977
  %v979 = vpop.f32.mrb[0].mxu0
  %980 = vmatprep.mubr.f32.mxu0 0.0
  %981 = vmatmul.mubr.f32.gmra.mrb[0].mxu0 %v801
  %v982 = vpop.f32.mrb[0].mxu0
  %v983 = vadd.f32 0.0, %v982
  %v984 = vpop.f32.mrb[0].mxu0
  %985 = vmatprep.mubr.f32.mxu0 0.0
  %986 = vmatmul.mubr.f32.gmra.mrb[0].mxu0 %v804
  %v987 = vpop.f32.mrb[0].mxu0
  %v988 = vadd.f32 0.0, %v987
  %v989 = vpop.f32.mrb[0].mxu0
  %990 = vmatprep.mubr.f32.mxu0 0.0
  %991 = vmatmul.mubr.f32.gmra.mrb[0].mxu0 %v807
  %v992 = vpop.f32.mrb[0].mxu0
  %v993 = vadd.f32 0.0, %v992
  %v994 = vpop.f32.mrb[0].mxu0
  %995 = vmatprep.mubr.f32.mxu0 0.0
  %996 = vmatmul.mubr.f32.gmra.mrb[0].mxu0 %v810
  %v997 = vpop.f32.mrb[0].mxu0
  %v998 = vadd.f32 0.0, %v997
  %v999 = vpop.f32.mrb[0].mxu0
  %1000 = vmatprep.mubr.f32.mxu0 0.0
  %1001 = vmatmul.mubr.f32.gmra.mrb[0].mxu0 %v813
  %v1002 = vpop.f32.mrb[0].mxu0
  %v1003 = vadd.f32 0.0, %v1002
  %v1004 = vpop.f32.mrb[0].mxu0
  %1005 = vmatprep.mubr.f32.mxu0 0.0
  %1006 = vmatmul.mubr.f32.gmra.mrb[0].mxu0 %v816
  %v1007 = vpop.f32.mrb[0].mxu0
  %v1008 = vadd.f32 0.0, %v1007
  %v1009 = vpop.f32.mrb[0].mxu0
  %1010 = vmatprep.mubr.f32.mxu0 0.0
  %1011 = vmatmul.mubr.f32.gmra.mrb[0].mxu0 %v819
  %v1012 = vpop.f32.mrb[0].mxu0
  %v1013 = vadd.f32 0.0, %v1012
  %v1014 = vpop.f32.mrb[0].mxu0
  %1015 = vmatprep.mubr.f32.mxu0 0.0
  %1016 = vmatmul.mubr.f32.gmra.mrb[0].mxu0 %v822
  %v1017 = vpop.f32.mrb[0].mxu0
  %v1018 = vadd.f32 0.0, %v1017
  %v1019 = vpop.f32.mrb[0].mxu0
  %1020 = vmatprep.mubr.f32.mxu0 0.0
  %1021 = vmatmul.mubr.f32.gmra.mrb[0].mxu0 %v825
  %v1022 = vpop.f32.mrb[0].mxu0
  %v1023 = vadd.f32 0.0, %v1022
  %v1024 = vpop.f32.mrb[0].mxu0
  %1025 = vmatprep.mubr.f32.mxu0 0.0
  %1026 = vmatmul.mubr.f32.gmra.mrb[0].mxu0 %v828
  %v1027 = vpop.f32.mrb[0].mxu0
  %v1028 = vadd.f32 0.0, %v1027
  %v1029 = vpop.f32.mrb[0].mxu0
  %1030 = vmatprep.mubr.f32.mxu0 0.0
  %1031 = vmatmul.mubr.f32.gmra.mrb[0].mxu0 %v831
  %v1032 = vpop.f32.mrb[0].mxu0
  %v1033 = vadd.f32 0.0, %v1032
  %v1034 = vpop.f32.mrb[0].mxu0
  %1035 = vmatprep.mubr.f32.mxu0 0.0
  %1036 = vmatmul.mubr.f32.gmra.mrb[0].mxu0 %v834
  %v1037 = vpop.f32.mrb[0].mxu0
  %v1038 = vadd.f32 0.0, %v1037
  %v1039 = vpop.f32.mrb[0].mxu0
  %1040 = vmatprep.mubr.f32.mxu0 0.0
  %1041 = vmatmul.mubr.f32.gmra.mrb[0].mxu0 %v837
  %v1042 = vpop.f32.mrb[0].mxu0
  %v1043 = vadd.f32 0.0, %v1042
  %v1044 = vpop.f32.mrb[0].mxu0
  %1045 = vmatprep.mubr.f32.mxu0 0.0
  %1046 = vmatmul.mubr.f32.gmra.mrb[0].mxu0 %v840
  %v1047 = vpop.f32.mrb[0].mxu0
  %v1048 = vadd.f32 0.0, %v1047
  %v1049 = vpop.f32.mrb[0].mxu0
  %1050 = vmatprep.mubr.f32.mxu0 0.0
  %1051 = vmatmul.mubr.f32.gmra.mrb[0].mxu0 %v843
  %v1052 = vpop.f32.mrb[0].mxu0
  %v1053 = vadd.f32 0.0, %v1052
  %v1054 = vpop.f32.mrb[0].mxu0
  %1055 = vmatprep.mubr.f32.mxu0 0.0
  %1056 = vmatmul.mubr.f32.gmra.mrb[0].mxu0 %v846
  %v1057 = vpop.f32.mrb[0].mxu0
  %v1058 = vadd.f32 0.0, %v1057
  %v1059 = vpop.f32.mrb[0].mxu0
  %1060 = vmatprep.mubr.f32.mxu0 0.0
  %1061 = vmatmul.mubr.f32.gmra.mrb[0].mxu0 %v849
  %v1062 = vpop.f32.mrb[0].mxu0
  %v1063 = vadd.f32 0.0, %v1062
  %v1064 = vpop.f32.mrb[0].mxu0
  %1065 = vmatprep.mubr.f32.mxu0 0.0
  %1066 = vmatmul.mubr.f32.gmra.mrb[0].mxu0 %v852
  %v1067 = vpop.f32.mrb[0].mxu0
  %v1068 = vadd.f32 0.0, %v1067
  %v1069 = vpop.f32.mrb[0].mxu0
  %1070 = vmatprep.mubr.f32.mxu0 0.0
  %1071 = vmatmul.mubr.f32.gmra.mrb[0].mxu0 %v855
  %v1072 = vpop.f32.mrb[0].mxu0
  %v1073 = vadd.f32 0.0, %v1072
  %v1074 = vpop.f32.mrb[0].mxu0
  %1075 = vmatprep.mubr.f32.mxu0 0.0
  %1076 = vmatmul.mubr.f32.gmra.mrb[0].mxu0 %v858
  %v1077 = vpop.f32.mrb[0].mxu0
  %v1078 = vadd.f32 0.0, %v1077
  %v1079 = vpop.f32.mrb[0].mxu0
  %1080 = vmatprep.mubr.f32.mxu0 0.0
  %1081 = vmatmul.mubr.f32.gmra.mrb[0].mxu0 %v861
  %v1082 = vpop.f32.mrb[0].mxu0
  %v1083 = vadd.f32 0.0, %v1082
  %v1084 = vpop.f32.mrb[0].mxu0
  %1085 = vdwg.mxu0
  %v1086 = vadd.f32 %v582, %v933
  %v1087 = vadd.f32 %v587, %v938
  %v1088 = vadd.f32 %v592, %v943
  %v1089 = vadd.f32 %v597, %v948
  %v1090 = vadd.f32 %v602, %v953
  %v1091 = vadd.f32 %v607, %v958
  %v1092 = vadd.f32 %v612, %v963
  %v1093 = vadd.f32 %v617, %v968
  %v1094 = vadd.f32 %v622, %v973
  %v1095 = vadd.f32 %v627, %v978
  %v1096 = vadd.f32 %v632, %v983
  %v1097 = vadd.f32 %v637, %v988
  %v1098 = vadd.f32 %v642, %v993
  %v1099 = vadd.f32 %v647, %v998
  %v1100 = vadd.f32 %v652, %v1003
  %v1101 = vadd.f32 %v657, %v1008
  %v1102 = vadd.f32 %v662, %v1013
  %v1103 = vadd.f32 %v667, %v1018
  %v1104 = vadd.f32 %v672, %v1023
  %v1105 = vadd.f32 %v677, %v1028
  %v1106 = vadd.f32 %v682, %v1033
  %v1107 = vadd.f32 %v687, %v1038
  %v1108 = vadd.f32 %v692, %v1043
  %v1109 = vadd.f32 %v697, %v1048
  %v1110 = vadd.f32 %v702, %v1053
  %v1111 = vadd.f32 %v707, %v1058
  %v1112 = vadd.f32 %v712, %v1063
  %v1113 = vadd.f32 %v717, %v1068
  %v1114 = vadd.f32 %v722, %v1073
  %v1115 = vadd.f32 %v727, %v1078
  %v1116 = vadd.f32 %v732, %v1083
  %v1117 = vld [vmem:[%s0 + $0x3] sm:$0xff]
  %v1118 = vld [vmem:[%s0 + $0xb] sm:$0xff]
  %v1119 = vld [vmem:[%s0 + $0x13] sm:$0xff]
  %v1120 = vld [vmem:[%s0 + $0x1b] sm:$0xff]
  %v1121 = vld [vmem:[%s0 + $0x23] sm:$0xff]
  %v1122 = vld [vmem:[%s0 + $0x2b] sm:$0xff]
  %v1123 = vld [vmem:[%s0 + $0x33] sm:$0xff]
  %v1124 = vld [vmem:[%s0 + $0x3b] sm:$0xff]
  %v1125 = vld [vmem:[%s0 + $0x43] sm:$0xff]
  %v1126 = vld [vmem:[%s0 + $0x4b] sm:$0xff]
  %v1127 = vld [vmem:[%s0 + $0x53] sm:$0xff]
  %v1128 = vld [vmem:[%s0 + $0x5b] sm:$0xff]
  %v1129 = vld [vmem:[%s0 + $0x63] sm:$0xff]
  %v1130 = vld [vmem:[%s0 + $0x6b] sm:$0xff]
  %v1131 = vld [vmem:[%s0 + $0x73] sm:$0xff]
  %v1132 = vld [vmem:[%s0 + $0x7b] sm:$0xff]
  %v1133 = vld [vmem:[%s0 + $0x83] sm:$0xff]
  %v1134 = vld [vmem:[%s0 + $0x8b] sm:$0xff]
  %v1135 = vld [vmem:[%s0 + $0x93] sm:$0xff]
  %v1136 = vld [vmem:[%s0 + $0x9b] sm:$0xff]
  %v1137 = vld [vmem:[%s0 + $0xa3] sm:$0xff]
  %v1138 = vld [vmem:[%s0 + $0xab] sm:$0xff]
  %v1139 = vld [vmem:[%s0 + $0xb3] sm:$0xff]
  %v1140 = vld [vmem:[%s0 + $0xbb] sm:$0xff]
  %v1141 = vld [vmem:[%s0 + $0xc3] sm:$0xff]
  %v1142 = vld [vmem:[%s0 + $0xcb] sm:$0xff]
  %v1143 = vld [vmem:[%s0 + $0xd3] sm:$0xff]
  %v1144 = vld [vmem:[%s0 + $0xdb] sm:$0xff]
  %v1145 = vld [vmem:[%s0 + $0xe3] sm:$0xff]
  %v1146 = vld [vmem:[%s0 + $0xeb] sm:$0xff]
  %v1147 = vld [vmem:[%s0 + $0xf3] sm:$0xff]
  %s1148 = scalar_lea.vmem %s1, 72
  %v1149 = vld [vmem:[%s1148] sm:$0xff]
  %v1150 = vld [vmem:[%s1148 + $0x8] sm:$0xff]
  %v1151 = vld [vmem:[%s1148 + $0x10] sm:$0xf]
  %v1153 = vsel %vm101, %v1117, 0
  %v1156 = vsel %vm101, %v1118, 0
  %v1159 = vsel %vm101, %v1119, 0
  %v1162 = vsel %vm101, %v1120, 0
  %v1165 = vsel %vm101, %v1121, 0
  %v1168 = vsel %vm101, %v1122, 0
  %v1171 = vsel %vm101, %v1123, 0
  %v1174 = vsel %vm101, %v1124, 0
  %v1177 = vsel %vm101, %v1125, 0
  %v1180 = vsel %vm101, %v1126, 0
  %v1183 = vsel %vm101, %v1127, 0
  %v1186 = vsel %vm101, %v1128, 0
  %v1189 = vsel %vm101, %v1129, 0
  %v1192 = vsel %vm101, %v1130, 0
  %v1195 = vsel %vm101, %v1131, 0
  %v1198 = vsel %vm101, %v1132, 0
  %v1201 = vsel %vm101, %v1133, 0
  %v1204 = vsel %vm101, %v1134, 0
  %v1207 = vsel %vm101, %v1135, 0
  %v1210 = vsel %vm101, %v1136, 0
  %v1213 = vsel %vm101, %v1137, 0
  %v1216 = vsel %vm101, %v1138, 0
  %v1219 = vsel %vm101, %v1139, 0
  %v1222 = vsel %vm101, %v1140, 0
  %v1225 = vsel %vm101, %v1141, 0
  %v1228 = vsel %vm101, %v1142, 0
  %v1231 = vsel %vm101, %v1143, 0
  %v1234 = vsel %vm101, %v1144, 0
  %v1237 = vsel %vm101, %v1145, 0
  %v1240 = vsel %vm101, %v1146, 0
  %v1243 = vsel %vm101, %v1147, 0
  %v1246 = vsel %vm195, %v1151, 0
  %1248 = vmatprep.subr.mxu0 0.0
  %1249 = vmatpush1.msra.mxu0 %v1149
  %1250 = vmatprep.subr.mxu0 0.0
  %1251 = vmatpush1.msra.mxu0 %v1150
  %1252 = vmatprep.subr.mxu0 0.0
  %1253 = vmatpush1.msra.mxu0 %v1246
  %1254 = vmatprep.subr.mxu0 0.0
  %1255 = vmatpush1.msra.mxu0 0.0
  %1256 = vmatprep.subr.mxu0 0.0
  %1257 = vmatpush1.msra.mxu0 0.0
  %1258 = vmatprep.subr.mxu0 0.0
  %1259 = vmatpush1.msra.mxu0 0.0
  %1260 = vmatprep.subr.mxu0 0.0
  %1261 = vmatpush1.msra.mxu0 0.0
  %1262 = vmatprep.subr.mxu0 0.0
  %1263 = vmatpush1.msra.mxu0 0.0
  %1264 = vmatprep.subr.mxu0 0.0
  %1265 = vmatpush1.msra.mxu0 0.0
  %1266 = vmatprep.subr.mxu0 0.0
  %1267 = vmatpush1.msra.mxu0 0.0
  %1268 = vmatprep.subr.mxu0 0.0
  %1269 = vmatpush1.msra.mxu0 0.0
  %1270 = vmatprep.subr.mxu0 0.0
  %1271 = vmatpush1.msra.mxu0 0.0
  %1272 = vmatprep.subr.mxu0 0.0
  %1273 = vmatpush1.msra.mxu0 0.0
  %1274 = vmatprep.subr.mxu0 0.0
  %1275 = vmatpush1.msra.mxu0 0.0
  %1276 = vmatprep.subr.mxu0 0.0
  %1277 = vmatpush1.msra.mxu0 0.0
  %1278 = vmatprep.subr.mxu0 0.0
  %1279 = vmatpush1.msra.mxu0 0.0
  %1280 = vmatprep.subr.mxu0 0.0
  %1281 = vmatpush1.msra.mxu0 0.0
  %1282 = vmatprep.subr.mxu0 0.0
  %1283 = vmatpush1.msra.mxu0 0.0
  %1284 = vmatprep.subr.mxu0 0.0
  %1285 = vmatpush1.msra.mxu0 0.0
  %1286 = vmatprep.subr.mxu0 0.0
  %1287 = vmatpush1.msra.mxu0 0.0
  %1288 = vmatprep.subr.mxu0 0.0
  %1289 = vmatpush1.msra.mxu0 0.0
  %1290 = vmatprep.subr.mxu0 0.0
  %1291 = vmatpush1.msra.mxu0 0.0
  %1292 = vmatprep.subr.mxu0 0.0
  %1293 = vmatpush1.msra.mxu0 0.0
  %1294 = vmatprep.subr.mxu0 0.0
  %1295 = vmatpush1.msra.mxu0 0.0
  %1296 = vmatprep.subr.mxu0 0.0
  %1297 = vmatpush1.msra.mxu0 0.0
  %1298 = vmatprep.subr.mxu0 0.0
  %1299 = vmatpush1.msra.mxu0 0.0
  %1300 = vmatprep.subr.mxu0 0.0
  %1301 = vmatpush1.msra.mxu0 0.0
  %1302 = vmatprep.subr.mxu0 0.0
  %1303 = vmatpush1.msra.mxu0 0.0
  %1304 = vmatprep.subr.mxu0 0.0
  %1305 = vmatpush1.msra.mxu0 0.0
  %1306 = vmatprep.subr.mxu0 0.0
  %1307 = vmatpush1.msra.mxu0 0.0
  %1308 = vmatprep.subr.mxu0 0.0
  %1309 = vmatpush1.msra.mxu0 0.0
  %1310 = vmatprep.subr.mxu0 0.0
  %1311 = vmatpush1.msra.mxu0 0.0
  %1312 = vmatprep.mubr.f32.mxu0 0.0
  %1313 = vmatmul.mubr.f32.gmra.mrb[0].mxu0 %v1153
  %v1314 = vpop.f32.mrb[0].mxu0
  %v1315 = vadd.f32 0.0, %v1314
  %v1316 = vpop.f32.mrb[0].mxu0
  %1317 = vmatprep.mubr.f32.mxu0 0.0
  %1318 = vmatmul.mubr.f32.gmra.mrb[0].mxu0 %v1156
  %v1319 = vpop.f32.mrb[0].mxu0
  %v1320 = vadd.f32 0.0, %v1319
  %v1321 = vpop.f32.mrb[0].mxu0
  %1322 = vmatprep.mubr.f32.mxu0 0.0
  %1323 = vmatmul.mubr.f32.gmra.mrb[0].mxu0 %v1159
  %v1324 = vpop.f32.mrb[0].mxu0
  %v1325 = vadd.f32 0.0, %v1324
  %v1326 = vpop.f32.mrb[0].mxu0
  %1327 = vmatprep.mubr.f32.mxu0 0.0
  %1328 = vmatmul.mubr.f32.gmra.mrb[0].mxu0 %v1162
  %v1329 = vpop.f32.mrb[0].mxu0
  %v1330 = vadd.f32 0.0, %v1329
  %v1331 = vpop.f32.mrb[0].mxu0
  %1332 = vmatprep.mubr.f32.mxu0 0.0
  %1333 = vmatmul.mubr.f32.gmra.mrb[0].mxu0 %v1165
  %v1334 = vpop.f32.mrb[0].mxu0
  %v1335 = vadd.f32 0.0, %v1334
  %v1336 = vpop.f32.mrb[0].mxu0
  %1337 = vmatprep.mubr.f32.mxu0 0.0
  %1338 = vmatmul.mubr.f32.gmra.mrb[0].mxu0 %v1168
  %v1339 = vpop.f32.mrb[0].mxu0
  %v1340 = vadd.f32 0.0, %v1339
  %v1341 = vpop.f32.mrb[0].mxu0
  %1342 = vmatprep.mubr.f32.mxu0 0.0
  %1343 = vmatmul.mubr.f32.gmra.mrb[0].mxu0 %v1171
  %v1344 = vpop.f32.mrb[0].mxu0
  %v1345 = vadd.f32 0.0, %v1344
  %v1346 = vpop.f32.mrb[0].mxu0
  %1347 = vmatprep.mubr.f32.mxu0 0.0
  %1348 = vmatmul.mubr.f32.gmra.mrb[0].mxu0 %v1174
  %v1349 = vpop.f32.mrb[0].mxu0
  %v1350 = vadd.f32 0.0, %v1349
  %v1351 = vpop.f32.mrb[0].mxu0
  %1352 = vmatprep.mubr.f32.mxu0 0.0
  %1353 = vmatmul.mubr.f32.gmra.mrb[0].mxu0 %v1177
  %v1354 = vpop.f32.mrb[0].mxu0
  %v1355 = vadd.f32 0.0, %v1354
  %v1356 = vpop.f32.mrb[0].mxu0
  %1357 = vmatprep.mubr.f32.mxu0 0.0
  %1358 = vmatmul.mubr.f32.gmra.mrb[0].mxu0 %v1180
  %v1359 = vpop.f32.mrb[0].mxu0
  %v1360 = vadd.f32 0.0, %v1359
  %v1361 = vpop.f32.mrb[0].mxu0
  %1362 = vmatprep.mubr.f32.mxu0 0.0
  %1363 = vmatmul.mubr.f32.gmra.mrb[0].mxu0 %v1183
  %v1364 = vpop.f32.mrb[0].mxu0
  %v1365 = vadd.f32 0.0, %v1364
  %v1366 = vpop.f32.mrb[0].mxu0
  %1367 = vmatprep.mubr.f32.mxu0 0.0
  %1368 = vmatmul.mubr.f32.gmra.mrb[0].mxu0 %v1186
  %v1369 = vpop.f32.mrb[0].mxu0
  %v1370 = vadd.f32 0.0, %v1369
  %v1371 = vpop.f32.mrb[0].mxu0
  %1372 = vmatprep.mubr.f32.mxu0 0.0
  %1373 = vmatmul.mubr.f32.gmra.mrb[0].mxu0 %v1189
  %v1374 = vpop.f32.mrb[0].mxu0
  %v1375 = vadd.f32 0.0, %v1374
  %v1376 = vpop.f32.mrb[0].mxu0
  %1377 = vmatprep.mubr.f32.mxu0 0.0
  %1378 = vmatmul.mubr.f32.gmra.mrb[0].mxu0 %v1192
  %v1379 = vpop.f32.mrb[0].mxu0
  %v1380 = vadd.f32 0.0, %v1379
  %v1381 = vpop.f32.mrb[0].mxu0
  %1382 = vmatprep.mubr.f32.mxu0 0.0
  %1383 = vmatmul.mubr.f32.gmra.mrb[0].mxu0 %v1195
  %v1384 = vpop.f32.mrb[0].mxu0
  %v1385 = vadd.f32 0.0, %v1384
  %v1386 = vpop.f32.mrb[0].mxu0
  %1387 = vmatprep.mubr.f32.mxu0 0.0
  %1388 = vmatmul.mubr.f32.gmra.mrb[0].mxu0 %v1198
  %v1389 = vpop.f32.mrb[0].mxu0
  %v1390 = vadd.f32 0.0, %v1389
  %v1391 = vpop.f32.mrb[0].mxu0
  %1392 = vmatprep.mubr.f32.mxu0 0.0
  %1393 = vmatmul.mubr.f32.gmra.mrb[0].mxu0 %v1201
  %v1394 = vpop.f32.mrb[0].mxu0
  %v1395 = vadd.f32 0.0, %v1394
  %v1396 = vpop.f32.mrb[0].mxu0
  %1397 = vmatprep.mubr.f32.mxu0 0.0
  %1398 = vmatmul.mubr.f32.gmra.mrb[0].mxu0 %v1204
  %v1399 = vpop.f32.mrb[0].mxu0
  %v1400 = vadd.f32 0.0, %v1399
  %v1401 = vpop.f32.mrb[0].mxu0
  %1402 = vmatprep.mubr.f32.mxu0 0.0
  %1403 = vmatmul.mubr.f32.gmra.mrb[0].mxu0 %v1207
  %v1404 = vpop.f32.mrb[0].mxu0
  %v1405 = vadd.f32 0.0, %v1404
  %v1406 = vpop.f32.mrb[0].mxu0
  %1407 = vmatprep.mubr.f32.mxu0 0.0
  %1408 = vmatmul.mubr.f32.gmra.mrb[0].mxu0 %v1210
  %v1409 = vpop.f32.mrb[0].mxu0
  %v1410 = vadd.f32 0.0, %v1409
  %v1411 = vpop.f32.mrb[0].mxu0
  %1412 = vmatprep.mubr.f32.mxu0 0.0
  %1413 = vmatmul.mubr.f32.gmra.mrb[0].mxu0 %v1213
  %v1414 = vpop.f32.mrb[0].mxu0
  %v1415 = vadd.f32 0.0, %v1414
  %v1416 = vpop.f32.mrb[0].mxu0
  %1417 = vmatprep.mubr.f32.mxu0 0.0
  %1418 = vmatmul.mubr.f32.gmra.mrb[0].mxu0 %v1216
  %v1419 = vpop.f32.mrb[0].mxu0
  %v1420 = vadd.f32 0.0, %v1419
  %v1421 = vpop.f32.mrb[0].mxu0
  %1422 = vmatprep.mubr.f32.mxu0 0.0
  %1423 = vmatmul.mubr.f32.gmra.mrb[0].mxu0 %v1219
  %v1424 = vpop.f32.mrb[0].mxu0
  %v1425 = vadd.f32 0.0, %v1424
  %v1426 = vpop.f32.mrb[0].mxu0
  %1427 = vmatprep.mubr.f32.mxu0 0.0
  %1428 = vmatmul.mubr.f32.gmra.mrb[0].mxu0 %v1222
  %v1429 = vpop.f32.mrb[0].mxu0
  %v1430 = vadd.f32 0.0, %v1429
  %v1431 = vpop.f32.mrb[0].mxu0
  %1432 = vmatprep.mubr.f32.mxu0 0.0
  %1433 = vmatmul.mubr.f32.gmra.mrb[0].mxu0 %v1225
  %v1434 = vpop.f32.mrb[0].mxu0
  %v1435 = vadd.f32 0.0, %v1434
  %v1436 = vpop.f32.mrb[0].mxu0
  %1437 = vmatprep.mubr.f32.mxu0 0.0
  %1438 = vmatmul.mubr.f32.gmra.mrb[0].mxu0 %v1228
  %v1439 = vpop.f32.mrb[0].mxu0
  %v1440 = vadd.f32 0.0, %v1439
  %v1441 = vpop.f32.mrb[0].mxu0
  %1442 = vmatprep.mubr.f32.mxu0 0.0
  %1443 = vmatmul.mubr.f32.gmra.mrb[0].mxu0 %v1231
  %v1444 = vpop.f32.mrb[0].mxu0
  %v1445 = vadd.f32 0.0, %v1444
  %v1446 = vpop.f32.mrb[0].mxu0
  %1447 = vmatprep.mubr.f32.mxu0 0.0
  %1448 = vmatmul.mubr.f32.gmra.mrb[0].mxu0 %v1234
  %v1449 = vpop.f32.mrb[0].mxu0
  %v1450 = vadd.f32 0.0, %v1449
  %v1451 = vpop.f32.mrb[0].mxu0
  %1452 = vmatprep.mubr.f32.mxu0 0.0
  %1453 = vmatmul.mubr.f32.gmra.mrb[0].mxu0 %v1237
  %v1454 = vpop.f32.mrb[0].mxu0
  %v1455 = vadd.f32 0.0, %v1454
  %v1456 = vpop.f32.mrb[0].mxu0
  %1457 = vmatprep.mubr.f32.mxu0 0.0
  %1458 = vmatmul.mubr.f32.gmra.mrb[0].mxu0 %v1240
  %v1459 = vpop.f32.mrb[0].mxu0
  %v1460 = vadd.f32 0.0, %v1459
  %v1461 = vpop.f32.mrb[0].mxu0
  %1462 = vmatprep.mubr.f32.mxu0 0.0
  %1463 = vmatmul.mubr.f32.gmra.mrb[0].mxu0 %v1243
  %v1464 = vpop.f32.mrb[0].mxu0
  %v1465 = vadd.f32 0.0, %v1464
  %v1466 = vpop.f32.mrb[0].mxu0
  %1467 = vdwg.mxu0
  %v1468 = vadd.f32 %v1086, %v1315
  %v1469 = vadd.f32 %v1087, %v1320
  %v1470 = vadd.f32 %v1088, %v1325
  %v1471 = vadd.f32 %v1089, %v1330
  %v1472 = vadd.f32 %v1090, %v1335
  %v1473 = vadd.f32 %v1091, %v1340
  %v1474 = vadd.f32 %v1092, %v1345
  %v1475 = vadd.f32 %v1093, %v1350
  %v1476 = vadd.f32 %v1094, %v1355
  %v1477 = vadd.f32 %v1095, %v1360
  %v1478 = vadd.f32 %v1096, %v1365
  %v1479 = vadd.f32 %v1097, %v1370
  %v1480 = vadd.f32 %v1098, %v1375
  %v1481 = vadd.f32 %v1099, %v1380
  %v1482 = vadd.f32 %v1100, %v1385
  %v1483 = vadd.f32 %v1101, %v1390
  %v1484 = vadd.f32 %v1102, %v1395
  %v1485 = vadd.f32 %v1103, %v1400
  %v1486 = vadd.f32 %v1104, %v1405
  %v1487 = vadd.f32 %v1105, %v1410
  %v1488 = vadd.f32 %v1106, %v1415
  %v1489 = vadd.f32 %v1107, %v1420
  %v1490 = vadd.f32 %v1108, %v1425
  %v1491 = vadd.f32 %v1109, %v1430
  %v1492 = vadd.f32 %v1110, %v1435
  %v1493 = vadd.f32 %v1111, %v1440
  %v1494 = vadd.f32 %v1112, %v1445
  %v1495 = vadd.f32 %v1113, %v1450
  %v1496 = vadd.f32 %v1114, %v1455
  %v1497 = vadd.f32 %v1115, %v1460
  %v1498 = vadd.f32 %v1116, %v1465
  %v1499 = vld [vmem:[%s0 + $0x4] sm:$0xff]
  %v1500 = vld [vmem:[%s0 + $0xc] sm:$0xff]
  %v1501 = vld [vmem:[%s0 + $0x14] sm:$0xff]
  %v1502 = vld [vmem:[%s0 + $0x1c] sm:$0xff]
  %v1503 = vld [vmem:[%s0 + $0x24] sm:$0xff]
  %v1504 = vld [vmem:[%s0 + $0x2c] sm:$0xff]
  %v1505 = vld [vmem:[%s0 + $0x34] sm:$0xff]
  %v1506 = vld [vmem:[%s0 + $0x3c] sm:$0xff]
  %v1507 = vld [vmem:[%s0 + $0x44] sm:$0xff]
  %v1508 = vld [vmem:[%s0 + $0x4c] sm:$0xff]
  %v1509 = vld [vmem:[%s0 + $0x54] sm:$0xff]
  %v1510 = vld [vmem:[%s0 + $0x5c] sm:$0xff]
  %v1511 = vld [vmem:[%s0 + $0x64] sm:$0xff]
  %v1512 = vld [vmem:[%s0 + $0x6c] sm:$0xff]
  %v1513 = vld [vmem:[%s0 + $0x74] sm:$0xff]
  %v1514 = vld [vmem:[%s0 + $0x7c] sm:$0xff]
  %v1515 = vld [vmem:[%s0 + $0x84] sm:$0xff]
  %v1516 = vld [vmem:[%s0 + $0x8c] sm:$0xff]
  %v1517 = vld [vmem:[%s0 + $0x94] sm:$0xff]
  %v1518 = vld [vmem:[%s0 + $0x9c] sm:$0xff]
  %v1519 = vld [vmem:[%s0 + $0xa4] sm:$0xff]
  %v1520 = vld [vmem:[%s0 + $0xac] sm:$0xff]
  %v1521 = vld [vmem:[%s0 + $0xb4] sm:$0xff]
  %v1522 = vld [vmem:[%s0 + $0xbc] sm:$0xff]
  %v1523 = vld [vmem:[%s0 + $0xc4] sm:$0xff]
  %v1524 = vld [vmem:[%s0 + $0xcc] sm:$0xff]
  %v1525 = vld [vmem:[%s0 + $0xd4] sm:$0xff]
  %v1526 = vld [vmem:[%s0 + $0xdc] sm:$0xff]
  %v1527 = vld [vmem:[%s0 + $0xe4] sm:$0xff]
  %v1528 = vld [vmem:[%s0 + $0xec] sm:$0xff]
  %v1529 = vld [vmem:[%s0 + $0xf4] sm:$0xff]
  %s1530 = scalar_lea.vmem %s1, 96
  %v1531 = vld [vmem:[%s1530] sm:$0xff]
  %v1532 = vld [vmem:[%s1530 + $0x8] sm:$0xff]
  %v1533 = vld [vmem:[%s1530 + $0x10] sm:$0xf]
  %v1535 = vsel %vm101, %v1499, 0
  %v1538 = vsel %vm101, %v1500, 0
  %v1541 = vsel %vm101, %v1501, 0
  %v1544 = vsel %vm101, %v1502, 0
  %v1547 = vsel %vm101, %v1503, 0
  %v1550 = vsel %vm101, %v1504, 0
  %v1553 = vsel %vm101, %v1505, 0
  %v1556 = vsel %vm101, %v1506, 0
  %v1559 = vsel %vm101, %v1507, 0
  %v1562 = vsel %vm101, %v1508, 0
  %v1565 = vsel %vm101, %v1509, 0
  %v1568 = vsel %vm101, %v1510, 0
  %v1571 = vsel %vm101, %v1511, 0
  %v1574 = vsel %vm101, %v1512, 0
  %v1577 = vsel %vm101, %v1513, 0
  %v1580 = vsel %vm101, %v1514, 0
  %v1583 = vsel %vm101, %v1515, 0
  %v1586 = vsel %vm101, %v1516, 0
  %v1589 = vsel %vm101, %v1517, 0
  %v1592 = vsel %vm101, %v1518, 0
  %v1595 = vsel %vm101, %v1519, 0
  %v1598 = vsel %vm101, %v1520, 0
  %v1601 = vsel %vm101, %v1521, 0
  %v1604 = vsel %vm101, %v1522, 0
  %v1607 = vsel %vm101, %v1523, 0
  %v1610 = vsel %vm101, %v1524, 0
  %v1613 = vsel %vm101, %v1525, 0
  %v1616 = vsel %vm101, %v1526, 0
  %v1619 = vsel %vm101, %v1527, 0
  %v1622 = vsel %vm101, %v1528, 0
  %v1625 = vsel %vm101, %v1529, 0
  %v1628 = vsel %vm195, %v1533, 0
  %1630 = vmatprep.subr.mxu0 0.0
  %1631 = vmatpush1.msra.mxu0 %v1531
  %1632 = vmatprep.subr.mxu0 0.0
  %1633 = vmatpush1.msra.mxu0 %v1532
  %1634 = vmatprep.subr.mxu0 0.0
  %1635 = vmatpush1.msra.mxu0 %v1628
  %1636 = vmatprep.subr.mxu0 0.0
  %1637 = vmatpush1.msra.mxu0 0.0
  %1638 = vmatprep.subr.mxu0 0.0
  %1639 = vmatpush1.msra.mxu0 0.0
  %1640 = vmatprep.subr.mxu0 0.0
  %1641 = vmatpush1.msra.mxu0 0.0
  %1642 = vmatprep.subr.mxu0 0.0
  %1643 = vmatpush1.msra.mxu0 0.0
  %1644 = vmatprep.subr.mxu0 0.0
  %1645 = vmatpush1.msra.mxu0 0.0
  %1646 = vmatprep.subr.mxu0 0.0
  %1647 = vmatpush1.msra.mxu0 0.0
  %1648 = vmatprep.subr.mxu0 0.0
  %1649 = vmatpush1.msra.mxu0 0.0
  %1650 = vmatprep.subr.mxu0 0.0
  %1651 = vmatpush1.msra.mxu0 0.0
  %1652 = vmatprep.subr.mxu0 0.0
  %1653 = vmatpush1.msra.mxu0 0.0
  %1654 = vmatprep.subr.mxu0 0.0
  %1655 = vmatpush1.msra.mxu0 0.0
  %1656 = vmatprep.subr.mxu0 0.0
  %1657 = vmatpush1.msra.mxu0 0.0
  %1658 = vmatprep.subr.mxu0 0.0
  %1659 = vmatpush1.msra.mxu0 0.0
  %1660 = vmatprep.subr.mxu0 0.0
  %1661 = vmatpush1.msra.mxu0 0.0
  %1662 = vmatprep.subr.mxu0 0.0
  %1663 = vmatpush1.msra.mxu0 0.0
  %1664 = vmatprep.subr.mxu0 0.0
  %1665 = vmatpush1.msra.mxu0 0.0
  %1666 = vmatprep.subr.mxu0 0.0
  %1667 = vmatpush1.msra.mxu0 0.0
  %1668 = vmatprep.subr.mxu0 0.0
  %1669 = vmatpush1.msra.mxu0 0.0
  %1670 = vmatprep.subr.mxu0 0.0
  %1671 = vmatpush1.msra.mxu0 0.0
  %1672 = vmatprep.subr.mxu0 0.0
  %1673 = vmatpush1.msra.mxu0 0.0
  %1674 = vmatprep.subr.mxu0 0.0
  %1675 = vmatpush1.msra.mxu0 0.0
  %1676 = vmatprep.subr.mxu0 0.0
  %1677 = vmatpush1.msra.mxu0 0.0
  %1678 = vmatprep.subr.mxu0 0.0
  %1679 = vmatpush1.msra.mxu0 0.0
  %1680 = vmatprep.subr.mxu0 0.0
  %1681 = vmatpush1.msra.mxu0 0.0
  %1682 = vmatprep.subr.mxu0 0.0
  %1683 = vmatpush1.msra.mxu0 0.0
  %1684 = vmatprep.subr.mxu0 0.0
  %1685 = vmatpush1.msra.mxu0 0.0
  %1686 = vmatprep.subr.mxu0 0.0
  %1687 = vmatpush1.msra.mxu0 0.0
  %1688 = vmatprep.subr.mxu0 0.0
  %1689 = vmatpush1.msra.mxu0 0.0
  %1690 = vmatprep.subr.mxu0 0.0
  %1691 = vmatpush1.msra.mxu0 0.0
  %1692 = vmatprep.subr.mxu0 0.0
  %1693 = vmatpush1.msra.mxu0 0.0
  %1694 = vmatprep.mubr.f32.mxu0 0.0
  %1695 = vmatmul.mubr.f32.gmra.mrb[0].mxu0 %v1535
  %v1696 = vpop.f32.mrb[0].mxu0
  %v1697 = vadd.f32 0.0, %v1696
  %v1698 = vpop.f32.mrb[0].mxu0
  %1699 = vmatprep.mubr.f32.mxu0 0.0
  %1700 = vmatmul.mubr.f32.gmra.mrb[0].mxu0 %v1538
  %v1701 = vpop.f32.mrb[0].mxu0
  %v1702 = vadd.f32 0.0, %v1701
  %v1703 = vpop.f32.mrb[0].mxu0
  %1704 = vmatprep.mubr.f32.mxu0 0.0
  %1705 = vmatmul.mubr.f32.gmra.mrb[0].mxu0 %v1541
  %v1706 = vpop.f32.mrb[0].mxu0
  %v1707 = vadd.f32 0.0, %v1706
  %v1708 = vpop.f32.mrb[0].mxu0
  %1709 = vmatprep.mubr.f32.mxu0 0.0
  %1710 = vmatmul.mubr.f32.gmra.mrb[0].mxu0 %v1544
  %v1711 = vpop.f32.mrb[0].mxu0
  %v1712 = vadd.f32 0.0, %v1711
  %v1713 = vpop.f32.mrb[0].mxu0
  %1714 = vmatprep.mubr.f32.mxu0 0.0
  %1715 = vmatmul.mubr.f32.gmra.mrb[0].mxu0 %v1547
  %v1716 = vpop.f32.mrb[0].mxu0
  %v1717 = vadd.f32 0.0, %v1716
  %v1718 = vpop.f32.mrb[0].mxu0
  %1719 = vmatprep.mubr.f32.mxu0 0.0
  %1720 = vmatmul.mubr.f32.gmra.mrb[0].mxu0 %v1550
  %v1721 = vpop.f32.mrb[0].mxu0
  %v1722 = vadd.f32 0.0, %v1721
  %v1723 = vpop.f32.mrb[0].mxu0
  %1724 = vmatprep.mubr.f32.mxu0 0.0
  %1725 = vmatmul.mubr.f32.gmra.mrb[0].mxu0 %v1553
  %v1726 = vpop.f32.mrb[0].mxu0
  %v1727 = vadd.f32 0.0, %v1726
  %v1728 = vpop.f32.mrb[0].mxu0
  %1729 = vmatprep.mubr.f32.mxu0 0.0
  %1730 = vmatmul.mubr.f32.gmra.mrb[0].mxu0 %v1556
  %v1731 = vpop.f32.mrb[0].mxu0
  %v1732 = vadd.f32 0.0, %v1731
  %v1733 = vpop.f32.mrb[0].mxu0
  %1734 = vmatprep.mubr.f32.mxu0 0.0
  %1735 = vmatmul.mubr.f32.gmra.mrb[0].mxu0 %v1559
  %v1736 = vpop.f32.mrb[0].mxu0
  %v1737 = vadd.f32 0.0, %v1736
  %v1738 = vpop.f32.mrb[0].mxu0
  %1739 = vmatprep.mubr.f32.mxu0 0.0
  %1740 = vmatmul.mubr.f32.gmra.mrb[0].mxu0 %v1562
  %v1741 = vpop.f32.mrb[0].mxu0
  %v1742 = vadd.f32 0.0, %v1741
  %v1743 = vpop.f32.mrb[0].mxu0
  %1744 = vmatprep.mubr.f32.mxu0 0.0
  %1745 = vmatmul.mubr.f32.gmra.mrb[0].mxu0 %v1565
  %v1746 = vpop.f32.mrb[0].mxu0
  %v1747 = vadd.f32 0.0, %v1746
  %v1748 = vpop.f32.mrb[0].mxu0
  %1749 = vmatprep.mubr.f32.mxu0 0.0
  %1750 = vmatmul.mubr.f32.gmra.mrb[0].mxu0 %v1568
  %v1751 = vpop.f32.mrb[0].mxu0
  %v1752 = vadd.f32 0.0, %v1751
  %v1753 = vpop.f32.mrb[0].mxu0
  %1754 = vmatprep.mubr.f32.mxu0 0.0
  %1755 = vmatmul.mubr.f32.gmra.mrb[0].mxu0 %v1571
  %v1756 = vpop.f32.mrb[0].mxu0
  %v1757 = vadd.f32 0.0, %v1756
  %v1758 = vpop.f32.mrb[0].mxu0
  %1759 = vmatprep.mubr.f32.mxu0 0.0
  %1760 = vmatmul.mubr.f32.gmra.mrb[0].mxu0 %v1574
  %v1761 = vpop.f32.mrb[0].mxu0
  %v1762 = vadd.f32 0.0, %v1761
  %v1763 = vpop.f32.mrb[0].mxu0
  %1764 = vmatprep.mubr.f32.mxu0 0.0
  %1765 = vmatmul.mubr.f32.gmra.mrb[0].mxu0 %v1577
  %v1766 = vpop.f32.mrb[0].mxu0
  %v1767 = vadd.f32 0.0, %v1766
  %v1768 = vpop.f32.mrb[0].mxu0
  %1769 = vmatprep.mubr.f32.mxu0 0.0
  %1770 = vmatmul.mubr.f32.gmra.mrb[0].mxu0 %v1580
  %v1771 = vpop.f32.mrb[0].mxu0
  %v1772 = vadd.f32 0.0, %v1771
  %v1773 = vpop.f32.mrb[0].mxu0
  %1774 = vmatprep.mubr.f32.mxu0 0.0
  %1775 = vmatmul.mubr.f32.gmra.mrb[0].mxu0 %v1583
  %v1776 = vpop.f32.mrb[0].mxu0
  %v1777 = vadd.f32 0.0, %v1776
  %v1778 = vpop.f32.mrb[0].mxu0
  %1779 = vmatprep.mubr.f32.mxu0 0.0
  %1780 = vmatmul.mubr.f32.gmra.mrb[0].mxu0 %v1586
  %v1781 = vpop.f32.mrb[0].mxu0
  %v1782 = vadd.f32 0.0, %v1781
  %v1783 = vpop.f32.mrb[0].mxu0
  %1784 = vmatprep.mubr.f32.mxu0 0.0
  %1785 = vmatmul.mubr.f32.gmra.mrb[0].mxu0 %v1589
  %v1786 = vpop.f32.mrb[0].mxu0
  %v1787 = vadd.f32 0.0, %v1786
  %v1788 = vpop.f32.mrb[0].mxu0
  %1789 = vmatprep.mubr.f32.mxu0 0.0
  %1790 = vmatmul.mubr.f32.gmra.mrb[0].mxu0 %v1592
  %v1791 = vpop.f32.mrb[0].mxu0
  %v1792 = vadd.f32 0.0, %v1791
  %v1793 = vpop.f32.mrb[0].mxu0
  %1794 = vmatprep.mubr.f32.mxu0 0.0
  %1795 = vmatmul.mubr.f32.gmra.mrb[0].mxu0 %v1595
  %v1796 = vpop.f32.mrb[0].mxu0
  %v1797 = vadd.f32 0.0, %v1796
  %v1798 = vpop.f32.mrb[0].mxu0
  %1799 = vmatprep.mubr.f32.mxu0 0.0
  %1800 = vmatmul.mubr.f32.gmra.mrb[0].mxu0 %v1598
  %v1801 = vpop.f32.mrb[0].mxu0
  %v1802 = vadd.f32 0.0, %v1801
  %v1803 = vpop.f32.mrb[0].mxu0
  %1804 = vmatprep.mubr.f32.mxu0 0.0
  %1805 = vmatmul.mubr.f32.gmra.mrb[0].mxu0 %v1601
  %v1806 = vpop.f32.mrb[0].mxu0
  %v1807 = vadd.f32 0.0, %v1806
  %v1808 = vpop.f32.mrb[0].mxu0
  %1809 = vmatprep.mubr.f32.mxu0 0.0
  %1810 = vmatmul.mubr.f32.gmra.mrb[0].mxu0 %v1604
  %v1811 = vpop.f32.mrb[0].mxu0
  %v1812 = vadd.f32 0.0, %v1811
  %v1813 = vpop.f32.mrb[0].mxu0
  %1814 = vmatprep.mubr.f32.mxu0 0.0
  %1815 = vmatmul.mubr.f32.gmra.mrb[0].mxu0 %v1607
  %v1816 = vpop.f32.mrb[0].mxu0
  %v1817 = vadd.f32 0.0, %v1816
  %v1818 = vpop.f32.mrb[0].mxu0
  %1819 = vmatprep.mubr.f32.mxu0 0.0
  %1820 = vmatmul.mubr.f32.gmra.mrb[0].mxu0 %v1610
  %v1821 = vpop.f32.mrb[0].mxu0
  %v1822 = vadd.f32 0.0, %v1821
  %v1823 = vpop.f32.mrb[0].mxu0
  %1824 = vmatprep.mubr.f32.mxu0 0.0
  %1825 = vmatmul.mubr.f32.gmra.mrb[0].mxu0 %v1613
  %v1826 = vpop.f32.mrb[0].mxu0
  %v1827 = vadd.f32 0.0, %v1826
  %v1828 = vpop.f32.mrb[0].mxu0
  %1829 = vmatprep.mubr.f32.mxu0 0.0
  %1830 = vmatmul.mubr.f32.gmra.mrb[0].mxu0 %v1616
  %v1831 = vpop.f32.mrb[0].mxu0
  %v1832 = vadd.f32 0.0, %v1831
  %v1833 = vpop.f32.mrb[0].mxu0
  %1834 = vmatprep.mubr.f32.mxu0 0.0
  %1835 = vmatmul.mubr.f32.gmra.mrb[0].mxu0 %v1619
  %v1836 = vpop.f32.mrb[0].mxu0
  %v1837 = vadd.f32 0.0, %v1836
  %v1838 = vpop.f32.mrb[0].mxu0
  %1839 = vmatprep.mubr.f32.mxu0 0.0
  %1840 = vmatmul.mubr.f32.gmra.mrb[0].mxu0 %v1622
  %v1841 = vpop.f32.mrb[0].mxu0
  %v1842 = vadd.f32 0.0, %v1841
  %v1843 = vpop.f32.mrb[0].mxu0
  %1844 = vmatprep.mubr.f32.mxu0 0.0
  %1845 = vmatmul.mubr.f32.gmra.mrb[0].mxu0 %v1625
  %v1846 = vpop.f32.mrb[0].mxu0
  %v1847 = vadd.f32 0.0, %v1846
  %v1848 = vpop.f32.mrb[0].mxu0
  %1849 = vdwg.mxu0
  %v1850 = vadd.f32 %v1468, %v1697
  %v1851 = vadd.f32 %v1469, %v1702
  %v1852 = vadd.f32 %v1470, %v1707
  %v1853 = vadd.f32 %v1471, %v1712
  %v1854 = vadd.f32 %v1472, %v1717
  %v1855 = vadd.f32 %v1473, %v1722
  %v1856 = vadd.f32 %v1474, %v1727
  %v1857 = vadd.f32 %v1475, %v1732
  %v1858 = vadd.f32 %v1476, %v1737
  %v1859 = vadd.f32 %v1477, %v1742
  %v1860 = vadd.f32 %v1478, %v1747
  %v1861 = vadd.f32 %v1479, %v1752
  %v1862 = vadd.f32 %v1480, %v1757
  %v1863 = vadd.f32 %v1481, %v1762
  %v1864 = vadd.f32 %v1482, %v1767
  %v1865 = vadd.f32 %v1483, %v1772
  %v1866 = vadd.f32 %v1484, %v1777
  %v1867 = vadd.f32 %v1485, %v1782
  %v1868 = vadd.f32 %v1486, %v1787
  %v1869 = vadd.f32 %v1487, %v1792
  %v1870 = vadd.f32 %v1488, %v1797
  %v1871 = vadd.f32 %v1489, %v1802
  %v1872 = vadd.f32 %v1490, %v1807
  %v1873 = vadd.f32 %v1491, %v1812
  %v1874 = vadd.f32 %v1492, %v1817
  %v1875 = vadd.f32 %v1493, %v1822
  %v1876 = vadd.f32 %v1494, %v1827
  %v1877 = vadd.f32 %v1495, %v1832
  %v1878 = vadd.f32 %v1496, %v1837
  %v1879 = vadd.f32 %v1497, %v1842
  %v1880 = vadd.f32 %v1498, %v1847
  %v1881 = vld [vmem:[%s2] sm:$0x1]
  %v1883 = vlaneseq
  %v1884 = vshrl.u32 %v1883, 7
  %v1885 = vsub.s32 0, %v1884
  %v1886 = vrot.slane %v1881, %v1885
  %v1888 = vadd.f32 %v1850, %v1886
  %v1889 = vadd.f32 %v1851, %v1886
  %v1890 = vadd.f32 %v1852, %v1886
  %v1891 = vadd.f32 %v1853, %v1886
  %v1892 = vadd.f32 %v1854, %v1886
  %v1893 = vadd.f32 %v1855, %v1886
  %v1894 = vadd.f32 %v1856, %v1886
  %v1895 = vadd.f32 %v1857, %v1886
  %v1896 = vadd.f32 %v1858, %v1886
  %v1897 = vadd.f32 %v1859, %v1886
  %v1898 = vadd.f32 %v1860, %v1886
  %v1899 = vadd.f32 %v1861, %v1886
  %v1900 = vadd.f32 %v1862, %v1886
  %v1901 = vadd.f32 %v1863, %v1886
  %v1902 = vadd.f32 %v1864, %v1886
  %v1903 = vadd.f32 %v1865, %v1886
  %v1904 = vadd.f32 %v1866, %v1886
  %v1905 = vadd.f32 %v1867, %v1886
  %v1906 = vadd.f32 %v1868, %v1886
  %v1907 = vadd.f32 %v1869, %v1886
  %v1908 = vadd.f32 %v1870, %v1886
  %v1909 = vadd.f32 %v1871, %v1886
  %v1910 = vadd.f32 %v1872, %v1886
  %v1911 = vadd.f32 %v1873, %v1886
  %v1912 = vadd.f32 %v1874, %v1886
  %v1913 = vadd.f32 %v1875, %v1886
  %v1914 = vadd.f32 %v1876, %v1886
  %v1915 = vadd.f32 %v1877, %v1886
  %v1916 = vadd.f32 %v1878, %v1886
  %v1917 = vadd.f32 %v1879, %v1886
  %v1918 = vadd.f32 %v1880, %v1886
  %v1919 = vmax.f32 %v1888, 0.0
  %v1920 = vmax.f32 %v1889, 0.0
  %v1921 = vmax.f32 %v1890, 0.0
  %v1922 = vmax.f32 %v1891, 0.0
  %v1923 = vmax.f32 %v1892, 0.0
  %v1924 = vmax.f32 %v1893, 0.0
  %v1925 = vmax.f32 %v1894, 0.0
  %v1926 = vmax.f32 %v1895, 0.0
  %v1927 = vmax.f32 %v1896, 0.0
  %v1928 = vmax.f32 %v1897, 0.0
  %v1929 = vmax.f32 %v1898, 0.0
  %v1930 = vmax.f32 %v1899, 0.0
  %v1931 = vmax.f32 %v1900, 0.0
  %v1932 = vmax.f32 %v1901, 0.0
  %v1933 = vmax.f32 %v1902, 0.0
  %v1934 = vmax.f32 %v1903, 0.0
  %v1935 = vmax.f32 %v1904, 0.0
  %v1936 = vmax.f32 %v1905, 0.0
  %v1937 = vmax.f32 %v1906, 0.0
  %v1938 = vmax.f32 %v1907, 0.0
  %v1939 = vmax.f32 %v1908, 0.0
  %v1940 = vmax.f32 %v1909, 0.0
  %v1941 = vmax.f32 %v1910, 0.0
  %v1942 = vmax.f32 %v1911, 0.0
  %v1943 = vmax.f32 %v1912, 0.0
  %v1944 = vmax.f32 %v1913, 0.0
  %v1945 = vmax.f32 %v1914, 0.0
  %v1946 = vmax.f32 %v1915, 0.0
  %v1947 = vmax.f32 %v1916, 0.0
  %v1948 = vmax.f32 %v1917, 0.0
  %v1949 = vmax.f32 %v1918, 0.0
  %vm1950 = vcmask 64512
  %1951 = vst.msk [vmem:[#allocation2] sm:$0xff] %vm1950, %v1919
  %1952 = vst.msk [vmem:[#allocation2 + $0x8] sm:$0xff] %vm1950, %v1920
  %1953 = vst.msk [vmem:[#allocation2 + $0x10] sm:$0xff] %vm1950, %v1921
  %1954 = vst.msk [vmem:[#allocation2 + $0x18] sm:$0xff] %vm1950, %v1922
  %1955 = vst.msk [vmem:[#allocation2 + $0x20] sm:$0xff] %vm1950, %v1923
  %1956 = vst.msk [vmem:[#allocation2 + $0x28] sm:$0xff] %vm1950, %v1924
  %1957 = vst.msk [vmem:[#allocation2 + $0x30] sm:$0xff] %vm1950, %v1925
  %1958 = vst.msk [vmem:[#allocation2 + $0x38] sm:$0xff] %vm1950, %v1926
  %1959 = vst.msk [vmem:[#allocation2 + $0x40] sm:$0xff] %vm1950, %v1927
  %1960 = vst.msk [vmem:[#allocation2 + $0x48] sm:$0xff] %vm1950, %v1928
  %1961 = vst.msk [vmem:[#allocation2 + $0x50] sm:$0xff] %vm1950, %v1929
  %1962 = vst.msk [vmem:[#allocation2 + $0x58] sm:$0xff] %vm1950, %v1930
  %1963 = vst.msk [vmem:[#allocation2 + $0x60] sm:$0xff] %vm1950, %v1931
  %1964 = vst.msk [vmem:[#allocation2 + $0x68] sm:$0xff] %vm1950, %v1932
  %1965 = vst.msk [vmem:[#allocation2 + $0x70] sm:$0xff] %vm1950, %v1933
  %1966 = vst.msk [vmem:[#allocation2 + $0x78] sm:$0xff] %vm1950, %v1934
  %1967 = vst.msk [vmem:[#allocation2 + $0x80] sm:$0xff] %vm1950, %v1935
  %1968 = vst.msk [vmem:[#allocation2 + $0x88] sm:$0xff] %vm1950, %v1936
  %1969 = vst.msk [vmem:[#allocation2 + $0x90] sm:$0xff] %vm1950, %v1937
  %1970 = vst.msk [vmem:[#allocation2 + $0x98] sm:$0xff] %vm1950, %v1938
  %1971 = vst.msk [vmem:[#allocation2 + $0xa0] sm:$0xff] %vm1950, %v1939
  %1972 = vst.msk [vmem:[#allocation2 + $0xa8] sm:$0xff] %vm1950, %v1940
  %1973 = vst.msk [vmem:[#allocation2 + $0xb0] sm:$0xff] %vm1950, %v1941
  %1974 = vst.msk [vmem:[#allocation2 + $0xb8] sm:$0xff] %vm1950, %v1942
  %1975 = vst.msk [vmem:[#allocation2 + $0xc0] sm:$0xff] %vm1950, %v1943
  %1976 = vst.msk [vmem:[#allocation2 + $0xc8] sm:$0xff] %vm1950, %v1944
  %1977 = vst.msk [vmem:[#allocation2 + $0xd0] sm:$0xff] %vm1950, %v1945
  %1978 = vst.msk [vmem:[#allocation2 + $0xd8] sm:$0xff] %vm1950, %v1946
  %1979 = vst.msk [vmem:[#allocation2 + $0xe0] sm:$0xff] %vm1950, %v1947
  %1980 = vst.msk [vmem:[#allocation2 + $0xe8] sm:$0xff] %vm1950, %v1948
  %1981 = vst.msk [vmem:[#allocation2 + $0xf0] sm:$0xff] %vm1950, %v1949
  %1982 = vst.msk [vmem:[#allocation2 + $0xf8] sm:$0xff] %vm1950, 0.0
  %1983 = vst.msk [vmem:[#allocation2 + $0x100] sm:$0xff] %vm1950, 0.0
  %s1984 = scalar_lea.vmem [#allocation2], 2
  %v1985 = vld [vmem:[%s1984] ss:$2 sm:$0xff]
  %s1986 = scalar_lea.vmem [#allocation2], 18
  %v1987 = vld [vmem:[%s1986] ss:$2 sm:$0xff]
  %s1988 = scalar_lea.vmem [#allocation2], 34
  %v1989 = vld [vmem:[%s1988] ss:$2 sm:$0xff]
  %s1990 = scalar_lea.vmem [#allocation2], 50
  %v1991 = vld [vmem:[%s1990] ss:$2 sm:$0xff]
  %s1992 = scalar_lea.vmem [#allocation2], 66
  %v1993 = vld [vmem:[%s1992] ss:$2 sm:$0xff]
  %s1994 = scalar_lea.vmem [#allocation2], 82
  %v1995 = vld [vmem:[%s1994] ss:$2 sm:$0xff]
  %s1996 = scalar_lea.vmem [#allocation2], 98
  %v1997 = vld [vmem:[%s1996] ss:$2 sm:$0xff]
  %s1998 = scalar_lea.vmem [#allocation2], 114
  %v1999 = vld [vmem:[%s1998] ss:$2 sm:$0xff]
  %s2000 = scalar_lea.vmem [#allocation2], 130
  %v2001 = vld [vmem:[%s2000] ss:$2 sm:$0xff]
  %s2002 = scalar_lea.vmem [#allocation2], 146
  %v2003 = vld [vmem:[%s2002] ss:$2 sm:$0xff]
  %s2004 = scalar_lea.vmem [#allocation2], 162
  %v2005 = vld [vmem:[%s2004] ss:$2 sm:$0xff]
  %s2006 = scalar_lea.vmem [#allocation2], 178
  %v2007 = vld [vmem:[%s2006] ss:$2 sm:$0xff]
  %s2008 = scalar_lea.vmem [#allocation2], 194
  %v2009 = vld [vmem:[%s2008] ss:$2 sm:$0xff]
  %s2010 = scalar_lea.vmem [#allocation2], 210
  %v2011 = vld [vmem:[%s2010] ss:$2 sm:$0xff]
  %s2012 = scalar_lea.vmem [#allocation2], 226
  %v2013 = vld [vmem:[%s2012] ss:$2 sm:$0xff]
  %s2014 = scalar_lea.vmem [#allocation2], 242
  %v2015 = vld [vmem:[%s2014] ss:$2 sm:$0xff]
  %s2016 = scalar_lea.vmem [#allocation2], 3
  %v2017 = vld [vmem:[%s2016] ss:$2 sm:$0xff]
  %s2018 = scalar_lea.vmem [#allocation2], 19
  %v2019 = vld [vmem:[%s2018] ss:$2 sm:$0xff]
  %s2020 = scalar_lea.vmem [#allocation2], 35
  %v2021 = vld [vmem:[%s2020] ss:$2 sm:$0xff]
  %s2022 = scalar_lea.vmem [#allocation2], 51
  %v2023 = vld [vmem:[%s2022] ss:$2 sm:$0xff]
  %s2024 = scalar_lea.vmem [#allocation2], 67
  %v2025 = vld [vmem:[%s2024] ss:$2 sm:$0xff]
  %s2026 = scalar_lea.vmem [#allocation2], 83
  %v2027 = vld [vmem:[%s2026] ss:$2 sm:$0xff]
  %s2028 = scalar_lea.vmem [#allocation2], 99
  %v2029 = vld [vmem:[%s2028] ss:$2 sm:$0xff]
  %s2030 = scalar_lea.vmem [#allocation2], 115
  %v2031 = vld [vmem:[%s2030] ss:$2 sm:$0xff]
  %s2032 = scalar_lea.vmem [#allocation2], 131
  %v2033 = vld [vmem:[%s2032] ss:$2 sm:$0xff]
  %s2034 = scalar_lea.vmem [#allocation2], 147
  %v2035 = vld [vmem:[%s2034] ss:$2 sm:$0xff]
  %s2036 = scalar_lea.vmem [#allocation2], 163
  %v2037 = vld [vmem:[%s2036] ss:$2 sm:$0xff]
  %s2038 = scalar_lea.vmem [#allocation2], 179
  %v2039 = vld [vmem:[%s2038] ss:$2 sm:$0xff]
  %s2040 = scalar_lea.vmem [#allocation2], 195
  %v2041 = vld [vmem:[%s2040] ss:$2 sm:$0xff]
  %s2042 = scalar_lea.vmem [#allocation2], 211
  %v2043 = vld [vmem:[%s2042] ss:$2 sm:$0xff]
  %s2044 = scalar_lea.vmem [#allocation2], 227
  %v2045 = vld [vmem:[%s2044] ss:$2 sm:$0xff]
  %s2046 = scalar_lea.vmem [#allocation2], 243
  %v2047 = vld [vmem:[%s2046] ss:$2 sm:$0xff]
  %v2048 = vmax.f32 %v1985, %v2017
  %v2049 = vmax.f32 %v1987, %v2019
  %v2050 = vmax.f32 %v1989, %v2021
  %v2051 = vmax.f32 %v1991, %v2023
  %v2052 = vmax.f32 %v1993, %v2025
  %v2053 = vmax.f32 %v1995, %v2027
  %v2054 = vmax.f32 %v1997, %v2029
  %v2055 = vmax.f32 %v1999, %v2031
  %v2056 = vmax.f32 %v2001, %v2033
  %v2057 = vmax.f32 %v2003, %v2035
  %v2058 = vmax.f32 %v2005, %v2037
  %v2059 = vmax.f32 %v2007, %v2039
  %v2060 = vmax.f32 %v2009, %v2041
  %v2061 = vmax.f32 %v2011, %v2043
  %v2062 = vmax.f32 %v2013, %v2045
  %v2063 = vmax.f32 %v2015, %v2047
  %v2064 = vlaneseq
  %v2065 = vshrl.u32 %v2064, 7
  %v2066 = vadd.s32 %v2065, 8
  %v2067 = vadd.s32 %v2065, 16
  %v2068 = vadd.s32 %v2065, 24
  %v2069 = vadd.s32 %v2065, 32
  %v2070 = vadd.s32 %v2065, 40
  %v2071 = vadd.s32 %v2065, 48
  %v2072 = vadd.s32 %v2065, 56
  %v2073 = vadd.s32 %v2065, 64
  %v2074 = vadd.s32 %v2065, 72
  %v2075 = vadd.s32 %v2065, 80
  %v2076 = vadd.s32 %v2065, 88
  %v2077 = vadd.s32 %v2065, 96
  %v2078 = vadd.s32 %v2065, 104
  %v2079 = vadd.s32 %v2065, 112
  %v2080 = vadd.s32 %v2065, 120
  %v2081 = vand.u32 %v2065, 15
  %v2082 = vand.u32 %v2066, 15
  %v2083 = vand.u32 %v2067, 15
  %v2084 = vand.u32 %v2068, 15
  %v2085 = vand.u32 %v2069, 15
  %v2086 = vand.u32 %v2070, 15
  %v2087 = vand.u32 %v2071, 15
  %v2088 = vand.u32 %v2072, 15
  %v2089 = vand.u32 %v2073, 15
  %v2090 = vand.u32 %v2074, 15
  %v2091 = vand.u32 %v2075, 15
  %v2092 = vand.u32 %v2076, 15
  %v2093 = vand.u32 %v2077, 15
  %v2094 = vand.u32 %v2078, 15
  %v2095 = vand.u32 %v2079, 15
  %v2096 = vand.u32 %v2080, 15
  %vm2097 = vcmp.lt.s32.totalorder %v2081, 10
  %vm2098 = vcmp.lt.s32.totalorder %v2082, 10
  %vm2099 = vcmp.lt.s32.totalorder %v2083, 10
  %vm2100 = vcmp.lt.s32.totalorder %v2084, 10
  %vm2101 = vcmp.lt.s32.totalorder %v2085, 10
  %vm2102 = vcmp.lt.s32.totalorder %v2086, 10
  %vm2103 = vcmp.lt.s32.totalorder %v2087, 10
  %vm2104 = vcmp.lt.s32.totalorder %v2088, 10
  %vm2105 = vcmp.lt.s32.totalorder %v2089, 10
  %vm2106 = vcmp.lt.s32.totalorder %v2090, 10
  %vm2107 = vcmp.lt.s32.totalorder %v2091, 10
  %vm2108 = vcmp.lt.s32.totalorder %v2092, 10
  %vm2109 = vcmp.lt.s32.totalorder %v2093, 10
  %vm2110 = vcmp.lt.s32.totalorder %v2094, 10
  %vm2111 = vcmp.lt.s32.totalorder %v2095, 10
  %vm2112 = vcmp.lt.s32.totalorder %v2096, 10
  %v2113 = vsel %vm2097, %v2048, 0.0
  %v2114 = vsel %vm2098, %v2049, 0.0
  %v2115 = vsel %vm2099, %v2050, 0.0
  %v2116 = vsel %vm2100, %v2051, 0.0
  %v2117 = vsel %vm2101, %v2052, 0.0
  %v2118 = vsel %vm2102, %v2053, 0.0
  %v2119 = vsel %vm2103, %v2054, 0.0
  %v2120 = vsel %vm2104, %v2055, 0.0
  %v2121 = vsel %vm2105, %v2056, 0.0
  %v2122 = vsel %vm2106, %v2057, 0.0
  %v2123 = vsel %vm2107, %v2058, 0.0
  %v2124 = vsel %vm2108, %v2059, 0.0
  %v2125 = vsel %vm2109, %v2060, 0.0
  %v2126 = vsel %vm2110, %v2061, 0.0
  %v2127 = vsel %vm2111, %v2062, 0.0
  %v2128 = vsel %vm2112, %v2063, 0.0
  %2129 = vst.msk [vmem:[#allocation3] sm:$0xff] %vm1950, 0.0
  %2130 = vst.msk [vmem:[#allocation3 + $0x8] sm:$0xff] %vm1950, %v2113
  %2131 = vst.msk [vmem:[#allocation3 + $0x10] sm:$0xff] %vm1950, %v2114
  %2132 = vst.msk [vmem:[#allocation3 + $0x18] sm:$0xff] %vm1950, %v2115
  %2133 = vst.msk [vmem:[#allocation3 + $0x20] sm:$0xff] %vm1950, %v2116
  %2134 = vst.msk [vmem:[#allocation3 + $0x28] sm:$0xff] %vm1950, %v2117
  %2135 = vst.msk [vmem:[#allocation3 + $0x30] sm:$0xff] %vm1950, %v2118
  %2136 = vst.msk [vmem:[#allocation3 + $0x38] sm:$0xff] %vm1950, %v2119
  %2137 = vst.msk [vmem:[#allocation3 + $0x40] sm:$0xff] %vm1950, %v2120
  %2138 = vst.msk [vmem:[#allocation3 + $0x48] sm:$0xff] %vm1950, %v2121
  %2139 = vst.msk [vmem:[#allocation3 + $0x50] sm:$0xff] %vm1950, %v2122
  %2140 = vst.msk [vmem:[#allocation3 + $0x58] sm:$0xff] %vm1950, %v2123
  %2141 = vst.msk [vmem:[#allocation3 + $0x60] sm:$0xff] %vm1950, %v2124
  %2142 = vst.msk [vmem:[#allocation3 + $0x68] sm:$0xff] %vm1950, %v2125
  %2143 = vst.msk [vmem:[#allocation3 + $0x70] sm:$0xff] %vm1950, %v2126
  %2144 = vst.msk [vmem:[#allocation3 + $0x78] sm:$0xff] %vm1950, %v2127
  %2145 = vst.msk [vmem:[#allocation3 + $0x80] sm:$0xff] %vm1950, %v2128
  %v2146 = vld [vmem:[#allocation3] sm:$0xff]
  %v2147 = vld [vmem:[#allocation3 + $0x8] sm:$0xff]
  %v2148 = vld [vmem:[#allocation3 + $0x10] sm:$0xff]
  %v2149 = vld [vmem:[#allocation3 + $0x18] sm:$0xff]
  %v2150 = vld [vmem:[#allocation3 + $0x20] sm:$0xff]
  %v2151 = vld [vmem:[#allocation3 + $0x28] sm:$0xff]
  %v2152 = vld [vmem:[#allocation3 + $0x30] sm:$0xff]
  %v2153 = vld [vmem:[#allocation3 + $0x38] sm:$0xff]
  %v2154 = vld [vmem:[#allocation3 + $0x40] sm:$0xff]
  %v2155 = vld [vmem:[#allocation3 + $0x48] sm:$0xff]
  %v2156 = vld [vmem:[#allocation3 + $0x50] sm:$0xff]
  %v2157 = vld [vmem:[#allocation3 + $0x58] sm:$0xff]
  %v2158 = vld [vmem:[#allocation3 + $0x60] sm:$0xff]
  %v2159 = vld [vmem:[#allocation3 + $0x68] sm:$0xff]
  %v2160 = vld [vmem:[#allocation3 + $0x70] sm:$0xff]
  %v2161 = vld [vmem:[#allocation3 + $0x78] sm:$0xff]
  %v2162 = vld [vmem:[%s3] sm:$0xff]
  %v2163 = vld [vmem:[#allocation3 + $0x1] sm:$0xff]
  %v2164 = vld [vmem:[#allocation3 + $0x9] sm:$0xff]
  %v2165 = vld [vmem:[#allocation3 + $0x11] sm:$0xff]
  %v2166 = vld [vmem:[#allocation3 + $0x19] sm:$0xff]
  %v2167 = vld [vmem:[#allocation3 + $0x21] sm:$0xff]
  %v2168 = vld [vmem:[#allocation3 + $0x29] sm:$0xff]
  %v2169 = vld [vmem:[#allocation3 + $0x31] sm:$0xff]
  %v2170 = vld [vmem:[#allocation3 + $0x39] sm:$0xff]
  %v2171 = vld [vmem:[#allocation3 + $0x41] sm:$0xff]
  %v2172 = vld [vmem:[#allocation3 + $0x49] sm:$0xff]
  %v2173 = vld [vmem:[#allocation3 + $0x51] sm:$0xff]
  %v2174 = vld [vmem:[#allocation3 + $0x59] sm:$0xff]
  %v2175 = vld [vmem:[#allocation3 + $0x61] sm:$0xff]
  %v2176 = vld [vmem:[#allocation3 + $0x69] sm:$0xff]
  %v2177 = vld [vmem:[#allocation3 + $0x71] sm:$0xff]
  %v2178 = vld [vmem:[#allocation3 + $0x79] sm:$0xff]
  %s2179 = scalar_lea.vmem %s3, 8
  %v2180 = vld [vmem:[%s2179] sm:$0xff]
  %v2182 = vsel %vm1950, %v2163, 0
  %v2185 = vsel %vm1950, %v2164, 0
  %v2188 = vsel %vm1950, %v2165, 0
  %v2191 = vsel %vm1950, %v2166, 0
  %v2194 = vsel %vm1950, %v2167, 0
  %v2197 = vsel %vm1950, %v2168, 0
  %v2200 = vsel %vm1950, %v2169, 0
  %v2203 = vsel %vm1950, %v2170, 0
  %v2206 = vsel %vm1950, %v2171, 0
  %v2209 = vsel %vm1950, %v2172, 0
  %v2212 = vsel %vm1950, %v2173, 0
  %v2215 = vsel %vm1950, %v2174, 0
  %v2218 = vsel %vm1950, %v2175, 0
  %v2221 = vsel %vm1950, %v2176, 0
  %v2224 = vsel %vm1950, %v2177, 0
  %v2227 = vsel %vm1950, %v2178, 0
  %2229 = vmatprep.subr.mxu0 0.0
  %2230 = vmatpush1.msra.mxu0 %v2180
  %2231 = vmatprep.subr.mxu0 0.0
  %2232 = vmatpush1.msra.mxu0 0.0
  %2233 = vmatprep.subr.mxu0 0.0
  %2234 = vmatpush1.msra.mxu0 0.0
  %2235 = vmatprep.subr.mxu0 0.0
  %2236 = vmatpush1.msra.mxu0 0.0
  %2237 = vmatprep.subr.mxu0 0.0
  %2238 = vmatpush1.msra.mxu0 0.0
  %2239 = vmatprep.subr.mxu0 0.0
  %2240 = vmatpush1.msra.mxu0 0.0
  %2241 = vmatprep.subr.mxu0 0.0
  %2242 = vmatpush1.msra.mxu0 0.0
  %2243 = vmatprep.subr.mxu0 0.0
  %2244 = vmatpush1.msra.mxu0 0.0
  %2245 = vmatprep.subr.mxu0 0.0
  %2246 = vmatpush1.msra.mxu0 0.0
  %2247 = vmatprep.subr.mxu0 0.0
  %2248 = vmatpush1.msra.mxu0 0.0
  %2249 = vmatprep.subr.mxu0 0.0
  %2250 = vmatpush1.msra.mxu0 0.0
  %2251 = vmatprep.subr.mxu0 0.0
  %2252 = vmatpush1.msra.mxu0 0.0
  %2253 = vmatprep.subr.mxu0 0.0
  %2254 = vmatpush1.msra.mxu0 0.0
  %2255 = vmatprep.subr.mxu0 0.0
  %2256 = vmatpush1.msra.mxu0 0.0
  %2257 = vmatprep.subr.mxu0 0.0
  %2258 = vmatpush1.msra.mxu0 0.0
  %2259 = vmatprep.subr.mxu0 0.0
  %2260 = vmatpush1.msra.mxu0 0.0
  %2261 = vmatprep.subr.mxu0 0.0
  %2262 = vmatpush1.msra.mxu0 0.0
  %2263 = vmatprep.subr.mxu0 0.0
  %2264 = vmatpush1.msra.mxu0 0.0
  %2265 = vmatprep.subr.mxu0 0.0
  %2266 = vmatpush1.msra.mxu0 0.0
  %2267 = vmatprep.subr.mxu0 0.0
  %2268 = vmatpush1.msra.mxu0 0.0
  %2269 = vmatprep.subr.mxu0 0.0
  %2270 = vmatpush1.msra.mxu0 0.0
  %2271 = vmatprep.subr.mxu0 0.0
  %2272 = vmatpush1.msra.mxu0 0.0
  %2273 = vmatprep.subr.mxu0 0.0
  %2274 = vmatpush1.msra.mxu0 0.0
  %2275 = vmatprep.subr.mxu0 0.0
  %2276 = vmatpush1.msra.mxu0 0.0
  %2277 = vmatprep.subr.mxu0 0.0
  %2278 = vmatpush1.msra.mxu0 0.0
  %2279 = vmatprep.subr.mxu0 0.0
  %2280 = vmatpush1.msra.mxu0 0.0
  %2281 = vmatprep.subr.mxu0 0.0
  %2282 = vmatpush1.msra.mxu0 0.0
  %2283 = vmatprep.subr.mxu0 0.0
  %2284 = vmatpush1.msra.mxu0 0.0
  %2285 = vmatprep.subr.mxu0 0.0
  %2286 = vmatpush1.msra.mxu0 0.0
  %2287 = vmatprep.subr.mxu0 0.0
  %2288 = vmatpush1.msra.mxu0 0.0
  %2289 = vmatprep.subr.mxu0 0.0
  %2290 = vmatpush1.msra.mxu0 0.0
  %2291 = vmatprep.subr.mxu0 0.0
  %2292 = vmatpush1.msra.mxu0 0.0
  %2293 = vmatprep.mubr.f32.mxu0 0.0
  %2294 = vmatmul.mubr.f32.gmra.mrb[0].mxu0 %v2182
  %v2295 = vpop.f32.mrb[0].mxu0
  %v2296 = vadd.f32 0.0, %v2295
  %v2297 = vpop.f32.mrb[0].mxu0
  %2298 = vmatprep.mubr.f32.mxu0 0.0
  %2299 = vmatmul.mubr.f32.gmra.mrb[0].mxu0 %v2185
  %v2300 = vpop.f32.mrb[0].mxu0
  %v2301 = vadd.f32 0.0, %v2300
  %v2302 = vpop.f32.mrb[0].mxu0
  %2303 = vmatprep.mubr.f32.mxu0 0.0
  %2304 = vmatmul.mubr.f32.gmra.mrb[0].mxu0 %v2188
  %v2305 = vpop.f32.mrb[0].mxu0
  %v2306 = vadd.f32 0.0, %v2305
  %v2307 = vpop.f32.mrb[0].mxu0
  %2308 = vmatprep.mubr.f32.mxu0 0.0
  %2309 = vmatmul.mubr.f32.gmra.mrb[0].mxu0 %v2191
  %v2310 = vpop.f32.mrb[0].mxu0
  %v2311 = vadd.f32 0.0, %v2310
  %v2312 = vpop.f32.mrb[0].mxu0
  %2313 = vmatprep.mubr.f32.mxu0 0.0
  %2314 = vmatmul.mubr.f32.gmra.mrb[0].mxu0 %v2194
  %v2315 = vpop.f32.mrb[0].mxu0
  %v2316 = vadd.f32 0.0, %v2315
  %v2317 = vpop.f32.mrb[0].mxu0
  %2318 = vmatprep.mubr.f32.mxu0 0.0
  %2319 = vmatmul.mubr.f32.gmra.mrb[0].mxu0 %v2197
  %v2320 = vpop.f32.mrb[0].mxu0
  %v2321 = vadd.f32 0.0, %v2320
  %v2322 = vpop.f32.mrb[0].mxu0
  %2323 = vmatprep.mubr.f32.mxu0 0.0
  %2324 = vmatmul.mubr.f32.gmra.mrb[0].mxu0 %v2200
  %v2325 = vpop.f32.mrb[0].mxu0
  %v2326 = vadd.f32 0.0, %v2325
  %v2327 = vpop.f32.mrb[0].mxu0
  %2328 = vmatprep.mubr.f32.mxu0 0.0
  %2329 = vmatmul.mubr.f32.gmra.mrb[0].mxu0 %v2203
  %v2330 = vpop.f32.mrb[0].mxu0
  %v2331 = vadd.f32 0.0, %v2330
  %v2332 = vpop.f32.mrb[0].mxu0
  %2333 = vmatprep.mubr.f32.mxu0 0.0
  %2334 = vmatmul.mubr.f32.gmra.mrb[0].mxu0 %v2206
  %v2335 = vpop.f32.mrb[0].mxu0
  %v2336 = vadd.f32 0.0, %v2335
  %v2337 = vpop.f32.mrb[0].mxu0
  %2338 = vmatprep.mubr.f32.mxu0 0.0
  %2339 = vmatmul.mubr.f32.gmra.mrb[0].mxu0 %v2209
  %v2340 = vpop.f32.mrb[0].mxu0
  %v2341 = vadd.f32 0.0, %v2340
  %v2342 = vpop.f32.mrb[0].mxu0
  %2343 = vmatprep.mubr.f32.mxu0 0.0
  %2344 = vmatmul.mubr.f32.gmra.mrb[0].mxu0 %v2212
  %v2345 = vpop.f32.mrb[0].mxu0
  %v2346 = vadd.f32 0.0, %v2345
  %v2347 = vpop.f32.mrb[0].mxu0
  %2348 = vmatprep.mubr.f32.mxu0 0.0
  %2349 = vmatmul.mubr.f32.gmra.mrb[0].mxu0 %v2215
  %v2350 = vpop.f32.mrb[0].mxu0
  %v2351 = vadd.f32 0.0, %v2350
  %v2352 = vpop.f32.mrb[0].mxu0
  %2353 = vmatprep.mubr.f32.mxu0 0.0
  %2354 = vmatmul.mubr.f32.gmra.mrb[0].mxu0 %v2218
  %v2355 = vpop.f32.mrb[0].mxu0
  %v2356 = vadd.f32 0.0, %v2355
  %v2357 = vpop.f32.mrb[0].mxu0
  %2358 = vmatprep.mubr.f32.mxu0 0.0
  %2359 = vmatmul.mubr.f32.gmra.mrb[0].mxu0 %v2221
  %v2360 = vpop.f32.mrb[0].mxu0
  %v2361 = vadd.f32 0.0, %v2360
  %v2362 = vpop.f32.mrb[0].mxu0
  %2363 = vmatprep.mubr.f32.mxu0 0.0
  %2364 = vmatmul.mubr.f32.gmra.mrb[0].mxu0 %v2224
  %v2365 = vpop.f32.mrb[0].mxu0
  %v2366 = vadd.f32 0.0, %v2365
  %v2367 = vpop.f32.mrb[0].mxu0
  %2368 = vmatprep.mubr.f32.mxu0 0.0
  %2369 = vmatmul.mubr.f32.gmra.mrb[0].mxu0 %v2227
  %v2370 = vpop.f32.mrb[0].mxu0
  %v2371 = vadd.f32 0.0, %v2370
  %v2372 = vpop.f32.mrb[0].mxu0
  %2373 = vdwg.mxu0
  %v2375 = vsel %vm1950, %v2146, 0
  %v2378 = vsel %vm1950, %v2147, 0
  %v2381 = vsel %vm1950, %v2148, 0
  %v2384 = vsel %vm1950, %v2149, 0
  %v2387 = vsel %vm1950, %v2150, 0
  %v2390 = vsel %vm1950, %v2151, 0
  %v2393 = vsel %vm1950, %v2152, 0
  %v2396 = vsel %vm1950, %v2153, 0
  %v2399 = vsel %vm1950, %v2154, 0
  %v2402 = vsel %vm1950, %v2155, 0
  %v2405 = vsel %vm1950, %v2156, 0
  %v2408 = vsel %vm1950, %v2157, 0
  %v2411 = vsel %vm1950, %v2158, 0
  %v2414 = vsel %vm1950, %v2159, 0
  %v2417 = vsel %vm1950, %v2160, 0
  %v2420 = vsel %vm1950, %v2161, 0
  %2422 = vmatprep.subr.mxu0 0.0
  %2423 = vmatpush1.msra.mxu0 %v2162
  %2424 = vmatprep.subr.mxu0 0.0
  %2425 = vmatpush1.msra.mxu0 0.0
  %2426 = vmatprep.subr.mxu0 0.0
  %2427 = vmatpush1.msra.mxu0 0.0
  %2428 = vmatprep.subr.mxu0 0.0
  %2429 = vmatpush1.msra.mxu0 0.0
  %2430 = vmatprep.subr.mxu0 0.0
  %2431 = vmatpush1.msra.mxu0 0.0
  %2432 = vmatprep.subr.mxu0 0.0
  %2433 = vmatpush1.msra.mxu0 0.0
  %2434 = vmatprep.subr.mxu0 0.0
  %2435 = vmatpush1.msra.mxu0 0.0
  %2436 = vmatprep.subr.mxu0 0.0
  %2437 = vmatpush1.msra.mxu0 0.0
  %2438 = vmatprep.subr.mxu0 0.0
  %2439 = vmatpush1.msra.mxu0 0.0
  %2440 = vmatprep.subr.mxu0 0.0
  %2441 = vmatpush1.msra.mxu0 0.0
  %2442 = vmatprep.subr.mxu0 0.0
  %2443 = vmatpush1.msra.mxu0 0.0
  %2444 = vmatprep.subr.mxu0 0.0
  %2445 = vmatpush1.msra.mxu0 0.0
  %2446 = vmatprep.subr.mxu0 0.0
  %2447 = vmatpush1.msra.mxu0 0.0
  %2448 = vmatprep.subr.mxu0 0.0
  %2449 = vmatpush1.msra.mxu0 0.0
  %2450 = vmatprep.subr.mxu0 0.0
  %2451 = vmatpush1.msra.mxu0 0.0
  %2452 = vmatprep.subr.mxu0 0.0
  %2453 = vmatpush1.msra.mxu0 0.0
  %2454 = vmatprep.subr.mxu0 0.0
  %2455 = vmatpush1.msra.mxu0 0.0
  %2456 = vmatprep.subr.mxu0 0.0
  %2457 = vmatpush1.msra.mxu0 0.0
  %2458 = vmatprep.subr.mxu0 0.0
  %2459 = vmatpush1.msra.mxu0 0.0
  %2460 = vmatprep.subr.mxu0 0.0
  %2461 = vmatpush1.msra.mxu0 0.0
  %2462 = vmatprep.subr.mxu0 0.0
  %2463 = vmatpush1.msra.mxu0 0.0
  %2464 = vmatprep.subr.mxu0 0.0
  %2465 = vmatpush1.msra.mxu0 0.0
  %2466 = vmatprep.subr.mxu0 0.0
  %2467 = vmatpush1.msra.mxu0 0.0
  %2468 = vmatprep.subr.mxu0 0.0
  %2469 = vmatpush1.msra.mxu0 0.0
  %2470 = vmatprep.subr.mxu0 0.0
  %2471 = vmatpush1.msra.mxu0 0.0
  %2472 = vmatprep.subr.mxu0 0.0
  %2473 = vmatpush1.msra.mxu0 0.0
  %2474 = vmatprep.subr.mxu0 0.0
  %2475 = vmatpush1.msra.mxu0 0.0
  %2476 = vmatprep.subr.mxu0 0.0
  %2477 = vmatpush1.msra.mxu0 0.0
  %2478 = vmatprep.subr.mxu0 0.0
  %2479 = vmatpush1.msra.mxu0 0.0
  %2480 = vmatprep.subr.mxu0 0.0
  %2481 = vmatpush1.msra.mxu0 0.0
  %2482 = vmatprep.subr.mxu0 0.0
  %2483 = vmatpush1.msra.mxu0 0.0
  %2484 = vmatprep.subr.mxu0 0.0
  %2485 = vmatpush1.msra.mxu0 0.0
  %2486 = vmatprep.mubr.f32.mxu0 0.0
  %2487 = vmatmul.mubr.f32.gmra.mrb[0].mxu0 %v2375
  %v2488 = vpop.f32.mrb[0].mxu0
  %v2489 = vadd.f32 %v2296, %v2488
  %v2490 = vpop.f32.mrb[0].mxu0
  %2491 = vmatprep.mubr.f32.mxu0 0.0
  %2492 = vmatmul.mubr.f32.gmra.mrb[0].mxu0 %v2378
  %v2493 = vpop.f32.mrb[0].mxu0
  %v2494 = vadd.f32 %v2301, %v2493
  %v2495 = vpop.f32.mrb[0].mxu0
  %2496 = vmatprep.mubr.f32.mxu0 0.0
  %2497 = vmatmul.mubr.f32.gmra.mrb[0].mxu0 %v2381
  %v2498 = vpop.f32.mrb[0].mxu0
  %v2499 = vadd.f32 %v2306, %v2498
  %v2500 = vpop.f32.mrb[0].mxu0
  %2501 = vmatprep.mubr.f32.mxu0 0.0
  %2502 = vmatmul.mubr.f32.gmra.mrb[0].mxu0 %v2384
  %v2503 = vpop.f32.mrb[0].mxu0
  %v2504 = vadd.f32 %v2311, %v2503
  %v2505 = vpop.f32.mrb[0].mxu0
  %2506 = vmatprep.mubr.f32.mxu0 0.0
  %2507 = vmatmul.mubr.f32.gmra.mrb[0].mxu0 %v2387
  %v2508 = vpop.f32.mrb[0].mxu0
  %v2509 = vadd.f32 %v2316, %v2508
  %v2510 = vpop.f32.mrb[0].mxu0
  %2511 = vmatprep.mubr.f32.mxu0 0.0
  %2512 = vmatmul.mubr.f32.gmra.mrb[0].mxu0 %v2390
  %v2513 = vpop.f32.mrb[0].mxu0
  %v2514 = vadd.f32 %v2321, %v2513
  %v2515 = vpop.f32.mrb[0].mxu0
  %2516 = vmatprep.mubr.f32.mxu0 0.0
  %2517 = vmatmul.mubr.f32.gmra.mrb[0].mxu0 %v2393
  %v2518 = vpop.f32.mrb[0].mxu0
  %v2519 = vadd.f32 %v2326, %v2518
  %v2520 = vpop.f32.mrb[0].mxu0
  %2521 = vmatprep.mubr.f32.mxu0 0.0
  %2522 = vmatmul.mubr.f32.gmra.mrb[0].mxu0 %v2396
  %v2523 = vpop.f32.mrb[0].mxu0
  %v2524 = vadd.f32 %v2331, %v2523
  %v2525 = vpop.f32.mrb[0].mxu0
  %2526 = vmatprep.mubr.f32.mxu0 0.0
  %2527 = vmatmul.mubr.f32.gmra.mrb[0].mxu0 %v2399
  %v2528 = vpop.f32.mrb[0].mxu0
  %v2529 = vadd.f32 %v2336, %v2528
  %v2530 = vpop.f32.mrb[0].mxu0
  %2531 = vmatprep.mubr.f32.mxu0 0.0
  %2532 = vmatmul.mubr.f32.gmra.mrb[0].mxu0 %v2402
  %v2533 = vpop.f32.mrb[0].mxu0
  %v2534 = vadd.f32 %v2341, %v2533
  %v2535 = vpop.f32.mrb[0].mxu0
  %2536 = vmatprep.mubr.f32.mxu0 0.0
  %2537 = vmatmul.mubr.f32.gmra.mrb[0].mxu0 %v2405
  %v2538 = vpop.f32.mrb[0].mxu0
  %v2539 = vadd.f32 %v2346, %v2538
  %v2540 = vpop.f32.mrb[0].mxu0
  %2541 = vmatprep.mubr.f32.mxu0 0.0
  %2542 = vmatmul.mubr.f32.gmra.mrb[0].mxu0 %v2408
  %v2543 = vpop.f32.mrb[0].mxu0
  %v2544 = vadd.f32 %v2351, %v2543
  %v2545 = vpop.f32.mrb[0].mxu0
  %2546 = vmatprep.mubr.f32.mxu0 0.0
  %2547 = vmatmul.mubr.f32.gmra.mrb[0].mxu0 %v2411
  %v2548 = vpop.f32.mrb[0].mxu0
  %v2549 = vadd.f32 %v2356, %v2548
  %v2550 = vpop.f32.mrb[0].mxu0
  %2551 = vmatprep.mubr.f32.mxu0 0.0
  %2552 = vmatmul.mubr.f32.gmra.mrb[0].mxu0 %v2414
  %v2553 = vpop.f32.mrb[0].mxu0
  %v2554 = vadd.f32 %v2361, %v2553
  %v2555 = vpop.f32.mrb[0].mxu0
  %2556 = vmatprep.mubr.f32.mxu0 0.0
  %2557 = vmatmul.mubr.f32.gmra.mrb[0].mxu0 %v2417
  %v2558 = vpop.f32.mrb[0].mxu0
  %v2559 = vadd.f32 %v2366, %v2558
  %v2560 = vpop.f32.mrb[0].mxu0
  %2561 = vmatprep.mubr.f32.mxu0 0.0
  %2562 = vmatmul.mubr.f32.gmra.mrb[0].mxu0 %v2420
  %v2563 = vpop.f32.mrb[0].mxu0
  %v2564 = vadd.f32 %v2371, %v2563
  %v2565 = vpop.f32.mrb[0].mxu0
  %2566 = vdwg.mxu0
  %v2567 = vld [vmem:[#allocation3 + $0x2] sm:$0xff]
  %v2568 = vld [vmem:[#allocation3 + $0xa] sm:$0xff]
  %v2569 = vld [vmem:[#allocation3 + $0x12] sm:$0xff]
  %v2570 = vld [vmem:[#allocation3 + $0x1a] sm:$0xff]
  %v2571 = vld [vmem:[#allocation3 + $0x22] sm:$0xff]
  %v2572 = vld [vmem:[#allocation3 + $0x2a] sm:$0xff]
  %v2573 = vld [vmem:[#allocation3 + $0x32] sm:$0xff]
  %v2574 = vld [vmem:[#allocation3 + $0x3a] sm:$0xff]
  %v2575 = vld [vmem:[#allocation3 + $0x42] sm:$0xff]
  %v2576 = vld [vmem:[#allocation3 + $0x4a] sm:$0xff]
  %v2577 = vld [vmem:[#allocation3 + $0x52] sm:$0xff]
  %v2578 = vld [vmem:[#allocation3 + $0x5a] sm:$0xff]
  %v2579 = vld [vmem:[#allocation3 + $0x62] sm:$0xff]
  %v2580 = vld [vmem:[#allocation3 + $0x6a] sm:$0xff]
  %v2581 = vld [vmem:[#allocation3 + $0x72] sm:$0xff]
  %v2582 = vld [vmem:[#allocation3 + $0x7a] sm:$0xff]
  %s2583 = scalar_lea.vmem %s3, 16
  %v2584 = vld [vmem:[%s2583] sm:$0xff]
  %v2586 = vsel %vm1950, %v2567, 0
  %v2589 = vsel %vm1950, %v2568, 0
  %v2592 = vsel %vm1950, %v2569, 0
  %v2595 = vsel %vm1950, %v2570, 0
  %v2598 = vsel %vm1950, %v2571, 0
  %v2601 = vsel %vm1950, %v2572, 0
  %v2604 = vsel %vm1950, %v2573, 0
  %v2607 = vsel %vm1950, %v2574, 0
  %v2610 = vsel %vm1950, %v2575, 0
  %v2613 = vsel %vm1950, %v2576, 0
  %v2616 = vsel %vm1950, %v2577, 0
  %v2619 = vsel %vm1950, %v2578, 0
  %v2622 = vsel %vm1950, %v2579, 0
  %v2625 = vsel %vm1950, %v2580, 0
  %v2628 = vsel %vm1950, %v2581, 0
  %v2631 = vsel %vm1950, %v2582, 0
  %2633 = vmatprep.subr.mxu0 0.0
  %2634 = vmatpush1.msra.mxu0 %v2584
  %2635 = vmatprep.subr.mxu0 0.0
  %2636 = vmatpush1.msra.mxu0 0.0
  %2637 = vmatprep.subr.mxu0 0.0
  %2638 = vmatpush1.msra.mxu0 0.0
  %2639 = vmatprep.subr.mxu0 0.0
  %2640 = vmatpush1.msra.mxu0 0.0
  %2641 = vmatprep.subr.mxu0 0.0
  %2642 = vmatpush1.msra.mxu0 0.0
  %2643 = vmatprep.subr.mxu0 0.0
  %2644 = vmatpush1.msra.mxu0 0.0
  %2645 = vmatprep.subr.mxu0 0.0
  %2646 = vmatpush1.msra.mxu0 0.0
  %2647 = vmatprep.subr.mxu0 0.0
  %2648 = vmatpush1.msra.mxu0 0.0
  %2649 = vmatprep.subr.mxu0 0.0
  %2650 = vmatpush1.msra.mxu0 0.0
  %2651 = vmatprep.subr.mxu0 0.0
  %2652 = vmatpush1.msra.mxu0 0.0
  %2653 = vmatprep.subr.mxu0 0.0
  %2654 = vmatpush1.msra.mxu0 0.0
  %2655 = vmatprep.subr.mxu0 0.0
  %2656 = vmatpush1.msra.mxu0 0.0
  %2657 = vmatprep.subr.mxu0 0.0
  %2658 = vmatpush1.msra.mxu0 0.0
  %2659 = vmatprep.subr.mxu0 0.0
  %2660 = vmatpush1.msra.mxu0 0.0
  %2661 = vmatprep.subr.mxu0 0.0
  %2662 = vmatpush1.msra.mxu0 0.0
  %2663 = vmatprep.subr.mxu0 0.0
  %2664 = vmatpush1.msra.mxu0 0.0
  %2665 = vmatprep.subr.mxu0 0.0
  %2666 = vmatpush1.msra.mxu0 0.0
  %2667 = vmatprep.subr.mxu0 0.0
  %2668 = vmatpush1.msra.mxu0 0.0
  %2669 = vmatprep.subr.mxu0 0.0
  %2670 = vmatpush1.msra.mxu0 0.0
  %2671 = vmatprep.subr.mxu0 0.0
  %2672 = vmatpush1.msra.mxu0 0.0
  %2673 = vmatprep.subr.mxu0 0.0
  %2674 = vmatpush1.msra.mxu0 0.0
  %2675 = vmatprep.subr.mxu0 0.0
  %2676 = vmatpush1.msra.mxu0 0.0
  %2677 = vmatprep.subr.mxu0 0.0
  %2678 = vmatpush1.msra.mxu0 0.0
  %2679 = vmatprep.subr.mxu0 0.0
  %2680 = vmatpush1.msra.mxu0 0.0
  %2681 = vmatprep.subr.mxu0 0.0
  %2682 = vmatpush1.msra.mxu0 0.0
  %2683 = vmatprep.subr.mxu0 0.0
  %2684 = vmatpush1.msra.mxu0 0.0
  %2685 = vmatprep.subr.mxu0 0.0
  %2686 = vmatpush1.msra.mxu0 0.0
  %2687 = vmatprep.subr.mxu0 0.0
  %2688 = vmatpush1.msra.mxu0 0.0
  %2689 = vmatprep.subr.mxu0 0.0
  %2690 = vmatpush1.msra.mxu0 0.0
  %2691 = vmatprep.subr.mxu0 0.0
  %2692 = vmatpush1.msra.mxu0 0.0
  %2693 = vmatprep.subr.mxu0 0.0
  %2694 = vmatpush1.msra.mxu0 0.0
  %2695 = vmatprep.subr.mxu0 0.0
  %2696 = vmatpush1.msra.mxu0 0.0
  %2697 = vmatprep.mubr.f32.mxu0 0.0
  %2698 = vmatmul.mubr.f32.gmra.mrb[0].mxu0 %v2586
  %v2699 = vpop.f32.mrb[0].mxu0
  %v2700 = vadd.f32 0.0, %v2699
  %v2701 = vpop.f32.mrb[0].mxu0
  %2702 = vmatprep.mubr.f32.mxu0 0.0
  %2703 = vmatmul.mubr.f32.gmra.mrb[0].mxu0 %v2589
  %v2704 = vpop.f32.mrb[0].mxu0
  %v2705 = vadd.f32 0.0, %v2704
  %v2706 = vpop.f32.mrb[0].mxu0
  %2707 = vmatprep.mubr.f32.mxu0 0.0
  %2708 = vmatmul.mubr.f32.gmra.mrb[0].mxu0 %v2592
  %v2709 = vpop.f32.mrb[0].mxu0
  %v2710 = vadd.f32 0.0, %v2709
  %v2711 = vpop.f32.mrb[0].mxu0
  %2712 = vmatprep.mubr.f32.mxu0 0.0
  %2713 = vmatmul.mubr.f32.gmra.mrb[0].mxu0 %v2595
  %v2714 = vpop.f32.mrb[0].mxu0
  %v2715 = vadd.f32 0.0, %v2714
  %v2716 = vpop.f32.mrb[0].mxu0
  %2717 = vmatprep.mubr.f32.mxu0 0.0
  %2718 = vmatmul.mubr.f32.gmra.mrb[0].mxu0 %v2598
  %v2719 = vpop.f32.mrb[0].mxu0
  %v2720 = vadd.f32 0.0, %v2719
  %v2721 = vpop.f32.mrb[0].mxu0
  %2722 = vmatprep.mubr.f32.mxu0 0.0
  %2723 = vmatmul.mubr.f32.gmra.mrb[0].mxu0 %v2601
  %v2724 = vpop.f32.mrb[0].mxu0
  %v2725 = vadd.f32 0.0, %v2724
  %v2726 = vpop.f32.mrb[0].mxu0
  %2727 = vmatprep.mubr.f32.mxu0 0.0
  %2728 = vmatmul.mubr.f32.gmra.mrb[0].mxu0 %v2604
  %v2729 = vpop.f32.mrb[0].mxu0
  %v2730 = vadd.f32 0.0, %v2729
  %v2731 = vpop.f32.mrb[0].mxu0
  %2732 = vmatprep.mubr.f32.mxu0 0.0
  %2733 = vmatmul.mubr.f32.gmra.mrb[0].mxu0 %v2607
  %v2734 = vpop.f32.mrb[0].mxu0
  %v2735 = vadd.f32 0.0, %v2734
  %v2736 = vpop.f32.mrb[0].mxu0
  %2737 = vmatprep.mubr.f32.mxu0 0.0
  %2738 = vmatmul.mubr.f32.gmra.mrb[0].mxu0 %v2610
  %v2739 = vpop.f32.mrb[0].mxu0
  %v2740 = vadd.f32 0.0, %v2739
  %v2741 = vpop.f32.mrb[0].mxu0
  %2742 = vmatprep.mubr.f32.mxu0 0.0
  %2743 = vmatmul.mubr.f32.gmra.mrb[0].mxu0 %v2613
  %v2744 = vpop.f32.mrb[0].mxu0
  %v2745 = vadd.f32 0.0, %v2744
  %v2746 = vpop.f32.mrb[0].mxu0
  %2747 = vmatprep.mubr.f32.mxu0 0.0
  %2748 = vmatmul.mubr.f32.gmra.mrb[0].mxu0 %v2616
  %v2749 = vpop.f32.mrb[0].mxu0
  %v2750 = vadd.f32 0.0, %v2749
  %v2751 = vpop.f32.mrb[0].mxu0
  %2752 = vmatprep.mubr.f32.mxu0 0.0
  %2753 = vmatmul.mubr.f32.gmra.mrb[0].mxu0 %v2619
  %v2754 = vpop.f32.mrb[0].mxu0
  %v2755 = vadd.f32 0.0, %v2754
  %v2756 = vpop.f32.mrb[0].mxu0
  %2757 = vmatprep.mubr.f32.mxu0 0.0
  %2758 = vmatmul.mubr.f32.gmra.mrb[0].mxu0 %v2622
  %v2759 = vpop.f32.mrb[0].mxu0
  %v2760 = vadd.f32 0.0, %v2759
  %v2761 = vpop.f32.mrb[0].mxu0
  %2762 = vmatprep.mubr.f32.mxu0 0.0
  %2763 = vmatmul.mubr.f32.gmra.mrb[0].mxu0 %v2625
  %v2764 = vpop.f32.mrb[0].mxu0
  %v2765 = vadd.f32 0.0, %v2764
  %v2766 = vpop.f32.mrb[0].mxu0
  %2767 = vmatprep.mubr.f32.mxu0 0.0
  %2768 = vmatmul.mubr.f32.gmra.mrb[0].mxu0 %v2628
  %v2769 = vpop.f32.mrb[0].mxu0
  %v2770 = vadd.f32 0.0, %v2769
  %v2771 = vpop.f32.mrb[0].mxu0
  %2772 = vmatprep.mubr.f32.mxu0 0.0
  %2773 = vmatmul.mubr.f32.gmra.mrb[0].mxu0 %v2631
  %v2774 = vpop.f32.mrb[0].mxu0
  %v2775 = vadd.f32 0.0, %v2774
  %v2776 = vpop.f32.mrb[0].mxu0
  %2777 = vdwg.mxu0
  %v2778 = vadd.f32 %v2489, %v2700
  %v2779 = vadd.f32 %v2494, %v2705
  %v2780 = vadd.f32 %v2499, %v2710
  %v2781 = vadd.f32 %v2504, %v2715
  %v2782 = vadd.f32 %v2509, %v2720
  %v2783 = vadd.f32 %v2514, %v2725
  %v2784 = vadd.f32 %v2519, %v2730
  %v2785 = vadd.f32 %v2524, %v2735
  %v2786 = vadd.f32 %v2529, %v2740
  %v2787 = vadd.f32 %v2534, %v2745
  %v2788 = vadd.f32 %v2539, %v2750
  %v2789 = vadd.f32 %v2544, %v2755
  %v2790 = vadd.f32 %v2549, %v2760
  %v2791 = vadd.f32 %v2554, %v2765
  %v2792 = vadd.f32 %v2559, %v2770
  %v2793 = vadd.f32 %v2564, %v2775
  %v2794 = vld [vmem:[#allocation3 + $0x3] sm:$0xff]
  %v2795 = vld [vmem:[#allocation3 + $0xb] sm:$0xff]
  %v2796 = vld [vmem:[#allocation3 + $0x13] sm:$0xff]
  %v2797 = vld [vmem:[#allocation3 + $0x1b] sm:$0xff]
  %v2798 = vld [vmem:[#allocation3 + $0x23] sm:$0xff]
  %v2799 = vld [vmem:[#allocation3 + $0x2b] sm:$0xff]
  %v2800 = vld [vmem:[#allocation3 + $0x33] sm:$0xff]
  %v2801 = vld [vmem:[#allocation3 + $0x3b] sm:$0xff]
  %v2802 = vld [vmem:[#allocation3 + $0x43] sm:$0xff]
  %v2803 = vld [vmem:[#allocation3 + $0x4b] sm:$0xff]
  %v2804 = vld [vmem:[#allocation3 + $0x53] sm:$0xff]
  %v2805 = vld [vmem:[#allocation3 + $0x5b] sm:$0xff]
  %v2806 = vld [vmem:[#allocation3 + $0x63] sm:$0xff]
  %v2807 = vld [vmem:[#allocation3 + $0x6b] sm:$0xff]
  %v2808 = vld [vmem:[#allocation3 + $0x73] sm:$0xff]
  %v2809 = vld [vmem:[#allocation3 + $0x7b] sm:$0xff]
  %s2810 = scalar_lea.vmem %s3, 24
  %v2811 = vld [vmem:[%s2810] sm:$0xff]
  %v2813 = vsel %vm1950, %v2794, 0
  %v2816 = vsel %vm1950, %v2795, 0
  %v2819 = vsel %vm1950, %v2796, 0
  %v2822 = vsel %vm1950, %v2797, 0
  %v2825 = vsel %vm1950, %v2798, 0
  %v2828 = vsel %vm1950, %v2799, 0
  %v2831 = vsel %vm1950, %v2800, 0
  %v2834 = vsel %vm1950, %v2801, 0
  %v2837 = vsel %vm1950, %v2802, 0
  %v2840 = vsel %vm1950, %v2803, 0
  %v2843 = vsel %vm1950, %v2804, 0
  %v2846 = vsel %vm1950, %v2805, 0
  %v2849 = vsel %vm1950, %v2806, 0
  %v2852 = vsel %vm1950, %v2807, 0
  %v2855 = vsel %vm1950, %v2808, 0
  %v2858 = vsel %vm1950, %v2809, 0
  %2860 = vmatprep.subr.mxu0 0.0
  %2861 = vmatpush1.msra.mxu0 %v2811
  %2862 = vmatprep.subr.mxu0 0.0
  %2863 = vmatpush1.msra.mxu0 0.0
  %2864 = vmatprep.subr.mxu0 0.0
  %2865 = vmatpush1.msra.mxu0 0.0
  %2866 = vmatprep.subr.mxu0 0.0
  %2867 = vmatpush1.msra.mxu0 0.0
  %2868 = vmatprep.subr.mxu0 0.0
  %2869 = vmatpush1.msra.mxu0 0.0
  %2870 = vmatprep.subr.mxu0 0.0
  %2871 = vmatpush1.msra.mxu0 0.0
  %2872 = vmatprep.subr.mxu0 0.0
  %2873 = vmatpush1.msra.mxu0 0.0
  %2874 = vmatprep.subr.mxu0 0.0
  %2875 = vmatpush1.msra.mxu0 0.0
  %2876 = vmatprep.subr.mxu0 0.0
  %2877 = vmatpush1.msra.mxu0 0.0
  %2878 = vmatprep.subr.mxu0 0.0
  %2879 = vmatpush1.msra.mxu0 0.0
  %2880 = vmatprep.subr.mxu0 0.0
  %2881 = vmatpush1.msra.mxu0 0.0
  %2882 = vmatprep.subr.mxu0 0.0
  %2883 = vmatpush1.msra.mxu0 0.0
  %2884 = vmatprep.subr.mxu0 0.0
  %2885 = vmatpush1.msra.mxu0 0.0
  %2886 = vmatprep.subr.mxu0 0.0
  %2887 = vmatpush1.msra.mxu0 0.0
  %2888 = vmatprep.subr.mxu0 0.0
  %2889 = vmatpush1.msra.mxu0 0.0
  %2890 = vmatprep.subr.mxu0 0.0
  %2891 = vmatpush1.msra.mxu0 0.0
  %2892 = vmatprep.subr.mxu0 0.0
  %2893 = vmatpush1.msra.mxu0 0.0
  %2894 = vmatprep.subr.mxu0 0.0
  %2895 = vmatpush1.msra.mxu0 0.0
  %2896 = vmatprep.subr.mxu0 0.0
  %2897 = vmatpush1.msra.mxu0 0.0
  %2898 = vmatprep.subr.mxu0 0.0
  %2899 = vmatpush1.msra.mxu0 0.0
  %2900 = vmatprep.subr.mxu0 0.0
  %2901 = vmatpush1.msra.mxu0 0.0
  %2902 = vmatprep.subr.mxu0 0.0
  %2903 = vmatpush1.msra.mxu0 0.0
  %2904 = vmatprep.subr.mxu0 0.0
  %2905 = vmatpush1.msra.mxu0 0.0
  %2906 = vmatprep.subr.mxu0 0.0
  %2907 = vmatpush1.msra.mxu0 0.0
  %2908 = vmatprep.subr.mxu0 0.0
  %2909 = vmatpush1.msra.mxu0 0.0
  %2910 = vmatprep.subr.mxu0 0.0
  %2911 = vmatpush1.msra.mxu0 0.0
  %2912 = vmatprep.subr.mxu0 0.0
  %2913 = vmatpush1.msra.mxu0 0.0
  %2914 = vmatprep.subr.mxu0 0.0
  %2915 = vmatpush1.msra.mxu0 0.0
  %2916 = vmatprep.subr.mxu0 0.0
  %2917 = vmatpush1.msra.mxu0 0.0
  %2918 = vmatprep.subr.mxu0 0.0
  %2919 = vmatpush1.msra.mxu0 0.0
  %2920 = vmatprep.subr.mxu0 0.0
  %2921 = vmatpush1.msra.mxu0 0.0
  %2922 = vmatprep.subr.mxu0 0.0
  %2923 = vmatpush1.msra.mxu0 0.0
  %2924 = vmatprep.mubr.f32.mxu0 0.0
  %2925 = vmatmul.mubr.f32.gmra.mrb[0].mxu0 %v2813
  %v2926 = vpop.f32.mrb[0].mxu0
  %v2927 = vadd.f32 0.0, %v2926
  %v2928 = vpop.f32.mrb[0].mxu0
  %2929 = vmatprep.mubr.f32.mxu0 0.0
  %2930 = vmatmul.mubr.f32.gmra.mrb[0].mxu0 %v2816
  %v2931 = vpop.f32.mrb[0].mxu0
  %v2932 = vadd.f32 0.0, %v2931
  %v2933 = vpop.f32.mrb[0].mxu0
  %2934 = vmatprep.mubr.f32.mxu0 0.0
  %2935 = vmatmul.mubr.f32.gmra.mrb[0].mxu0 %v2819
  %v2936 = vpop.f32.mrb[0].mxu0
  %v2937 = vadd.f32 0.0, %v2936
  %v2938 = vpop.f32.mrb[0].mxu0
  %2939 = vmatprep.mubr.f32.mxu0 0.0
  %2940 = vmatmul.mubr.f32.gmra.mrb[0].mxu0 %v2822
  %v2941 = vpop.f32.mrb[0].mxu0
  %v2942 = vadd.f32 0.0, %v2941
  %v2943 = vpop.f32.mrb[0].mxu0
  %2944 = vmatprep.mubr.f32.mxu0 0.0
  %2945 = vmatmul.mubr.f32.gmra.mrb[0].mxu0 %v2825
  %v2946 = vpop.f32.mrb[0].mxu0
  %v2947 = vadd.f32 0.0, %v2946
  %v2948 = vpop.f32.mrb[0].mxu0
  %2949 = vmatprep.mubr.f32.mxu0 0.0
  %2950 = vmatmul.mubr.f32.gmra.mrb[0].mxu0 %v2828
  %v2951 = vpop.f32.mrb[0].mxu0
  %v2952 = vadd.f32 0.0, %v2951
  %v2953 = vpop.f32.mrb[0].mxu0
  %2954 = vmatprep.mubr.f32.mxu0 0.0
  %2955 = vmatmul.mubr.f32.gmra.mrb[0].mxu0 %v2831
  %v2956 = vpop.f32.mrb[0].mxu0
  %v2957 = vadd.f32 0.0, %v2956
  %v2958 = vpop.f32.mrb[0].mxu0
  %2959 = vmatprep.mubr.f32.mxu0 0.0
  %2960 = vmatmul.mubr.f32.gmra.mrb[0].mxu0 %v2834
  %v2961 = vpop.f32.mrb[0].mxu0
  %v2962 = vadd.f32 0.0, %v2961
  %v2963 = vpop.f32.mrb[0].mxu0
  %2964 = vmatprep.mubr.f32.mxu0 0.0
  %2965 = vmatmul.mubr.f32.gmra.mrb[0].mxu0 %v2837
  %v2966 = vpop.f32.mrb[0].mxu0
  %v2967 = vadd.f32 0.0, %v2966
  %v2968 = vpop.f32.mrb[0].mxu0
  %2969 = vmatprep.mubr.f32.mxu0 0.0
  %2970 = vmatmul.mubr.f32.gmra.mrb[0].mxu0 %v2840
  %v2971 = vpop.f32.mrb[0].mxu0
  %v2972 = vadd.f32 0.0, %v2971
  %v2973 = vpop.f32.mrb[0].mxu0
  %2974 = vmatprep.mubr.f32.mxu0 0.0
  %2975 = vmatmul.mubr.f32.gmra.mrb[0].mxu0 %v2843
  %v2976 = vpop.f32.mrb[0].mxu0
  %v2977 = vadd.f32 0.0, %v2976
  %v2978 = vpop.f32.mrb[0].mxu0
  %2979 = vmatprep.mubr.f32.mxu0 0.0
  %2980 = vmatmul.mubr.f32.gmra.mrb[0].mxu0 %v2846
  %v2981 = vpop.f32.mrb[0].mxu0
  %v2982 = vadd.f32 0.0, %v2981
  %v2983 = vpop.f32.mrb[0].mxu0
  %2984 = vmatprep.mubr.f32.mxu0 0.0
  %2985 = vmatmul.mubr.f32.gmra.mrb[0].mxu0 %v2849
  %v2986 = vpop.f32.mrb[0].mxu0
  %v2987 = vadd.f32 0.0, %v2986
  %v2988 = vpop.f32.mrb[0].mxu0
  %2989 = vmatprep.mubr.f32.mxu0 0.0
  %2990 = vmatmul.mubr.f32.gmra.mrb[0].mxu0 %v2852
  %v2991 = vpop.f32.mrb[0].mxu0
  %v2992 = vadd.f32 0.0, %v2991
  %v2993 = vpop.f32.mrb[0].mxu0
  %2994 = vmatprep.mubr.f32.mxu0 0.0
  %2995 = vmatmul.mubr.f32.gmra.mrb[0].mxu0 %v2855
  %v2996 = vpop.f32.mrb[0].mxu0
  %v2997 = vadd.f32 0.0, %v2996
  %v2998 = vpop.f32.mrb[0].mxu0
  %2999 = vmatprep.mubr.f32.mxu0 0.0
  %3000 = vmatmul.mubr.f32.gmra.mrb[0].mxu0 %v2858
  %v3001 = vpop.f32.mrb[0].mxu0
  %v3002 = vadd.f32 0.0, %v3001
  %v3003 = vpop.f32.mrb[0].mxu0
  %3004 = vdwg.mxu0
  %v3005 = vadd.f32 %v2778, %v2927
  %v3006 = vadd.f32 %v2779, %v2932
  %v3007 = vadd.f32 %v2780, %v2937
  %v3008 = vadd.f32 %v2781, %v2942
  %v3009 = vadd.f32 %v2782, %v2947
  %v3010 = vadd.f32 %v2783, %v2952
  %v3011 = vadd.f32 %v2784, %v2957
  %v3012 = vadd.f32 %v2785, %v2962
  %v3013 = vadd.f32 %v2786, %v2967
  %v3014 = vadd.f32 %v2787, %v2972
  %v3015 = vadd.f32 %v2788, %v2977
  %v3016 = vadd.f32 %v2789, %v2982
  %v3017 = vadd.f32 %v2790, %v2987
  %v3018 = vadd.f32 %v2791, %v2992
  %v3019 = vadd.f32 %v2792, %v2997
  %v3020 = vadd.f32 %v2793, %v3002
  %v3021 = vld [vmem:[#allocation3 + $0x4] sm:$0xff]
  %v3022 = vld [vmem:[#allocation3 + $0xc] sm:$0xff]
  %v3023 = vld [vmem:[#allocation3 + $0x14] sm:$0xff]
  %v3024 = vld [vmem:[#allocation3 + $0x1c] sm:$0xff]
  %v3025 = vld [vmem:[#allocation3 + $0x24] sm:$0xff]
  %v3026 = vld [vmem:[#allocation3 + $0x2c] sm:$0xff]
  %v3027 = vld [vmem:[#allocation3 + $0x34] sm:$0xff]
  %v3028 = vld [vmem:[#allocation3 + $0x3c] sm:$0xff]
  %v3029 = vld [vmem:[#allocation3 + $0x44] sm:$0xff]
  %v3030 = vld [vmem:[#allocation3 + $0x4c] sm:$0xff]
  %v3031 = vld [vmem:[#allocation3 + $0x54] sm:$0xff]
  %v3032 = vld [vmem:[#allocation3 + $0x5c] sm:$0xff]
  %v3033 = vld [vmem:[#allocation3 + $0x64] sm:$0xff]
  %v3034 = vld [vmem:[#allocation3 + $0x6c] sm:$0xff]
  %v3035 = vld [vmem:[#allocation3 + $0x74] sm:$0xff]
  %v3036 = vld [vmem:[#allocation3 + $0x7c] sm:$0xff]
  %s3037 = scalar_lea.vmem %s3, 32
  %v3038 = vld [vmem:[%s3037] sm:$0xff]
  %v3040 = vsel %vm1950, %v3021, 0
  %v3043 = vsel %vm1950, %v3022, 0
  %v3046 = vsel %vm1950, %v3023, 0
  %v3049 = vsel %vm1950, %v3024, 0
  %v3052 = vsel %vm1950, %v3025, 0
  %v3055 = vsel %vm1950, %v3026, 0
  %v3058 = vsel %vm1950, %v3027, 0
  %v3061 = vsel %vm1950, %v3028, 0
  %v3064 = vsel %vm1950, %v3029, 0
  %v3067 = vsel %vm1950, %v3030, 0
  %v3070 = vsel %vm1950, %v3031, 0
  %v3073 = vsel %vm1950, %v3032, 0
  %v3076 = vsel %vm1950, %v3033, 0
  %v3079 = vsel %vm1950, %v3034, 0
  %v3082 = vsel %vm1950, %v3035, 0
  %v3085 = vsel %vm1950, %v3036, 0
  %3087 = vmatprep.subr.mxu0 0.0
  %3088 = vmatpush1.msra.mxu0 %v3038
  %3089 = vmatprep.subr.mxu0 0.0
  %3090 = vmatpush1.msra.mxu0 0.0
  %3091 = vmatprep.subr.mxu0 0.0
  %3092 = vmatpush1.msra.mxu0 0.0
  %3093 = vmatprep.subr.mxu0 0.0
  %3094 = vmatpush1.msra.mxu0 0.0
  %3095 = vmatprep.subr.mxu0 0.0
  %3096 = vmatpush1.msra.mxu0 0.0
  %3097 = vmatprep.subr.mxu0 0.0
  %3098 = vmatpush1.msra.mxu0 0.0
  %3099 = vmatprep.subr.mxu0 0.0
  %3100 = vmatpush1.msra.mxu0 0.0
  %3101 = vmatprep.subr.mxu0 0.0
  %3102 = vmatpush1.msra.mxu0 0.0
  %3103 = vmatprep.subr.mxu0 0.0
  %3104 = vmatpush1.msra.mxu0 0.0
  %3105 = vmatprep.subr.mxu0 0.0
  %3106 = vmatpush1.msra.mxu0 0.0
  %3107 = vmatprep.subr.mxu0 0.0
  %3108 = vmatpush1.msra.mxu0 0.0
  %3109 = vmatprep.subr.mxu0 0.0
  %3110 = vmatpush1.msra.mxu0 0.0
  %3111 = vmatprep.subr.mxu0 0.0
  %3112 = vmatpush1.msra.mxu0 0.0
  %3113 = vmatprep.subr.mxu0 0.0
  %3114 = vmatpush1.msra.mxu0 0.0
  %3115 = vmatprep.subr.mxu0 0.0
  %3116 = vmatpush1.msra.mxu0 0.0
  %3117 = vmatprep.subr.mxu0 0.0
  %3118 = vmatpush1.msra.mxu0 0.0
  %3119 = vmatprep.subr.mxu0 0.0
  %3120 = vmatpush1.msra.mxu0 0.0
  %3121 = vmatprep.subr.mxu0 0.0
  %3122 = vmatpush1.msra.mxu0 0.0
  %3123 = vmatprep.subr.mxu0 0.0
  %3124 = vmatpush1.msra.mxu0 0.0
  %3125 = vmatprep.subr.mxu0 0.0
  %3126 = vmatpush1.msra.mxu0 0.0
  %3127 = vmatprep.subr.mxu0 0.0
  %3128 = vmatpush1.msra.mxu0 0.0
  %3129 = vmatprep.subr.mxu0 0.0
  %3130 = vmatpush1.msra.mxu0 0.0
  %3131 = vmatprep.subr.mxu0 0.0
  %3132 = vmatpush1.msra.mxu0 0.0
  %3133 = vmatprep.subr.mxu0 0.0
  %3134 = vmatpush1.msra.mxu0 0.0
  %3135 = vmatprep.subr.mxu0 0.0
  %3136 = vmatpush1.msra.mxu0 0.0
  %3137 = vmatprep.subr.mxu0 0.0
  %3138 = vmatpush1.msra.mxu0 0.0
  %3139 = vmatprep.subr.mxu0 0.0
  %3140 = vmatpush1.msra.mxu0 0.0
  %3141 = vmatprep.subr.mxu0 0.0
  %3142 = vmatpush1.msra.mxu0 0.0
  %3143 = vmatprep.subr.mxu0 0.0
  %3144 = vmatpush1.msra.mxu0 0.0
  %3145 = vmatprep.subr.mxu0 0.0
  %3146 = vmatpush1.msra.mxu0 0.0
  %3147 = vmatprep.subr.mxu0 0.0
  %3148 = vmatpush1.msra.mxu0 0.0
  %3149 = vmatprep.subr.mxu0 0.0
  %3150 = vmatpush1.msra.mxu0 0.0
  %3151 = vmatprep.mubr.f32.mxu0 0.0
  %3152 = vmatmul.mubr.f32.gmra.mrb[0].mxu0 %v3040
  %v3153 = vpop.f32.mrb[0].mxu0
  %v3154 = vadd.f32 0.0, %v3153
  %v3155 = vpop.f32.mrb[0].mxu0
  %3156 = vmatprep.mubr.f32.mxu0 0.0
  %3157 = vmatmul.mubr.f32.gmra.mrb[0].mxu0 %v3043
  %v3158 = vpop.f32.mrb[0].mxu0
  %v3159 = vadd.f32 0.0, %v3158
  %v3160 = vpop.f32.mrb[0].mxu0
  %3161 = vmatprep.mubr.f32.mxu0 0.0
  %3162 = vmatmul.mubr.f32.gmra.mrb[0].mxu0 %v3046
  %v3163 = vpop.f32.mrb[0].mxu0
  %v3164 = vadd.f32 0.0, %v3163
  %v3165 = vpop.f32.mrb[0].mxu0
  %3166 = vmatprep.mubr.f32.mxu0 0.0
  %3167 = vmatmul.mubr.f32.gmra.mrb[0].mxu0 %v3049
  %v3168 = vpop.f32.mrb[0].mxu0
  %v3169 = vadd.f32 0.0, %v3168
  %v3170 = vpop.f32.mrb[0].mxu0
  %3171 = vmatprep.mubr.f32.mxu0 0.0
  %3172 = vmatmul.mubr.f32.gmra.mrb[0].mxu0 %v3052
  %v3173 = vpop.f32.mrb[0].mxu0
  %v3174 = vadd.f32 0.0, %v3173
  %v3175 = vpop.f32.mrb[0].mxu0
  %3176 = vmatprep.mubr.f32.mxu0 0.0
  %3177 = vmatmul.mubr.f32.gmra.mrb[0].mxu0 %v3055
  %v3178 = vpop.f32.mrb[0].mxu0
  %v3179 = vadd.f32 0.0, %v3178
  %v3180 = vpop.f32.mrb[0].mxu0
  %3181 = vmatprep.mubr.f32.mxu0 0.0
  %3182 = vmatmul.mubr.f32.gmra.mrb[0].mxu0 %v3058
  %v3183 = vpop.f32.mrb[0].mxu0
  %v3184 = vadd.f32 0.0, %v3183
  %v3185 = vpop.f32.mrb[0].mxu0
  %3186 = vmatprep.mubr.f32.mxu0 0.0
  %3187 = vmatmul.mubr.f32.gmra.mrb[0].mxu0 %v3061
  %v3188 = vpop.f32.mrb[0].mxu0
  %v3189 = vadd.f32 0.0, %v3188
  %v3190 = vpop.f32.mrb[0].mxu0
  %3191 = vmatprep.mubr.f32.mxu0 0.0
  %3192 = vmatmul.mubr.f32.gmra.mrb[0].mxu0 %v3064
  %v3193 = vpop.f32.mrb[0].mxu0
  %v3194 = vadd.f32 0.0, %v3193
  %v3195 = vpop.f32.mrb[0].mxu0
  %3196 = vmatprep.mubr.f32.mxu0 0.0
  %3197 = vmatmul.mubr.f32.gmra.mrb[0].mxu0 %v3067
  %v3198 = vpop.f32.mrb[0].mxu0
  %v3199 = vadd.f32 0.0, %v3198
  %v3200 = vpop.f32.mrb[0].mxu0
  %3201 = vmatprep.mubr.f32.mxu0 0.0
  %3202 = vmatmul.mubr.f32.gmra.mrb[0].mxu0 %v3070
  %v3203 = vpop.f32.mrb[0].mxu0
  %v3204 = vadd.f32 0.0, %v3203
  %v3205 = vpop.f32.mrb[0].mxu0
  %3206 = vmatprep.mubr.f32.mxu0 0.0
  %3207 = vmatmul.mubr.f32.gmra.mrb[0].mxu0 %v3073
  %v3208 = vpop.f32.mrb[0].mxu0
  %v3209 = vadd.f32 0.0, %v3208
  %v3210 = vpop.f32.mrb[0].mxu0
  %3211 = vmatprep.mubr.f32.mxu0 0.0
  %3212 = vmatmul.mubr.f32.gmra.mrb[0].mxu0 %v3076
  %v3213 = vpop.f32.mrb[0].mxu0
  %v3214 = vadd.f32 0.0, %v3213
  %v3215 = vpop.f32.mrb[0].mxu0
  %3216 = vmatprep.mubr.f32.mxu0 0.0
  %3217 = vmatmul.mubr.f32.gmra.mrb[0].mxu0 %v3079
  %v3218 = vpop.f32.mrb[0].mxu0
  %v3219 = vadd.f32 0.0, %v3218
  %v3220 = vpop.f32.mrb[0].mxu0
  %3221 = vmatprep.mubr.f32.mxu0 0.0
  %3222 = vmatmul.mubr.f32.gmra.mrb[0].mxu0 %v3082
  %v3223 = vpop.f32.mrb[0].mxu0
  %v3224 = vadd.f32 0.0, %v3223
  %v3225 = vpop.f32.mrb[0].mxu0
  %3226 = vmatprep.mubr.f32.mxu0 0.0
  %3227 = vmatmul.mubr.f32.gmra.mrb[0].mxu0 %v3085
  %v3228 = vpop.f32.mrb[0].mxu0
  %v3229 = vadd.f32 0.0, %v3228
  %v3230 = vpop.f32.mrb[0].mxu0
  %3231 = vdwg.mxu0
  %v3232 = vadd.f32 %v3005, %v3154
  %v3233 = vadd.f32 %v3006, %v3159
  %v3234 = vadd.f32 %v3007, %v3164
  %v3235 = vadd.f32 %v3008, %v3169
  %v3236 = vadd.f32 %v3009, %v3174
  %v3237 = vadd.f32 %v3010, %v3179
  %v3238 = vadd.f32 %v3011, %v3184
  %v3239 = vadd.f32 %v3012, %v3189
  %v3240 = vadd.f32 %v3013, %v3194
  %v3241 = vadd.f32 %v3014, %v3199
  %v3242 = vadd.f32 %v3015, %v3204
  %v3243 = vadd.f32 %v3016, %v3209
  %v3244 = vadd.f32 %v3017, %v3214
  %v3245 = vadd.f32 %v3018, %v3219
  %v3246 = vadd.f32 %v3019, %v3224
  %v3247 = vadd.f32 %v3020, %v3229
  %v3248 = vld [vmem:[%s4] sm:$0x1]
  %v3250 = vlaneseq
  %v3251 = vshrl.u32 %v3250, 7
  %v3252 = vsub.s32 0, %v3251
  %v3253 = vrot.slane %v3248, %v3252
  %v3255 = vadd.f32 %v3232, %v3253
  %v3256 = vadd.f32 %v3233, %v3253
  %v3257 = vadd.f32 %v3234, %v3253
  %v3258 = vadd.f32 %v3235, %v3253
  %v3259 = vadd.f32 %v3236, %v3253
  %v3260 = vadd.f32 %v3237, %v3253
  %v3261 = vadd.f32 %v3238, %v3253
  %v3262 = vadd.f32 %v3239, %v3253
  %v3263 = vadd.f32 %v3240, %v3253
  %v3264 = vadd.f32 %v3241, %v3253
  %v3265 = vadd.f32 %v3242, %v3253
  %v3266 = vadd.f32 %v3243, %v3253
  %v3267 = vadd.f32 %v3244, %v3253
  %v3268 = vadd.f32 %v3245, %v3253
  %v3269 = vadd.f32 %v3246, %v3253
  %v3270 = vadd.f32 %v3247, %v3253
  %v3271 = vmax.f32 %v3255, 0.0
  %v3272 = vmax.f32 %v3256, 0.0
  %v3273 = vmax.f32 %v3257, 0.0
  %v3274 = vmax.f32 %v3258, 0.0
  %v3275 = vmax.f32 %v3259, 0.0
  %v3276 = vmax.f32 %v3260, 0.0
  %v3277 = vmax.f32 %v3261, 0.0
  %v3278 = vmax.f32 %v3262, 0.0
  %v3279 = vmax.f32 %v3263, 0.0
  %v3280 = vmax.f32 %v3264, 0.0
  %v3281 = vmax.f32 %v3265, 0.0
  %v3282 = vmax.f32 %v3266, 0.0
  %v3283 = vmax.f32 %v3267, 0.0
  %v3284 = vmax.f32 %v3268, 0.0
  %v3285 = vmax.f32 %v3269, 0.0
  %v3286 = vmax.f32 %v3270, 0.0
  %vm3287 = vcmask 523264
  %3288 = vst.msk [vmem:[#allocation4] sm:$0xff] %vm3287, %v3271
  %3289 = vst.msk [vmem:[#allocation4 + $0x8] sm:$0xff] %vm3287, %v3272
  %3290 = vst.msk [vmem:[#allocation4 + $0x10] sm:$0xff] %vm3287, %v3273
  %3291 = vst.msk [vmem:[#allocation4 + $0x18] sm:$0xff] %vm3287, %v3274
  %3292 = vst.msk [vmem:[#allocation4 + $0x20] sm:$0xff] %vm3287, %v3275
  %3293 = vst.msk [vmem:[#allocation4 + $0x28] sm:$0xff] %vm3287, %v3276
  %3294 = vst.msk [vmem:[#allocation4 + $0x30] sm:$0xff] %vm3287, %v3277
  %3295 = vst.msk [vmem:[#allocation4 + $0x38] sm:$0xff] %vm3287, %v3278
  %3296 = vst.msk [vmem:[#allocation4 + $0x40] sm:$0xff] %vm3287, %v3279
  %3297 = vst.msk [vmem:[#allocation4 + $0x48] sm:$0xff] %vm3287, %v3280
  %3298 = vst.msk [vmem:[#allocation4 + $0x50] sm:$0xff] %vm3287, %v3281
  %3299 = vst.msk [vmem:[#allocation4 + $0x58] sm:$0xff] %vm3287, %v3282
  %3300 = vst.msk [vmem:[#allocation4 + $0x60] sm:$0xff] %vm3287, %v3283
  %3301 = vst.msk [vmem:[#allocation4 + $0x68] sm:$0xff] %vm3287, %v3284
  %3302 = vst.msk [vmem:[#allocation4 + $0x70] sm:$0xff] %vm3287, %v3285
  %3303 = vst.msk [vmem:[#allocation4 + $0x78] sm:$0xff] %vm3287, %v3286
  %3304 = vst.msk [vmem:[#allocation4 + $0x80] sm:$0xff] %vm3287, 0.0
  %s3305 = scalar_lea.vmem [#allocation4], 6
  %v3306 = vld [vmem:[%s3305] ss:$2 sm:$0xff]
  %s3307 = scalar_lea.vmem [#allocation4], 22
  %v3308 = vld [vmem:[%s3307] ss:$2 sm:$0xff]
  %s3309 = scalar_lea.vmem [#allocation4], 38
  %v3310 = vld [vmem:[%s3309] ss:$2 sm:$0xff]
  %s3311 = scalar_lea.vmem [#allocation4], 54
  %v3312 = vld [vmem:[%s3311] ss:$2 sm:$0xff]
  %s3313 = scalar_lea.vmem [#allocation4], 70
  %v3314 = vld [vmem:[%s3313] ss:$2 sm:$0xff]
  %s3315 = scalar_lea.vmem [#allocation4], 86
  %v3316 = vld [vmem:[%s3315] ss:$2 sm:$0xff]
  %s3317 = scalar_lea.vmem [#allocation4], 102
  %v3318 = vld [vmem:[%s3317] ss:$2 sm:$0xff]
  %s3319 = scalar_lea.vmem [#allocation4], 118
  %v3320 = vld [vmem:[%s3319] ss:$2 sm:$0xff]
  %s3321 = scalar_lea.vmem [#allocation4], 7
  %v3322 = vld [vmem:[%s3321] ss:$2 sm:$0xff]
  %s3323 = scalar_lea.vmem [#allocation4], 23
  %v3324 = vld [vmem:[%s3323] ss:$2 sm:$0xff]
  %s3325 = scalar_lea.vmem [#allocation4], 39
  %v3326 = vld [vmem:[%s3325] ss:$2 sm:$0xff]
  %s3327 = scalar_lea.vmem [#allocation4], 55
  %v3328 = vld [vmem:[%s3327] ss:$2 sm:$0xff]
  %s3329 = scalar_lea.vmem [#allocation4], 71
  %v3330 = vld [vmem:[%s3329] ss:$2 sm:$0xff]
  %s3331 = scalar_lea.vmem [#allocation4], 87
  %v3332 = vld [vmem:[%s3331] ss:$2 sm:$0xff]
  %s3333 = scalar_lea.vmem [#allocation4], 103
  %v3334 = vld [vmem:[%s3333] ss:$2 sm:$0xff]
  %s3335 = scalar_lea.vmem [#allocation4], 119
  %v3336 = vld [vmem:[%s3335] ss:$2 sm:$0xff]
  %v3337 = vmax.f32 %v3306, %v3322
  %v3338 = vmax.f32 %v3308, %v3324
  %v3339 = vmax.f32 %v3310, %v3326
  %v3340 = vmax.f32 %v3312, %v3328
  %v3341 = vmax.f32 %v3314, %v3330
  %v3342 = vmax.f32 %v3316, %v3332
  %v3343 = vmax.f32 %v3318, %v3334
  %v3344 = vmax.f32 %v3320, %v3336
  %v3345 = vand.u32 %v2065, 7
  %v3346 = vand.u32 %v2066, 7
  %v3347 = vand.u32 %v2067, 7
  %v3348 = vand.u32 %v2068, 7
  %v3349 = vand.u32 %v2069, 7
  %v3350 = vand.u32 %v2070, 7
  %v3351 = vand.u32 %v2071, 7
  %v3352 = vand.u32 %v2072, 7
  %vm3353 = vcmp.lt.s32.totalorder %v3345, 5
  %vm3354 = vcmp.lt.s32.totalorder %v3346, 5
  %vm3355 = vcmp.lt.s32.totalorder %v3347, 5
  %vm3356 = vcmp.lt.s32.totalorder %v3348, 5
  %vm3357 = vcmp.lt.s32.totalorder %v3349, 5
  %vm3358 = vcmp.lt.s32.totalorder %v3350, 5
  %vm3359 = vcmp.lt.s32.totalorder %v3351, 5
  %vm3360 = vcmp.lt.s32.totalorder %v3352, 5
  %v3361 = vsel %vm3353, %v3337, 0.0
  %v3362 = vsel %vm3354, %v3338, 0.0
  %v3363 = vsel %vm3355, %v3339, 0.0
  %v3364 = vsel %vm3356, %v3340, 0.0
  %v3365 = vsel %vm3357, %v3341, 0.0
  %v3366 = vsel %vm3358, %v3342, 0.0
  %v3367 = vsel %vm3359, %v3343, 0.0
  %v3368 = vsel %vm3360, %v3344, 0.0
  %3369 = vst.msk [vmem:[#allocation5] sm:$0xff] %vm3287, %v3361
  %3370 = vst.msk [vmem:[#allocation5 + $0x8] sm:$0xff] %vm3287, %v3362
  %3371 = vst.msk [vmem:[#allocation5 + $0x10] sm:$0xff] %vm3287, %v3363
  %3372 = vst.msk [vmem:[#allocation5 + $0x18] sm:$0xff] %vm3287, %v3364
  %3373 = vst.msk [vmem:[#allocation5 + $0x20] sm:$0xff] %vm3287, %v3365
  %3374 = vst.msk [vmem:[#allocation5 + $0x28] sm:$0xff] %vm3287, %v3366
  %3375 = vst.msk [vmem:[#allocation5 + $0x30] sm:$0xff] %vm3287, %v3367
  %3376 = vst.msk [vmem:[#allocation5 + $0x38] sm:$0xff] %vm3287, %v3368
  %3377 = vst.msk [vmem:[#allocation5 + $0x40] sm:$0xff] %vm3287, 0.0
  %v3378 = vld [vmem:[#allocation5] sm:$0xff]
  %v3379 = vld [vmem:[#allocation5 + $0x8] sm:$0xff]
  %v3380 = vld [vmem:[#allocation5 + $0x10] sm:$0xff]
  %v3381 = vld [vmem:[#allocation5 + $0x18] sm:$0xff]
  %v3382 = vld [vmem:[#allocation5 + $0x20] sm:$0xff]
  %v3383 = vld [vmem:[#allocation5 + $0x28] sm:$0xff]
  %v3384 = vld [vmem:[#allocation5 + $0x30] sm:$0xff]
  %v3385 = vld [vmem:[#allocation5 + $0x38] sm:$0xff]
  %v3386 = vld [vmem:[%s5] sm:$0xff]
  %v3387 = vld [vmem:[%s5 + $0x8] sm:$0xff]
  %v3388 = vld [vmem:[%s5 + $0x10] sm:$0xff]
  %v3389 = vld [vmem:[%s5 + $0x18] sm:$0xff]
  %v3390 = vld [vmem:[%s5 + $0x20] sm:$0xff]
  %v3391 = vld [vmem:[%s5 + $0x28] sm:$0xff]
  %v3392 = vld [vmem:[%s5 + $0x30] sm:$0xff]
  %v3393 = vld [vmem:[%s5 + $0x38] sm:$0xff]
  %v3394 = vld [vmem:[#allocation5 + $0x1] sm:$0xff]
  %v3395 = vld [vmem:[#allocation5 + $0x9] sm:$0xff]
  %v3396 = vld [vmem:[#allocation5 + $0x11] sm:$0xff]
  %v3397 = vld [vmem:[#allocation5 + $0x19] sm:$0xff]
  %v3398 = vld [vmem:[#allocation5 + $0x21] sm:$0xff]
  %v3399 = vld [vmem:[#allocation5 + $0x29] sm:$0xff]
  %v3400 = vld [vmem:[#allocation5 + $0x31] sm:$0xff]
  %v3401 = vld [vmem:[#allocation5 + $0x39] sm:$0xff]
  %s3402 = scalar_lea.vmem %s5, 64
  %v3403 = vld [vmem:[%s3402] sm:$0xff]
  %v3404 = vld [vmem:[%s3402 + $0x8] sm:$0xff]
  %v3405 = vld [vmem:[%s3402 + $0x10] sm:$0xff]
  %v3406 = vld [vmem:[%s3402 + $0x18] sm:$0xff]
  %v3407 = vld [vmem:[%s3402 + $0x20] sm:$0xff]
  %v3408 = vld [vmem:[%s3402 + $0x28] sm:$0xff]
  %v3409 = vld [vmem:[%s3402 + $0x30] sm:$0xff]
  %v3410 = vld [vmem:[%s3402 + $0x38] sm:$0xff]
  %v3412 = vsel %vm3287, %v3394, 0
  %v3415 = vsel %vm3287, %v3395, 0
  %v3418 = vsel %vm3287, %v3396, 0
  %v3421 = vsel %vm3287, %v3397, 0
  %v3424 = vsel %vm3287, %v3398, 0
  %v3427 = vsel %vm3287, %v3399, 0
  %v3430 = vsel %vm3287, %v3400, 0
  %v3433 = vsel %vm3287, %v3401, 0
  %3435 = vmatprep.subr.mxu0 0.0
  %3436 = vmatpush1.msra.mxu0 %v3403
  %3437 = vmatprep.subr.mxu0 0.0
  %3438 = vmatpush1.msra.mxu0 %v3404
  %3439 = vmatprep.subr.mxu0 0.0
  %3440 = vmatpush1.msra.mxu0 %v3405
  %3441 = vmatprep.subr.mxu0 0.0
  %3442 = vmatpush1.msra.mxu0 %v3406
  %3443 = vmatprep.subr.mxu0 0.0
  %3444 = vmatpush1.msra.mxu0 %v3407
  %3445 = vmatprep.subr.mxu0 0.0
  %3446 = vmatpush1.msra.mxu0 %v3408
  %3447 = vmatprep.subr.mxu0 0.0
  %3448 = vmatpush1.msra.mxu0 %v3409
  %3449 = vmatprep.subr.mxu0 0.0
  %3450 = vmatpush1.msra.mxu0 %v3410
  %3451 = vmatprep.subr.mxu0 0.0
  %3452 = vmatpush1.msra.mxu0 0.0
  %3453 = vmatprep.subr.mxu0 0.0
  %3454 = vmatpush1.msra.mxu0 0.0
  %3455 = vmatprep.subr.mxu0 0.0
  %3456 = vmatpush1.msra.mxu0 0.0
  %3457 = vmatprep.subr.mxu0 0.0
  %3458 = vmatpush1.msra.mxu0 0.0
  %3459 = vmatprep.subr.mxu0 0.0
  %3460 = vmatpush1.msra.mxu0 0.0
  %3461 = vmatprep.subr.mxu0 0.0
  %3462 = vmatpush1.msra.mxu0 0.0
  %3463 = vmatprep.subr.mxu0 0.0
  %3464 = vmatpush1.msra.mxu0 0.0
  %3465 = vmatprep.subr.mxu0 0.0
  %3466 = vmatpush1.msra.mxu0 0.0
  %3467 = vmatprep.subr.mxu0 0.0
  %3468 = vmatpush1.msra.mxu0 0.0
  %3469 = vmatprep.subr.mxu0 0.0
  %3470 = vmatpush1.msra.mxu0 0.0
  %3471 = vmatprep.subr.mxu0 0.0
  %3472 = vmatpush1.msra.mxu0 0.0
  %3473 = vmatprep.subr.mxu0 0.0
  %3474 = vmatpush1.msra.mxu0 0.0
  %3475 = vmatprep.subr.mxu0 0.0
  %3476 = vmatpush1.msra.mxu0 0.0
  %3477 = vmatprep.subr.mxu0 0.0
  %3478 = vmatpush1.msra.mxu0 0.0
  %3479 = vmatprep.subr.mxu0 0.0
  %3480 = vmatpush1.msra.mxu0 0.0
  %3481 = vmatprep.subr.mxu0 0.0
  %3482 = vmatpush1.msra.mxu0 0.0
  %3483 = vmatprep.subr.mxu0 0.0
  %3484 = vmatpush1.msra.mxu0 0.0
  %3485 = vmatprep.subr.mxu0 0.0
  %3486 = vmatpush1.msra.mxu0 0.0
  %3487 = vmatprep.subr.mxu0 0.0
  %3488 = vmatpush1.msra.mxu0 0.0
  %3489 = vmatprep.subr.mxu0 0.0
  %3490 = vmatpush1.msra.mxu0 0.0
  %3491 = vmatprep.subr.mxu0 0.0
  %3492 = vmatpush1.msra.mxu0 0.0
  %3493 = vmatprep.subr.mxu0 0.0
  %3494 = vmatpush1.msra.mxu0 0.0
  %3495 = vmatprep.subr.mxu0 0.0
  %3496 = vmatpush1.msra.mxu0 0.0
  %3497 = vmatprep.subr.mxu0 0.0
  %3498 = vmatpush1.msra.mxu0 0.0
  %3499 = vmatprep.mubr.f32.mxu0 0.0
  %3500 = vmatmul.mubr.f32.gmra.mrb[0].mxu0 %v3412
  %v3501 = vpop.f32.mrb[0].mxu0
  %v3502 = vadd.f32 0.0, %v3501
  %v3503 = vpop.f32.mrb[0].mxu0
  %3504 = vmatprep.mubr.f32.mxu0 0.0
  %3505 = vmatmul.mubr.f32.gmra.mrb[0].mxu0 %v3415
  %v3506 = vpop.f32.mrb[0].mxu0
  %v3507 = vadd.f32 0.0, %v3506
  %v3508 = vpop.f32.mrb[0].mxu0
  %3509 = vmatprep.mubr.f32.mxu0 0.0
  %3510 = vmatmul.mubr.f32.gmra.mrb[0].mxu0 %v3418
  %v3511 = vpop.f32.mrb[0].mxu0
  %v3512 = vadd.f32 0.0, %v3511
  %v3513 = vpop.f32.mrb[0].mxu0
  %3514 = vmatprep.mubr.f32.mxu0 0.0
  %3515 = vmatmul.mubr.f32.gmra.mrb[0].mxu0 %v3421
  %v3516 = vpop.f32.mrb[0].mxu0
  %v3517 = vadd.f32 0.0, %v3516
  %v3518 = vpop.f32.mrb[0].mxu0
  %3519 = vmatprep.mubr.f32.mxu0 0.0
  %3520 = vmatmul.mubr.f32.gmra.mrb[0].mxu0 %v3424
  %v3521 = vpop.f32.mrb[0].mxu0
  %v3522 = vadd.f32 0.0, %v3521
  %v3523 = vpop.f32.mrb[0].mxu0
  %3524 = vmatprep.mubr.f32.mxu0 0.0
  %3525 = vmatmul.mubr.f32.gmra.mrb[0].mxu0 %v3427
  %v3526 = vpop.f32.mrb[0].mxu0
  %v3527 = vadd.f32 0.0, %v3526
  %v3528 = vpop.f32.mrb[0].mxu0
  %3529 = vmatprep.mubr.f32.mxu0 0.0
  %3530 = vmatmul.mubr.f32.gmra.mrb[0].mxu0 %v3430
  %v3531 = vpop.f32.mrb[0].mxu0
  %v3532 = vadd.f32 0.0, %v3531
  %v3533 = vpop.f32.mrb[0].mxu0
  %3534 = vmatprep.mubr.f32.mxu0 0.0
  %3535 = vmatmul.mubr.f32.gmra.mrb[0].mxu0 %v3433
  %v3536 = vpop.f32.mrb[0].mxu0
  %v3537 = vadd.f32 0.0, %v3536
  %v3538 = vpop.f32.mrb[0].mxu0
  %3539 = vdwg.mxu0
  %v3541 = vsel %vm3287, %v3378, 0
  %v3544 = vsel %vm3287, %v3379, 0
  %v3547 = vsel %vm3287, %v3380, 0
  %v3550 = vsel %vm3287, %v3381, 0
  %v3553 = vsel %vm3287, %v3382, 0
  %v3556 = vsel %vm3287, %v3383, 0
  %v3559 = vsel %vm3287, %v3384, 0
  %v3562 = vsel %vm3287, %v3385, 0
  %3564 = vmatprep.subr.mxu0 0.0
  %3565 = vmatpush1.msra.mxu0 %v3386
  %3566 = vmatprep.subr.mxu0 0.0
  %3567 = vmatpush1.msra.mxu0 %v3387
  %3568 = vmatprep.subr.mxu0 0.0
  %3569 = vmatpush1.msra.mxu0 %v3388
  %3570 = vmatprep.subr.mxu0 0.0
  %3571 = vmatpush1.msra.mxu0 %v3389
  %3572 = vmatprep.subr.mxu0 0.0
  %3573 = vmatpush1.msra.mxu0 %v3390
  %3574 = vmatprep.subr.mxu0 0.0
  %3575 = vmatpush1.msra.mxu0 %v3391
  %3576 = vmatprep.subr.mxu0 0.0
  %3577 = vmatpush1.msra.mxu0 %v3392
  %3578 = vmatprep.subr.mxu0 0.0
  %3579 = vmatpush1.msra.mxu0 %v3393
  %3580 = vmatprep.subr.mxu0 0.0
  %3581 = vmatpush1.msra.mxu0 0.0
  %3582 = vmatprep.subr.mxu0 0.0
  %3583 = vmatpush1.msra.mxu0 0.0
  %3584 = vmatprep.subr.mxu0 0.0
  %3585 = vmatpush1.msra.mxu0 0.0
  %3586 = vmatprep.subr.mxu0 0.0
  %3587 = vmatpush1.msra.mxu0 0.0
  %3588 = vmatprep.subr.mxu0 0.0
  %3589 = vmatpush1.msra.mxu0 0.0
  %3590 = vmatprep.subr.mxu0 0.0
  %3591 = vmatpush1.msra.mxu0 0.0
  %3592 = vmatprep.subr.mxu0 0.0
  %3593 = vmatpush1.msra.mxu0 0.0
  %3594 = vmatprep.subr.mxu0 0.0
  %3595 = vmatpush1.msra.mxu0 0.0
  %3596 = vmatprep.subr.mxu0 0.0
  %3597 = vmatpush1.msra.mxu0 0.0
  %3598 = vmatprep.subr.mxu0 0.0
  %3599 = vmatpush1.msra.mxu0 0.0
  %3600 = vmatprep.subr.mxu0 0.0
  %3601 = vmatpush1.msra.mxu0 0.0
  %3602 = vmatprep.subr.mxu0 0.0
  %3603 = vmatpush1.msra.mxu0 0.0
  %3604 = vmatprep.subr.mxu0 0.0
  %3605 = vmatpush1.msra.mxu0 0.0
  %3606 = vmatprep.subr.mxu0 0.0
  %3607 = vmatpush1.msra.mxu0 0.0
  %3608 = vmatprep.subr.mxu0 0.0
  %3609 = vmatpush1.msra.mxu0 0.0
  %3610 = vmatprep.subr.mxu0 0.0
  %3611 = vmatpush1.msra.mxu0 0.0
  %3612 = vmatprep.subr.mxu0 0.0
  %3613 = vmatpush1.msra.mxu0 0.0
  %3614 = vmatprep.subr.mxu0 0.0
  %3615 = vmatpush1.msra.mxu0 0.0
  %3616 = vmatprep.subr.mxu0 0.0
  %3617 = vmatpush1.msra.mxu0 0.0
  %3618 = vmatprep.subr.mxu0 0.0
  %3619 = vmatpush1.msra.mxu0 0.0
  %3620 = vmatprep.subr.mxu0 0.0
  %3621 = vmatpush1.msra.mxu0 0.0
  %3622 = vmatprep.subr.mxu0 0.0
  %3623 = vmatpush1.msra.mxu0 0.0
  %3624 = vmatprep.subr.mxu0 0.0
  %3625 = vmatpush1.msra.mxu0 0.0
  %3626 = vmatprep.subr.mxu0 0.0
  %3627 = vmatpush1.msra.mxu0 0.0
  %3628 = vmatprep.mubr.f32.mxu0 0.0
  %3629 = vmatmul.mubr.f32.gmra.mrb[0].mxu0 %v3541
  %v3630 = vpop.f32.mrb[0].mxu0
  %v3631 = vadd.f32 %v3502, %v3630
  %v3632 = vpop.f32.mrb[0].mxu0
  %3633 = vmatprep.mubr.f32.mxu0 0.0
  %3634 = vmatmul.mubr.f32.gmra.mrb[0].mxu0 %v3544
  %v3635 = vpop.f32.mrb[0].mxu0
  %v3636 = vadd.f32 %v3507, %v3635
  %v3637 = vpop.f32.mrb[0].mxu0
  %3638 = vmatprep.mubr.f32.mxu0 0.0
  %3639 = vmatmul.mubr.f32.gmra.mrb[0].mxu0 %v3547
  %v3640 = vpop.f32.mrb[0].mxu0
  %v3641 = vadd.f32 %v3512, %v3640
  %v3642 = vpop.f32.mrb[0].mxu0
  %3643 = vmatprep.mubr.f32.mxu0 0.0
  %3644 = vmatmul.mubr.f32.gmra.mrb[0].mxu0 %v3550
  %v3645 = vpop.f32.mrb[0].mxu0
  %v3646 = vadd.f32 %v3517, %v3645
  %v3647 = vpop.f32.mrb[0].mxu0
  %3648 = vmatprep.mubr.f32.mxu0 0.0
  %3649 = vmatmul.mubr.f32.gmra.mrb[0].mxu0 %v3553
  %v3650 = vpop.f32.mrb[0].mxu0
  %v3651 = vadd.f32 %v3522, %v3650
  %v3652 = vpop.f32.mrb[0].mxu0
  %3653 = vmatprep.mubr.f32.mxu0 0.0
  %3654 = vmatmul.mubr.f32.gmra.mrb[0].mxu0 %v3556
  %v3655 = vpop.f32.mrb[0].mxu0
  %v3656 = vadd.f32 %v3527, %v3655
  %v3657 = vpop.f32.mrb[0].mxu0
  %3658 = vmatprep.mubr.f32.mxu0 0.0
  %3659 = vmatmul.mubr.f32.gmra.mrb[0].mxu0 %v3559
  %v3660 = vpop.f32.mrb[0].mxu0
  %v3661 = vadd.f32 %v3532, %v3660
  %v3662 = vpop.f32.mrb[0].mxu0
  %3663 = vmatprep.mubr.f32.mxu0 0.0
  %3664 = vmatmul.mubr.f32.gmra.mrb[0].mxu0 %v3562
  %v3665 = vpop.f32.mrb[0].mxu0
  %v3666 = vadd.f32 %v3537, %v3665
  %v3667 = vpop.f32.mrb[0].mxu0
  %3668 = vdwg.mxu0
  %v3669 = vld [vmem:[#allocation5 + $0x2] sm:$0xff]
  %v3670 = vld [vmem:[#allocation5 + $0xa] sm:$0xff]
  %v3671 = vld [vmem:[#allocation5 + $0x12] sm:$0xff]
  %v3672 = vld [vmem:[#allocation5 + $0x1a] sm:$0xff]
  %v3673 = vld [vmem:[#allocation5 + $0x22] sm:$0xff]
  %v3674 = vld [vmem:[#allocation5 + $0x2a] sm:$0xff]
  %v3675 = vld [vmem:[#allocation5 + $0x32] sm:$0xff]
  %v3676 = vld [vmem:[#allocation5 + $0x3a] sm:$0xff]
  %s3677 = scalar_lea.vmem %s5, 128
  %v3678 = vld [vmem:[%s3677] sm:$0xff]
  %v3679 = vld [vmem:[%s3677 + $0x8] sm:$0xff]
  %v3680 = vld [vmem:[%s3677 + $0x10] sm:$0xff]
  %v3681 = vld [vmem:[%s3677 + $0x18] sm:$0xff]
  %v3682 = vld [vmem:[%s3677 + $0x20] sm:$0xff]
  %v3683 = vld [vmem:[%s3677 + $0x28] sm:$0xff]
  %v3684 = vld [vmem:[%s3677 + $0x30] sm:$0xff]
  %v3685 = vld [vmem:[%s3677 + $0x38] sm:$0xff]
  %v3687 = vsel %vm3287, %v3669, 0
  %v3690 = vsel %vm3287, %v3670, 0
  %v3693 = vsel %vm3287, %v3671, 0
  %v3696 = vsel %vm3287, %v3672, 0
  %v3699 = vsel %vm3287, %v3673, 0
  %v3702 = vsel %vm3287, %v3674, 0
  %v3705 = vsel %vm3287, %v3675, 0
  %v3708 = vsel %vm3287, %v3676, 0
  %3710 = vmatprep.subr.mxu0 0.0
  %3711 = vmatpush1.msra.mxu0 %v3678
  %3712 = vmatprep.subr.mxu0 0.0
  %3713 = vmatpush1.msra.mxu0 %v3679
  %3714 = vmatprep.subr.mxu0 0.0
  %3715 = vmatpush1.msra.mxu0 %v3680
  %3716 = vmatprep.subr.mxu0 0.0
  %3717 = vmatpush1.msra.mxu0 %v3681
  %3718 = vmatprep.subr.mxu0 0.0
  %3719 = vmatpush1.msra.mxu0 %v3682
  %3720 = vmatprep.subr.mxu0 0.0
  %3721 = vmatpush1.msra.mxu0 %v3683
  %3722 = vmatprep.subr.mxu0 0.0
  %3723 = vmatpush1.msra.mxu0 %v3684
  %3724 = vmatprep.subr.mxu0 0.0
  %3725 = vmatpush1.msra.mxu0 %v3685
  %3726 = vmatprep.subr.mxu0 0.0
  %3727 = vmatpush1.msra.mxu0 0.0
  %3728 = vmatprep.subr.mxu0 0.0
  %3729 = vmatpush1.msra.mxu0 0.0
  %3730 = vmatprep.subr.mxu0 0.0
  %3731 = vmatpush1.msra.mxu0 0.0
  %3732 = vmatprep.subr.mxu0 0.0
  %3733 = vmatpush1.msra.mxu0 0.0
  %3734 = vmatprep.subr.mxu0 0.0
  %3735 = vmatpush1.msra.mxu0 0.0
  %3736 = vmatprep.subr.mxu0 0.0
  %3737 = vmatpush1.msra.mxu0 0.0
  %3738 = vmatprep.subr.mxu0 0.0
  %3739 = vmatpush1.msra.mxu0 0.0
  %3740 = vmatprep.subr.mxu0 0.0
  %3741 = vmatpush1.msra.mxu0 0.0
  %3742 = vmatprep.subr.mxu0 0.0
  %3743 = vmatpush1.msra.mxu0 0.0
  %3744 = vmatprep.subr.mxu0 0.0
  %3745 = vmatpush1.msra.mxu0 0.0
  %3746 = vmatprep.subr.mxu0 0.0
  %3747 = vmatpush1.msra.mxu0 0.0
  %3748 = vmatprep.subr.mxu0 0.0
  %3749 = vmatpush1.msra.mxu0 0.0
  %3750 = vmatprep.subr.mxu0 0.0
  %3751 = vmatpush1.msra.mxu0 0.0
  %3752 = vmatprep.subr.mxu0 0.0
  %3753 = vmatpush1.msra.mxu0 0.0
  %3754 = vmatprep.subr.mxu0 0.0
  %3755 = vmatpush1.msra.mxu0 0.0
  %3756 = vmatprep.subr.mxu0 0.0
  %3757 = vmatpush1.msra.mxu0 0.0
  %3758 = vmatprep.subr.mxu0 0.0
  %3759 = vmatpush1.msra.mxu0 0.0
  %3760 = vmatprep.subr.mxu0 0.0
  %3761 = vmatpush1.msra.mxu0 0.0
  %3762 = vmatprep.subr.mxu0 0.0
  %3763 = vmatpush1.msra.mxu0 0.0
  %3764 = vmatprep.subr.mxu0 0.0
  %3765 = vmatpush1.msra.mxu0 0.0
  %3766 = vmatprep.subr.mxu0 0.0
  %3767 = vmatpush1.msra.mxu0 0.0
  %3768 = vmatprep.subr.mxu0 0.0
  %3769 = vmatpush1.msra.mxu0 0.0
  %3770 = vmatprep.subr.mxu0 0.0
  %3771 = vmatpush1.msra.mxu0 0.0
  %3772 = vmatprep.subr.mxu0 0.0
  %3773 = vmatpush1.msra.mxu0 0.0
  %3774 = vmatprep.mubr.f32.mxu0 0.0
  %3775 = vmatmul.mubr.f32.gmra.mrb[0].mxu0 %v3687
  %v3776 = vpop.f32.mrb[0].mxu0
  %v3777 = vadd.f32 0.0, %v3776
  %v3778 = vpop.f32.mrb[0].mxu0
  %3779 = vmatprep.mubr.f32.mxu0 0.0
  %3780 = vmatmul.mubr.f32.gmra.mrb[0].mxu0 %v3690
  %v3781 = vpop.f32.mrb[0].mxu0
  %v3782 = vadd.f32 0.0, %v3781
  %v3783 = vpop.f32.mrb[0].mxu0
  %3784 = vmatprep.mubr.f32.mxu0 0.0
  %3785 = vmatmul.mubr.f32.gmra.mrb[0].mxu0 %v3693
  %v3786 = vpop.f32.mrb[0].mxu0
  %v3787 = vadd.f32 0.0, %v3786
  %v3788 = vpop.f32.mrb[0].mxu0
  %3789 = vmatprep.mubr.f32.mxu0 0.0
  %3790 = vmatmul.mubr.f32.gmra.mrb[0].mxu0 %v3696
  %v3791 = vpop.f32.mrb[0].mxu0
  %v3792 = vadd.f32 0.0, %v3791
  %v3793 = vpop.f32.mrb[0].mxu0
  %3794 = vmatprep.mubr.f32.mxu0 0.0
  %3795 = vmatmul.mubr.f32.gmra.mrb[0].mxu0 %v3699
  %v3796 = vpop.f32.mrb[0].mxu0
  %v3797 = vadd.f32 0.0, %v3796
  %v3798 = vpop.f32.mrb[0].mxu0
  %3799 = vmatprep.mubr.f32.mxu0 0.0
  %3800 = vmatmul.mubr.f32.gmra.mrb[0].mxu0 %v3702
  %v3801 = vpop.f32.mrb[0].mxu0
  %v3802 = vadd.f32 0.0, %v3801
  %v3803 = vpop.f32.mrb[0].mxu0
  %3804 = vmatprep.mubr.f32.mxu0 0.0
  %3805 = vmatmul.mubr.f32.gmra.mrb[0].mxu0 %v3705
  %v3806 = vpop.f32.mrb[0].mxu0
  %v3807 = vadd.f32 0.0, %v3806
  %v3808 = vpop.f32.mrb[0].mxu0
  %3809 = vmatprep.mubr.f32.mxu0 0.0
  %3810 = vmatmul.mubr.f32.gmra.mrb[0].mxu0 %v3708
  %v3811 = vpop.f32.mrb[0].mxu0
  %v3812 = vadd.f32 0.0, %v3811
  %v3813 = vpop.f32.mrb[0].mxu0
  %3814 = vdwg.mxu0
  %v3815 = vadd.f32 %v3631, %v3777
  %v3816 = vadd.f32 %v3636, %v3782
  %v3817 = vadd.f32 %v3641, %v3787
  %v3818 = vadd.f32 %v3646, %v3792
  %v3819 = vadd.f32 %v3651, %v3797
  %v3820 = vadd.f32 %v3656, %v3802
  %v3821 = vadd.f32 %v3661, %v3807
  %v3822 = vadd.f32 %v3666, %v3812
  %v3823 = vld [vmem:[#allocation5 + $0x3] sm:$0xff]
  %v3824 = vld [vmem:[#allocation5 + $0xb] sm:$0xff]
  %v3825 = vld [vmem:[#allocation5 + $0x13] sm:$0xff]
  %v3826 = vld [vmem:[#allocation5 + $0x1b] sm:$0xff]
  %v3827 = vld [vmem:[#allocation5 + $0x23] sm:$0xff]
  %v3828 = vld [vmem:[#allocation5 + $0x2b] sm:$0xff]
  %v3829 = vld [vmem:[#allocation5 + $0x33] sm:$0xff]
  %v3830 = vld [vmem:[#allocation5 + $0x3b] sm:$0xff]
  %s3831 = scalar_lea.vmem %s5, 192
  %v3832 = vld [vmem:[%s3831] sm:$0xff]
  %v3833 = vld [vmem:[%s3831 + $0x8] sm:$0xff]
  %v3834 = vld [vmem:[%s3831 + $0x10] sm:$0xff]
  %v3835 = vld [vmem:[%s3831 + $0x18] sm:$0xff]
  %v3836 = vld [vmem:[%s3831 + $0x20] sm:$0xff]
  %v3837 = vld [vmem:[%s3831 + $0x28] sm:$0xff]
  %v3838 = vld [vmem:[%s3831 + $0x30] sm:$0xff]
  %v3839 = vld [vmem:[%s3831 + $0x38] sm:$0xff]
  %v3841 = vsel %vm3287, %v3823, 0
  %v3844 = vsel %vm3287, %v3824, 0
  %v3847 = vsel %vm3287, %v3825, 0
  %v3850 = vsel %vm3287, %v3826, 0
  %v3853 = vsel %vm3287, %v3827, 0
  %v3856 = vsel %vm3287, %v3828, 0
  %v3859 = vsel %vm3287, %v3829, 0
  %v3862 = vsel %vm3287, %v3830, 0
  %3864 = vmatprep.subr.mxu0 0.0
  %3865 = vmatpush1.msra.mxu0 %v3832
  %3866 = vmatprep.subr.mxu0 0.0
  %3867 = vmatpush1.msra.mxu0 %v3833
  %3868 = vmatprep.subr.mxu0 0.0
  %3869 = vmatpush1.msra.mxu0 %v3834
  %3870 = vmatprep.subr.mxu0 0.0
  %3871 = vmatpush1.msra.mxu0 %v3835
  %3872 = vmatprep.subr.mxu0 0.0
  %3873 = vmatpush1.msra.mxu0 %v3836
  %3874 = vmatprep.subr.mxu0 0.0
  %3875 = vmatpush1.msra.mxu0 %v3837
  %3876 = vmatprep.subr.mxu0 0.0
  %3877 = vmatpush1.msra.mxu0 %v3838
  %3878 = vmatprep.subr.mxu0 0.0
  %3879 = vmatpush1.msra.mxu0 %v3839
  %3880 = vmatprep.subr.mxu0 0.0
  %3881 = vmatpush1.msra.mxu0 0.0
  %3882 = vmatprep.subr.mxu0 0.0
  %3883 = vmatpush1.msra.mxu0 0.0
  %3884 = vmatprep.subr.mxu0 0.0
  %3885 = vmatpush1.msra.mxu0 0.0
  %3886 = vmatprep.subr.mxu0 0.0
  %3887 = vmatpush1.msra.mxu0 0.0
  %3888 = vmatprep.subr.mxu0 0.0
  %3889 = vmatpush1.msra.mxu0 0.0
  %3890 = vmatprep.subr.mxu0 0.0
  %3891 = vmatpush1.msra.mxu0 0.0
  %3892 = vmatprep.subr.mxu0 0.0
  %3893 = vmatpush1.msra.mxu0 0.0
  %3894 = vmatprep.subr.mxu0 0.0
  %3895 = vmatpush1.msra.mxu0 0.0
  %3896 = vmatprep.subr.mxu0 0.0
  %3897 = vmatpush1.msra.mxu0 0.0
  %3898 = vmatprep.subr.mxu0 0.0
  %3899 = vmatpush1.msra.mxu0 0.0
  %3900 = vmatprep.subr.mxu0 0.0
  %3901 = vmatpush1.msra.mxu0 0.0
  %3902 = vmatprep.subr.mxu0 0.0
  %3903 = vmatpush1.msra.mxu0 0.0
  %3904 = vmatprep.subr.mxu0 0.0
  %3905 = vmatpush1.msra.mxu0 0.0
  %3906 = vmatprep.subr.mxu0 0.0
  %3907 = vmatpush1.msra.mxu0 0.0
  %3908 = vmatprep.subr.mxu0 0.0
  %3909 = vmatpush1.msra.mxu0 0.0
  %3910 = vmatprep.subr.mxu0 0.0
  %3911 = vmatpush1.msra.mxu0 0.0
  %3912 = vmatprep.subr.mxu0 0.0
  %3913 = vmatpush1.msra.mxu0 0.0
  %3914 = vmatprep.subr.mxu0 0.0
  %3915 = vmatpush1.msra.mxu0 0.0
  %3916 = vmatprep.subr.mxu0 0.0
  %3917 = vmatpush1.msra.mxu0 0.0
  %3918 = vmatprep.subr.mxu0 0.0
  %3919 = vmatpush1.msra.mxu0 0.0
  %3920 = vmatprep.subr.mxu0 0.0
  %3921 = vmatpush1.msra.mxu0 0.0
  %3922 = vmatprep.subr.mxu0 0.0
  %3923 = vmatpush1.msra.mxu0 0.0
  %3924 = vmatprep.subr.mxu0 0.0
  %3925 = vmatpush1.msra.mxu0 0.0
  %3926 = vmatprep.subr.mxu0 0.0
  %3927 = vmatpush1.msra.mxu0 0.0
  %3928 = vmatprep.mubr.f32.mxu0 0.0
  %3929 = vmatmul.mubr.f32.gmra.mrb[0].mxu0 %v3841
  %v3930 = vpop.f32.mrb[0].mxu0
  %v3931 = vadd.f32 0.0, %v3930
  %v3932 = vpop.f32.mrb[0].mxu0
  %3933 = vmatprep.mubr.f32.mxu0 0.0
  %3934 = vmatmul.mubr.f32.gmra.mrb[0].mxu0 %v3844
  %v3935 = vpop.f32.mrb[0].mxu0
  %v3936 = vadd.f32 0.0, %v3935
  %v3937 = vpop.f32.mrb[0].mxu0
  %3938 = vmatprep.mubr.f32.mxu0 0.0
  %3939 = vmatmul.mubr.f32.gmra.mrb[0].mxu0 %v3847
  %v3940 = vpop.f32.mrb[0].mxu0
  %v3941 = vadd.f32 0.0, %v3940
  %v3942 = vpop.f32.mrb[0].mxu0
  %3943 = vmatprep.mubr.f32.mxu0 0.0
  %3944 = vmatmul.mubr.f32.gmra.mrb[0].mxu0 %v3850
  %v3945 = vpop.f32.mrb[0].mxu0
  %v3946 = vadd.f32 0.0, %v3945
  %v3947 = vpop.f32.mrb[0].mxu0
  %3948 = vmatprep.mubr.f32.mxu0 0.0
  %3949 = vmatmul.mubr.f32.gmra.mrb[0].mxu0 %v3853
  %v3950 = vpop.f32.mrb[0].mxu0
  %v3951 = vadd.f32 0.0, %v3950
  %v3952 = vpop.f32.mrb[0].mxu0
  %3953 = vmatprep.mubr.f32.mxu0 0.0
  %3954 = vmatmul.mubr.f32.gmra.mrb[0].mxu0 %v3856
  %v3955 = vpop.f32.mrb[0].mxu0
  %v3956 = vadd.f32 0.0, %v3955
  %v3957 = vpop.f32.mrb[0].mxu0
  %3958 = vmatprep.mubr.f32.mxu0 0.0
  %3959 = vmatmul.mubr.f32.gmra.mrb[0].mxu0 %v3859
  %v3960 = vpop.f32.mrb[0].mxu0
  %v3961 = vadd.f32 0.0, %v3960
  %v3962 = vpop.f32.mrb[0].mxu0
  %3963 = vmatprep.mubr.f32.mxu0 0.0
  %3964 = vmatmul.mubr.f32.gmra.mrb[0].mxu0 %v3862
  %v3965 = vpop.f32.mrb[0].mxu0
  %v3966 = vadd.f32 0.0, %v3965
  %v3967 = vpop.f32.mrb[0].mxu0
  %3968 = vdwg.mxu0
  %v3969 = vadd.f32 %v3815, %v3931
  %v3970 = vadd.f32 %v3816, %v3936
  %v3971 = vadd.f32 %v3817, %v3941
  %v3972 = vadd.f32 %v3818, %v3946
  %v3973 = vadd.f32 %v3819, %v3951
  %v3974 = vadd.f32 %v3820, %v3956
  %v3975 = vadd.f32 %v3821, %v3961
  %v3976 = vadd.f32 %v3822, %v3966
  %v3977 = vld [vmem:[#allocation5 + $0x4] sm:$0xff]
  %v3978 = vld [vmem:[#allocation5 + $0xc] sm:$0xff]
  %v3979 = vld [vmem:[#allocation5 + $0x14] sm:$0xff]
  %v3980 = vld [vmem:[#allocation5 + $0x1c] sm:$0xff]
  %v3981 = vld [vmem:[#allocation5 + $0x24] sm:$0xff]
  %v3982 = vld [vmem:[#allocation5 + $0x2c] sm:$0xff]
  %v3983 = vld [vmem:[#allocation5 + $0x34] sm:$0xff]
  %v3984 = vld [vmem:[#allocation5 + $0x3c] sm:$0xff]
  %s3985 = scalar_lea.vmem %s5, 256
  %v3986 = vld [vmem:[%s3985] sm:$0xff]
  %v3987 = vld [vmem:[%s3985 + $0x8] sm:$0xff]
  %v3988 = vld [vmem:[%s3985 + $0x10] sm:$0xff]
  %v3989 = vld [vmem:[%s3985 + $0x18] sm:$0xff]
  %v3990 = vld [vmem:[%s3985 + $0x20] sm:$0xff]
  %v3991 = vld [vmem:[%s3985 + $0x28] sm:$0xff]
  %v3992 = vld [vmem:[%s3985 + $0x30] sm:$0xff]
  %v3993 = vld [vmem:[%s3985 + $0x38] sm:$0xff]
  %v3995 = vsel %vm3287, %v3977, 0
  %v3998 = vsel %vm3287, %v3978, 0
  %v4001 = vsel %vm3287, %v3979, 0
  %v4004 = vsel %vm3287, %v3980, 0
  %v4007 = vsel %vm3287, %v3981, 0
  %v4010 = vsel %vm3287, %v3982, 0
  %v4013 = vsel %vm3287, %v3983, 0
  %v4016 = vsel %vm3287, %v3984, 0
  %4018 = vmatprep.subr.mxu0 0.0
  %4019 = vmatpush1.msra.mxu0 %v3986
  %4020 = vmatprep.subr.mxu0 0.0
  %4021 = vmatpush1.msra.mxu0 %v3987
  %4022 = vmatprep.subr.mxu0 0.0
  %4023 = vmatpush1.msra.mxu0 %v3988
  %4024 = vmatprep.subr.mxu0 0.0
  %4025 = vmatpush1.msra.mxu0 %v3989
  %4026 = vmatprep.subr.mxu0 0.0
  %4027 = vmatpush1.msra.mxu0 %v3990
  %4028 = vmatprep.subr.mxu0 0.0
  %4029 = vmatpush1.msra.mxu0 %v3991
  %4030 = vmatprep.subr.mxu0 0.0
  %4031 = vmatpush1.msra.mxu0 %v3992
  %4032 = vmatprep.subr.mxu0 0.0
  %4033 = vmatpush1.msra.mxu0 %v3993
  %4034 = vmatprep.subr.mxu0 0.0
  %4035 = vmatpush1.msra.mxu0 0.0
  %4036 = vmatprep.subr.mxu0 0.0
  %4037 = vmatpush1.msra.mxu0 0.0
  %4038 = vmatprep.subr.mxu0 0.0
  %4039 = vmatpush1.msra.mxu0 0.0
  %4040 = vmatprep.subr.mxu0 0.0
  %4041 = vmatpush1.msra.mxu0 0.0
  %4042 = vmatprep.subr.mxu0 0.0
  %4043 = vmatpush1.msra.mxu0 0.0
  %4044 = vmatprep.subr.mxu0 0.0
  %4045 = vmatpush1.msra.mxu0 0.0
  %4046 = vmatprep.subr.mxu0 0.0
  %4047 = vmatpush1.msra.mxu0 0.0
  %4048 = vmatprep.subr.mxu0 0.0
  %4049 = vmatpush1.msra.mxu0 0.0
  %4050 = vmatprep.subr.mxu0 0.0
  %4051 = vmatpush1.msra.mxu0 0.0
  %4052 = vmatprep.subr.mxu0 0.0
  %4053 = vmatpush1.msra.mxu0 0.0
  %4054 = vmatprep.subr.mxu0 0.0
  %4055 = vmatpush1.msra.mxu0 0.0
  %4056 = vmatprep.subr.mxu0 0.0
  %4057 = vmatpush1.msra.mxu0 0.0
  %4058 = vmatprep.subr.mxu0 0.0
  %4059 = vmatpush1.msra.mxu0 0.0
  %4060 = vmatprep.subr.mxu0 0.0
  %4061 = vmatpush1.msra.mxu0 0.0
  %4062 = vmatprep.subr.mxu0 0.0
  %4063 = vmatpush1.msra.mxu0 0.0
  %4064 = vmatprep.subr.mxu0 0.0
  %4065 = vmatpush1.msra.mxu0 0.0
  %4066 = vmatprep.subr.mxu0 0.0
  %4067 = vmatpush1.msra.mxu0 0.0
  %4068 = vmatprep.subr.mxu0 0.0
  %4069 = vmatpush1.msra.mxu0 0.0
  %4070 = vmatprep.subr.mxu0 0.0
  %4071 = vmatpush1.msra.mxu0 0.0
  %4072 = vmatprep.subr.mxu0 0.0
  %4073 = vmatpush1.msra.mxu0 0.0
  %4074 = vmatprep.subr.mxu0 0.0
  %4075 = vmatpush1.msra.mxu0 0.0
  %4076 = vmatprep.subr.mxu0 0.0
  %4077 = vmatpush1.msra.mxu0 0.0
  %4078 = vmatprep.subr.mxu0 0.0
  %4079 = vmatpush1.msra.mxu0 0.0
  %4080 = vmatprep.subr.mxu0 0.0
  %4081 = vmatpush1.msra.mxu0 0.0
  %4082 = vmatprep.mubr.f32.mxu0 0.0
  %4083 = vmatmul.mubr.f32.gmra.mrb[0].mxu0 %v3995
  %v4084 = vpop.f32.mrb[0].mxu0
  %v4085 = vadd.f32 0.0, %v4084
  %v4086 = vpop.f32.mrb[0].mxu0
  %4087 = vmatprep.mubr.f32.mxu0 0.0
  %4088 = vmatmul.mubr.f32.gmra.mrb[0].mxu0 %v3998
  %v4089 = vpop.f32.mrb[0].mxu0
  %v4090 = vadd.f32 0.0, %v4089
  %v4091 = vpop.f32.mrb[0].mxu0
  %4092 = vmatprep.mubr.f32.mxu0 0.0
  %4093 = vmatmul.mubr.f32.gmra.mrb[0].mxu0 %v4001
  %v4094 = vpop.f32.mrb[0].mxu0
  %v4095 = vadd.f32 0.0, %v4094
  %v4096 = vpop.f32.mrb[0].mxu0
  %4097 = vmatprep.mubr.f32.mxu0 0.0
  %4098 = vmatmul.mubr.f32.gmra.mrb[0].mxu0 %v4004
  %v4099 = vpop.f32.mrb[0].mxu0
  %v4100 = vadd.f32 0.0, %v4099
  %v4101 = vpop.f32.mrb[0].mxu0
  %4102 = vmatprep.mubr.f32.mxu0 0.0
  %4103 = vmatmul.mubr.f32.gmra.mrb[0].mxu0 %v4007
  %v4104 = vpop.f32.mrb[0].mxu0
  %v4105 = vadd.f32 0.0, %v4104
  %v4106 = vpop.f32.mrb[0].mxu0
  %4107 = vmatprep.mubr.f32.mxu0 0.0
  %4108 = vmatmul.mubr.f32.gmra.mrb[0].mxu0 %v4010
  %v4109 = vpop.f32.mrb[0].mxu0
  %v4110 = vadd.f32 0.0, %v4109
  %v4111 = vpop.f32.mrb[0].mxu0
  %4112 = vmatprep.mubr.f32.mxu0 0.0
  %4113 = vmatmul.mubr.f32.gmra.mrb[0].mxu0 %v4013
  %v4114 = vpop.f32.mrb[0].mxu0
  %v4115 = vadd.f32 0.0, %v4114
  %v4116 = vpop.f32.mrb[0].mxu0
  %4117 = vmatprep.mubr.f32.mxu0 0.0
  %4118 = vmatmul.mubr.f32.gmra.mrb[0].mxu0 %v4016
  %v4119 = vpop.f32.mrb[0].mxu0
  %v4120 = vadd.f32 0.0, %v4119
  %v4121 = vpop.f32.mrb[0].mxu0
  %4122 = vdwg.mxu0
  %v4123 = vadd.f32 %v3969, %v4085
  %v4124 = vadd.f32 %v3970, %v4090
  %v4125 = vadd.f32 %v3971, %v4095
  %v4126 = vadd.f32 %v3972, %v4100
  %v4127 = vadd.f32 %v3973, %v4105
  %v4128 = vadd.f32 %v3974, %v4110
  %v4129 = vadd.f32 %v3975, %v4115
  %v4130 = vadd.f32 %v3976, %v4120
  %v4131 = vld [vmem:[%s6] sm:$0x1]
  %v4133 = vlaneseq
  %v4134 = vshrl.u32 %v4133, 7
  %v4135 = vsub.s32 0, %v4134
  %v4136 = vrot.slane %v4131, %v4135
  %v4138 = vadd.f32 %v4123, %v4136
  %v4139 = vadd.f32 %v4124, %v4136
  %v4140 = vadd.f32 %v4125, %v4136
  %v4141 = vadd.f32 %v4126, %v4136
  %v4142 = vadd.f32 %v4127, %v4136
  %v4143 = vadd.f32 %v4128, %v4136
  %v4144 = vadd.f32 %v4129, %v4136
  %v4145 = vadd.f32 %v4130, %v4136
  %v4146 = vmax.f32 %v4138, 0.0
  %v4147 = vmax.f32 %v4139, 0.0
  %v4148 = vmax.f32 %v4140, 0.0
  %v4149 = vmax.f32 %v4141, 0.0
  %v4150 = vmax.f32 %v4142, 0.0
  %v4151 = vmax.f32 %v4143, 0.0
  %v4152 = vmax.f32 %v4144, 0.0
  %v4153 = vmax.f32 %v4145, 0.0
  %v4154 = vld [vmem:[%s7] sm:$0xff]
  %v4155 = vld [vmem:[%s7 + $0x8] sm:$0xff]
  %v4156 = vld [vmem:[%s8] sm:$0x1]
  %v4158 = vlaneseq
  %v4159 = vshrl.u32 %v4158, 7
  %v4160 = vsub.s32 0, %v4159
  %v4161 = vrot.slane %v4156, %v4160
  %vm4163 = vcmask 130048
  %v4165 = vsel %vm4163, %v4146, 0
  %v4168 = vsel %vm4163, %v4147, 0
  %v4171 = vsel %vm4163, %v4148, 0
  %v4174 = vsel %vm4163, %v4149, 0
  %v4177 = vsel %vm4163, %v4150, 0
  %v4180 = vsel %vm4163, %v4151, 0
  %v4183 = vsel %vm4163, %v4152, 0
  %v4186 = vsel %vm4163, %v4153, 0
  %4188 = vmatprep.subr.mxu0 0.0
  %4189 = vmatpush1.msra.mxu0 %v4154
  %4190 = vmatprep.subr.mxu0 0.0
  %4191 = vmatpush1.msra.mxu0 %v4155
  %4192 = vmatprep.subr.mxu0 0.0
  %4193 = vmatpush1.msra.mxu0 0.0
  %4194 = vmatprep.subr.mxu0 0.0
  %4195 = vmatpush1.msra.mxu0 0.0
  %4196 = vmatprep.subr.mxu0 0.0
  %4197 = vmatpush1.msra.mxu0 0.0
  %4198 = vmatprep.subr.mxu0 0.0
  %4199 = vmatpush1.msra.mxu0 0.0
  %4200 = vmatprep.subr.mxu0 0.0
  %4201 = vmatpush1.msra.mxu0 0.0
  %4202 = vmatprep.subr.mxu0 0.0
  %4203 = vmatpush1.msra.mxu0 0.0
  %4204 = vmatprep.subr.mxu0 0.0
  %4205 = vmatpush1.msra.mxu0 0.0
  %4206 = vmatprep.subr.mxu0 0.0
  %4207 = vmatpush1.msra.mxu0 0.0
  %4208 = vmatprep.subr.mxu0 0.0
  %4209 = vmatpush1.msra.mxu0 0.0
  %4210 = vmatprep.subr.mxu0 0.0
  %4211 = vmatpush1.msra.mxu0 0.0
  %4212 = vmatprep.subr.mxu0 0.0
  %4213 = vmatpush1.msra.mxu0 0.0
  %4214 = vmatprep.subr.mxu0 0.0
  %4215 = vmatpush1.msra.mxu0 0.0
  %4216 = vmatprep.subr.mxu0 0.0
  %4217 = vmatpush1.msra.mxu0 0.0
  %4218 = vmatprep.subr.mxu0 0.0
  %4219 = vmatpush1.msra.mxu0 0.0
  %4220 = vmatprep.subr.mxu0 0.0
  %4221 = vmatpush1.msra.mxu0 0.0
  %4222 = vmatprep.subr.mxu0 0.0
  %4223 = vmatpush1.msra.mxu0 0.0
  %4224 = vmatprep.subr.mxu0 0.0
  %4225 = vmatpush1.msra.mxu0 0.0
  %4226 = vmatprep.subr.mxu0 0.0
  %4227 = vmatpush1.msra.mxu0 0.0
  %4228 = vmatprep.subr.mxu0 0.0
  %4229 = vmatpush1.msra.mxu0 0.0
  %4230 = vmatprep.subr.mxu0 0.0
  %4231 = vmatpush1.msra.mxu0 0.0
  %4232 = vmatprep.subr.mxu0 0.0
  %4233 = vmatpush1.msra.mxu0 0.0
  %4234 = vmatprep.subr.mxu0 0.0
  %4235 = vmatpush1.msra.mxu0 0.0
  %4236 = vmatprep.subr.mxu0 0.0
  %4237 = vmatpush1.msra.mxu0 0.0
  %4238 = vmatprep.subr.mxu0 0.0
  %4239 = vmatpush1.msra.mxu0 0.0
  %4240 = vmatprep.subr.mxu0 0.0
  %4241 = vmatpush1.msra.mxu0 0.0
  %4242 = vmatprep.subr.mxu0 0.0
  %4243 = vmatpush1.msra.mxu0 0.0
  %4244 = vmatprep.subr.mxu0 0.0
  %4245 = vmatpush1.msra.mxu0 0.0
  %4246 = vmatprep.subr.mxu0 0.0
  %4247 = vmatpush1.msra.mxu0 0.0
  %4248 = vmatprep.subr.mxu0 0.0
  %4249 = vmatpush1.msra.mxu0 0.0
  %4250 = vmatprep.subr.mxu0 0.0
  %4251 = vmatpush1.msra.mxu0 0.0
  %4252 = vmatprep.mubr.f32.mxu0 0.0
  %4253 = vmatmul.mubr.f32.gmra.mrb[0].mxu0 %v4165
  %v4254 = vpop.f32.mrb[0].mxu0
  %v4255 = vadd.f32 %v4161, %v4254
  %v4256 = vpop.f32.mrb[0].mxu0
  %4257 = vmatprep.mubr.f32.mxu0 0.0
  %4258 = vmatmul.mubr.f32.gmra.mrb[0].mxu0 %v4168
  %v4259 = vpop.f32.mrb[0].mxu0
  %v4260 = vadd.f32 %v4161, %v4259
  %v4261 = vpop.f32.mrb[0].mxu0
  %4262 = vmatprep.mubr.f32.mxu0 0.0
  %4263 = vmatmul.mubr.f32.gmra.mrb[0].mxu0 %v4171
  %v4264 = vpop.f32.mrb[0].mxu0
  %v4265 = vadd.f32 %v4161, %v4264
  %v4266 = vpop.f32.mrb[0].mxu0
  %4267 = vmatprep.mubr.f32.mxu0 0.0
  %4268 = vmatmul.mubr.f32.gmra.mrb[0].mxu0 %v4174
  %v4269 = vpop.f32.mrb[0].mxu0
  %v4270 = vadd.f32 %v4161, %v4269
  %v4271 = vpop.f32.mrb[0].mxu0
  %4272 = vmatprep.mubr.f32.mxu0 0.0
  %4273 = vmatmul.mubr.f32.gmra.mrb[0].mxu0 %v4177
  %v4274 = vpop.f32.mrb[0].mxu0
  %v4275 = vadd.f32 %v4161, %v4274
  %v4276 = vpop.f32.mrb[0].mxu0
  %4277 = vmatprep.mubr.f32.mxu0 0.0
  %4278 = vmatmul.mubr.f32.gmra.mrb[0].mxu0 %v4180
  %v4279 = vpop.f32.mrb[0].mxu0
  %v4280 = vadd.f32 %v4161, %v4279
  %v4281 = vpop.f32.mrb[0].mxu0
  %4282 = vmatprep.mubr.f32.mxu0 0.0
  %4283 = vmatmul.mubr.f32.gmra.mrb[0].mxu0 %v4183
  %v4284 = vpop.f32.mrb[0].mxu0
  %v4285 = vadd.f32 %v4161, %v4284
  %v4286 = vpop.f32.mrb[0].mxu0
  %4287 = vmatprep.mubr.f32.mxu0 0.0
  %4288 = vmatmul.mubr.f32.gmra.mrb[0].mxu0 %v4186
  %v4289 = vpop.f32.mrb[0].mxu0
  %v4290 = vadd.f32 %v4161, %v4289
  %v4291 = vpop.f32.mrb[0].mxu0
  %4292 = vdwg.mxu0
  %vm4293 = vcmask 15360
  %v4294 = vsel %vm4293, %v4255, -inf
  %4295 = vmax.xlane.f32.xlu0 %v4294
  %v4296 = vpop.xlane.xlu0 %4295
  %v4297 = vsel %vm4293, %v4260, -inf
  %4298 = vmax.xlane.f32.xlu0 %v4297
  %v4299 = vpop.xlane.xlu0 %4298
  %v4300 = vsel %vm4293, %v4265, -inf
  %4301 = vmax.xlane.f32.xlu0 %v4300
  %v4302 = vpop.xlane.xlu0 %4301
  %v4303 = vsel %vm4293, %v4270, -inf
  %4304 = vmax.xlane.f32.xlu0 %v4303
  %v4305 = vpop.xlane.xlu0 %4304
  %v4306 = vsel %vm4293, %v4275, -inf
  %4307 = vmax.xlane.f32.xlu0 %v4306
  %v4308 = vpop.xlane.xlu0 %4307
  %v4309 = vsel %vm4293, %v4280, -inf
  %4310 = vmax.xlane.f32.xlu0 %v4309
  %v4311 = vpop.xlane.xlu0 %4310
  %v4312 = vsel %vm4293, %v4285, -inf
  %4313 = vmax.xlane.f32.xlu0 %v4312
  %v4314 = vpop.xlane.xlu0 %4313
  %v4315 = vsel %vm4293, %v4290, -inf
  %4316 = vmax.xlane.f32.xlu0 %v4315
  %v4317 = vpop.xlane.xlu0 %4316
  %v4318 = vsub.f32 %v4255, %v4296
  %v4319 = vsub.f32 %v4260, %v4299
  %v4320 = vsub.f32 %v4265, %v4302
  %v4321 = vsub.f32 %v4270, %v4305
  %v4322 = vsub.f32 %v4275, %v4308
  %v4323 = vsub.f32 %v4280, %v4311
  %v4324 = vsub.f32 %v4285, %v4314
  %v4325 = vsub.f32 %v4290, %v4317
  %v4326 = vmul.f32 %v4318, 1.442695
  %v4327 = vpow.pop %v4326
  %v4328 = vmul.f32 %v4319, 1.442695
  %v4329 = vpow.pop %v4328
  %v4330 = vmul.f32 %v4320, 1.442695
  %v4331 = vpow.pop %v4330
  %v4332 = vmul.f32 %v4321, 1.442695
  %v4333 = vpow.pop %v4332
  %v4334 = vmul.f32 %v4322, 1.442695
  %v4335 = vpow.pop %v4334
  %v4336 = vmul.f32 %v4323, 1.442695
  %v4337 = vpow.pop %v4336
  %v4338 = vmul.f32 %v4324, 1.442695
  %v4339 = vpow.pop %v4338
  %v4340 = vmul.f32 %v4325, 1.442695
  %v4341 = vpow.pop %v4340
  %v4342 = vsel %vm4293, %v4327, 0.0
  %4343 = vadd.xlane.f32.xlu0 %v4342
  %v4344 = vpop.xlane.xlu0 %4343
  %v4345 = vsel %vm4293, %v4329, 0.0
  %4346 = vadd.xlane.f32.xlu0 %v4345
  %v4347 = vpop.xlane.xlu0 %4346
  %v4348 = vsel %vm4293, %v4331, 0.0
  %4349 = vadd.xlane.f32.xlu0 %v4348
  %v4350 = vpop.xlane.xlu0 %4349
  %v4351 = vsel %vm4293, %v4333, 0.0
  %4352 = vadd.xlane.f32.xlu0 %v4351
  %v4353 = vpop.xlane.xlu0 %4352
  %v4354 = vsel %vm4293, %v4335, 0.0
  %4355 = vadd.xlane.f32.xlu0 %v4354
  %v4356 = vpop.xlane.xlu0 %4355
  %v4357 = vsel %vm4293, %v4337, 0.0
  %4358 = vadd.xlane.f32.xlu0 %v4357
  %v4359 = vpop.xlane.xlu0 %4358
  %v4360 = vsel %vm4293, %v4339, 0.0
  %4361 = vadd.xlane.f32.xlu0 %v4360
  %v4362 = vpop.xlane.xlu0 %4361
  %v4363 = vsel %vm4293, %v4341, 0.0
  %4364 = vadd.xlane.f32.xlu0 %v4363
  %v4365 = vpop.xlane.xlu0 %4364
  %v4366 = vrcp.pop %v4344
  %v4367 = vmul.f32 %v4327, %v4366
  %v4368 = vrcp.pop %v4347
  %v4369 = vmul.f32 %v4329, %v4368
  %v4370 = vrcp.pop %v4350
  %v4371 = vmul.f32 %v4331, %v4370
  %v4372 = vrcp.pop %v4353
  %v4373 = vmul.f32 %v4333, %v4372
  %v4374 = vrcp.pop %v4356
  %v4375 = vmul.f32 %v4335, %v4374
  %v4376 = vrcp.pop %v4359
  %v4377 = vmul.f32 %v4337, %v4376
  %v4378 = vrcp.pop %v4362
  %v4379 = vmul.f32 %v4339, %v4378
  %v4380 = vrcp.pop %v4365
  %v4381 = vmul.f32 %v4341, %v4380
  %4382 = vst.msk [vmem:[%s9] sm:$0xff] %vm4293, %v4367
  %4383 = vst.msk [vmem:[%s9 + $0x8] sm:$0xff] %vm4293, %v4369
  %4384 = vst.msk [vmem:[%s9 + $0x10] sm:$0xff] %vm4293, %v4371
  %4385 = vst.msk [vmem:[%s9 + $0x18] sm:$0xff] %vm4293, %v4373
  %4386 = vst.msk [vmem:[%s9 + $0x20] sm:$0xff] %vm4293, %v4375
  %4387 = vst.msk [vmem:[%s9 + $0x28] sm:$0xff] %vm4293, %v4377
  %4388 = vst.msk [vmem:[%s9 + $0x30] sm:$0xff] %vm4293, %v4379
  %4389 = vst.msk [vmem:[%s9 + $0x38] sm:$0xff] %vm4293, %v4381
  // Predicated region
  $region38: #{tpu_custom_call.1} parent=0 // pred_check
    _
  $region39: #{tpu_custom_call.1} parent=0 // pred_check_branch
    %4391 = sbr.rel (0) target = $region41
  $region40: #{tpu_custom_call.1} parent=0 // pred_region
    _
  $region41: #{tpu_custom_call.1} parent=0 // pred_fallthru
    _
  // Predicated region
  $region42: #{tpu_custom_call.1} parent=0 // pred_check
    _
  $region43: #{tpu_custom_call.1} parent=0 // pred_check_branch
    %4393 = sbr.rel (0) target = $region45
  $region44: #{tpu_custom_call.1} parent=0 // pred_region
    _
  $region45: #{tpu_custom_call.1} parent=0 // pred_fallthru
    _

</llo_original>
